<compile_context>
chip_gen: v6e
topology: v6e:2x2x1
jax: 0.10.0
libtpu: 0.0.40
codegen_flags: <defaults>
</compile_context>

<pallas_src>
import jax
import jax.numpy as jnp
from jax.experimental import pallas as pl
from jax.experimental.pallas import tpu as pltpu


def _silu(x):
    return x * (1.0 / (1.0 + jnp.exp(-x)))


def _layer_norm_channels(x, gamma_col, beta_col, eps):
    """x: (C, L) f32, normalize over the channel (sublane) axis."""
    mean = jnp.mean(x, axis=0, keepdims=True)                      # (1, L)
    var = jnp.mean(jnp.square(x - mean), axis=0, keepdims=True)    # (1, L)
    inv = jax.lax.rsqrt(var + eps)
    return (x - mean) * inv * gamma_col + beta_col


def _im2col3(h, compute_dtype):
    """Stack [x[l-1]; x[l]; x[l+1]] along channels: (C, L) -> (3C, L)."""
    c, length = h.shape
    h_c = h.astype(compute_dtype)
    zero_col = jnp.zeros((c, 1), compute_dtype)
    h_prev = jnp.concatenate([zero_col, h_c[:, :length - 1]], axis=1)  # x[l-1]
    h_next = jnp.concatenate([h_c[:, 1:], zero_col], axis=1)           # x[l+1]
    return jnp.concatenate([h_prev, h_c, h_next], axis=0)              # (3C, L)


def _conv3(h, w_ref, bias_col, compute_dtype):
    """3-tap Conv1d with padding=1 in (C, L) layout as a single MXU matmul.

    h        : (C_in, L) f32
    w_ref    : (C_out, 3*C_in) ref, columns ordered [tap0 | tap1 | tap2]
    bias_col : (C_out, 1) f32
    """
    stacked = _im2col3(h, compute_dtype)                         # (3*C_in, L)
    y = jnp.dot(w_ref[...], stacked, preferred_element_type=jnp.float32)
    return y + bias_col


def _make_resnet_kernel(eps, shortcut_mode, compute_dtype):
    def kernel(*refs):
        if shortcut_mode == "identity":
            (x_ref, t_ref,
             g1_ref, be1_ref, w1_ref, cb1_ref,
             g2_ref, be2_ref, w2_ref, cb2_ref,
             o_ref) = refs
            ws_ref = bs_ref = None
        else:
            (x_ref, t_ref,
             g1_ref, be1_ref, w1_ref, cb1_ref,
             g2_ref, be2_ref, w2_ref, cb2_ref,
             ws_ref, bs_ref,
             o_ref) = refs

        x = x_ref[0].astype(jnp.float32)                        # (C_in, L)

        # norm1 (over channels) + SiLU
        h = _layer_norm_channels(x, g1_ref[...], be1_ref[...], eps)
        h = _silu(h)

        # conv1 (k=3, pad=1) + time-embedding projection add (per-batch column)
        h = _conv3(h, w1_ref, cb1_ref[...], compute_dtype)      # (C_out, L) f32
        h = h + t_ref[0]                                        # (C_out, 1) bcast

        # norm2 + SiLU; dropout is identity at inference
        # TODO(synk): training-mode dropout (random mask) not implemented.
        h = _layer_norm_channels(h, g2_ref[...], be2_ref[...], eps)
        h = _silu(h)

        # conv2 (k=3, pad=1)
        h = _conv3(h, w2_ref, cb2_ref[...], compute_dtype)      # (C_out, L)

        # shortcut path
        if shortcut_mode == "identity":
            sc = x
        elif shortcut_mode == "nin":
            sc = jnp.dot(ws_ref[...], x.astype(compute_dtype),
                         preferred_element_type=jnp.float32) + bs_ref[...]
        else:  # "conv"
            sc = _conv3(x, ws_ref, bs_ref[...], compute_dtype)

        o_ref[0] = (sc + h).astype(o_ref.dtype)

    return kernel


def resnet_block(x, t_emb, params, *, conv_shortcut=False, eps=1e-5,
                 compute_dtype=jnp.bfloat16):
    """x: (B, C_in, L) f32, t_emb: (B, T_emb) f32 or None. Returns (B, C_out, L)."""
    B, C_in, L = x.shape
    C_out = params["conv1_w"].shape[0]

    # Tiny per-batch GEMM for the time-embedding projection; broadcast over L
    # happens inside the kernel as a (C_out, 1) column add.
    if t_emb is not None:
        t_add = _silu(t_emb.astype(jnp.float32)) @ params["temb_w"].T.astype(
            jnp.float32) + params["temb_b"].astype(jnp.float32)
    else:
        t_add = jnp.zeros((B, C_out), jnp.float32)
    t_add = t_add[:, :, None]                                   # (B, C_out, 1)

    def col(v):
        return v.astype(jnp.float32).reshape(-1, 1)

    def stack_taps(w):
        # torch Conv1d weight (C_out, C_in, 3) -> (C_out, 3*C_in), columns
        # ordered [tap0 | tap1 | tap2] to match the in-kernel im2col stacking.
        co, ci, k = w.shape
        return jnp.transpose(w, (0, 2, 1)).reshape(co, k * ci).astype(compute_dtype)

    g1, be1 = col(params["norm1_g"]), col(params["norm1_b"])
    g2, be2 = col(params["norm2_g"]), col(params["norm2_b"])
    w1, cb1 = stack_taps(params["conv1_w"]), col(params["conv1_b"])
    w2, cb2 = stack_taps(params["conv2_w"]), col(params["conv2_b"])

    if C_in == C_out:
        shortcut_mode = "identity"
        sc_args, sc_specs = [], []
    elif conv_shortcut:
        shortcut_mode = "conv"
        ws = stack_taps(params["conv_shortcut_w"])
        bs = col(params["conv_shortcut_b"])
        sc_args = [ws, bs]
        sc_specs = [pl.BlockSpec((C_out, 3 * C_in), lambda b: (0, 0)),
                    pl.BlockSpec((C_out, 1), lambda b: (0, 0))]
    else:
        shortcut_mode = "nin"
        ws = params["nin_w"]
        if ws.ndim == 3:          # torch Conv1d(k=1) weight (C_out, C_in, 1)
            ws = ws[:, :, 0]
        ws = ws.astype(compute_dtype)
        bs = col(params["nin_b"])
        sc_args = [ws, bs]
        sc_specs = [pl.BlockSpec((C_out, C_in), lambda b: (0, 0)),
                    pl.BlockSpec((C_out, 1), lambda b: (0, 0))]

    kernel = _make_resnet_kernel(eps, shortcut_mode, compute_dtype)

    in_specs = [
        pl.BlockSpec((1, C_in, L), lambda b: (b, 0, 0)),        # x
        pl.BlockSpec((1, C_out, 1), lambda b: (b, 0, 0)),       # t_add
        pl.BlockSpec((C_in, 1), lambda b: (0, 0)),              # norm1 gamma
        pl.BlockSpec((C_in, 1), lambda b: (0, 0)),              # norm1 beta
        pl.BlockSpec((C_out, 3 * C_in), lambda b: (0, 0)),      # conv1 weight (stacked)
        pl.BlockSpec((C_out, 1), lambda b: (0, 0)),             # conv1 bias
        pl.BlockSpec((C_out, 1), lambda b: (0, 0)),             # norm2 gamma
        pl.BlockSpec((C_out, 1), lambda b: (0, 0)),             # norm2 beta
        pl.BlockSpec((C_out, 3 * C_out), lambda b: (0, 0)),     # conv2 weight (stacked)
        pl.BlockSpec((C_out, 1), lambda b: (0, 0)),             # conv2 bias
    ] + sc_specs

    out = pl.pallas_call(
        kernel,
        out_shape=jax.ShapeDtypeStruct((B, C_out, L), x.dtype),
        grid_spec=pltpu.PrefetchScalarGridSpec(
            num_scalar_prefetch=0,
            grid=(B,),
            in_specs=in_specs,
            out_specs=pl.BlockSpec((1, C_out, L), lambda b: (b, 0, 0)),
        ),
        compiler_params=pltpu.CompilerParams(
            dimension_semantics=("parallel",)),
    )(x, t_add, g1, be1, w1, cb1, g2, be2, w2, cb2, *sc_args)

    return out


# ----------------------------------------------------------------------------
# Pure-JAX reference (transcription of the torch forward) for verification.
# ----------------------------------------------------------------------------
def _conv1d_ref(x, w, b):
    y = jax.lax.conv_general_dilated(
        x, w, window_strides=(1,), padding=((1, 1),),
        dimension_numbers=("NCH", "OIH", "NCH"))
    return y + b[None, :, None]


def _reference(x, t_emb, params, *, conv_shortcut=False, eps=1e-5):
    C_in = x.shape[1]
    C_out = params["conv1_w"].shape[0]

    def ln(h_ncl, g, b):
        h = jnp.transpose(h_ncl, (0, 2, 1))
        mu = jnp.mean(h, axis=-1, keepdims=True)
        var = jnp.mean(jnp.square(h - mu), axis=-1, keepdims=True)
        h = (h - mu) / jnp.sqrt(var + eps) * g + b
        return jnp.transpose(h, (0, 2, 1))

    h = ln(x, params["norm1_g"], params["norm1_b"])
    h = jax.nn.silu(h)
    h = _conv1d_ref(h, params["conv1_w"], params["conv1_b"])
    if t_emb is not None:
        h = h + (jax.nn.silu(t_emb) @ params["temb_w"].T
                 + params["temb_b"])[:, :, None]
    h = ln(h, params["norm2_g"], params["norm2_b"])
    h = jax.nn.silu(h)
    h = _conv1d_ref(h, params["conv2_w"], params["conv2_b"])
    if C_in != C_out:
        if conv_shortcut:
            x = _conv1d_ref(x, params["conv_shortcut_w"], params["conv_shortcut_b"])
        else:
            w = params["nin_w"]
            if w.ndim == 3:
                w = w[:, :, 0]
            x = jnp.einsum("oc,bcl->bol", w, x) + params["nin_b"][None, :, None]
    return x + h


if __name__ == "__main__":
    B, C_IN, C_OUT, L, T_EMB = 2, 128, 256, 128, 64
    f32 = jnp.float32

    def bf16_snap(a):  # snap weights to the bf16 grid so kernel/ref match closely
        return a.astype(jnp.bfloat16).astype(jnp.float32)

    key = jax.random.PRNGKey(0)
    ks = jax.random.split(key, 16)

    x = jax.random.normal(ks[0], (B, C_IN, L), f32)
    t_emb = jax.random.normal(ks[1], (B, T_EMB), f32)

    params = dict(
        norm1_g=1.0 + 0.1 * jax.random.normal(ks[2], (C_IN,), f32),
        norm1_b=0.1 * jax.random.normal(ks[3], (C_IN,), f32),
        conv1_w=bf16_snap(0.05 * jax.random.normal(ks[4], (C_OUT, C_IN, 3), f32)),
        conv1_b=0.1 * jax.random.normal(ks[5], (C_OUT,), f32),
        temb_w=0.05 * jax.random.normal(ks[6], (C_OUT, T_EMB), f32),
        temb_b=0.1 * jax.random.normal(ks[7], (C_OUT,), f32),
        norm2_g=1.0 + 0.1 * jax.random.normal(ks[8], (C_OUT,), f32),
        norm2_b=0.1 * jax.random.normal(ks[9], (C_OUT,), f32),
        conv2_w=bf16_snap(0.05 * jax.random.normal(ks[10], (C_OUT, C_OUT, 3), f32)),
        conv2_b=0.1 * jax.random.normal(ks[11], (C_OUT,), f32),
        nin_w=bf16_snap(0.05 * jax.random.normal(ks[12], (C_OUT, C_IN, 1), f32)),
        nin_b=0.1 * jax.random.normal(ks[13], (C_OUT,), f32),
    )

    out = resnet_block(x, t_emb, params, conv_shortcut=False)
    out = jax.block_until_ready(out)

    ref = _reference(x, t_emb, params, conv_shortcut=False)
    assert out.shape == (B, C_OUT, L)
    max_err = jnp.max(jnp.abs(out - ref))
    assert jnp.allclose(out, ref, atol=3e-2, rtol=3e-2), f"max abs err {max_err}"

    print("KERNEL_OK")
</pallas_src>

<mosaic_0001>
module attributes {stable_mosaic.version = 11 : i64} {
  func.func @kernel(%arg0: i32, %arg1: memref<1x128x128xf32, #tpu.memory_space<vmem>>, %arg2: memref<1x256x1xf32, #tpu.memory_space<vmem>>, %arg3: memref<128x1xf32, #tpu.memory_space<vmem>>, %arg4: memref<128x1xf32, #tpu.memory_space<vmem>>, %arg5: memref<256x384xbf16, #tpu.memory_space<vmem>>, %arg6: memref<256x1xf32, #tpu.memory_space<vmem>>, %arg7: memref<256x1xf32, #tpu.memory_space<vmem>>, %arg8: memref<256x1xf32, #tpu.memory_space<vmem>>, %arg9: memref<256x768xbf16, #tpu.memory_space<vmem>>, %arg10: memref<256x1xf32, #tpu.memory_space<vmem>>, %arg11: memref<256x128xbf16, #tpu.memory_space<vmem>>, %arg12: memref<256x1xf32, #tpu.memory_space<vmem>>, %arg13: memref<1x256x128xf32, #tpu.memory_space<vmem>>) attributes {dimension_semantics = [#tpu.dimension_semantics<parallel>], iteration_bounds = array<i64: 2>, scalar_prefetch = 0 : i64, scratch_operands = 0 : i64, tpu.core_type = #tpu.core_type<tc>, window_params = [{transform_indices = @transform_0, window_bounds = array<i64: 1, 128, 128>}, {transform_indices = @transform_1, window_bounds = array<i64: 1, 256, 1>}, {pipeline_mode = #tpu.pipeline_mode<synchronous>, transform_indices = @transform_2, window_bounds = array<i64: 128, 1>}, {pipeline_mode = #tpu.pipeline_mode<synchronous>, transform_indices = @transform_3, window_bounds = array<i64: 128, 1>}, {pipeline_mode = #tpu.pipeline_mode<synchronous>, transform_indices = @transform_4, window_bounds = array<i64: 256, 384>}, {pipeline_mode = #tpu.pipeline_mode<synchronous>, transform_indices = @transform_5, window_bounds = array<i64: 256, 1>}, {pipeline_mode = #tpu.pipeline_mode<synchronous>, transform_indices = @transform_6, window_bounds = array<i64: 256, 1>}, {pipeline_mode = #tpu.pipeline_mode<synchronous>, transform_indices = @transform_7, window_bounds = array<i64: 256, 1>}, {pipeline_mode = #tpu.pipeline_mode<synchronous>, transform_indices = @transform_8, window_bounds = array<i64: 256, 768>}, {pipeline_mode = #tpu.pipeline_mode<synchronous>, transform_indices = @transform_9, window_bounds = array<i64: 256, 1>}, {pipeline_mode = #tpu.pipeline_mode<synchronous>, transform_indices = @transform_10, window_bounds = array<i64: 256, 128>}, {pipeline_mode = #tpu.pipeline_mode<synchronous>, transform_indices = @transform_11, window_bounds = array<i64: 256, 1>}, {transform_indices = @transform_12, window_bounds = array<i64: 1, 256, 128>}]} {
    %c0 = arith.constant 0 : index
    %c0_0 = arith.constant 0 : index
    %c0_1 = arith.constant 0 : index
    %0 = vector.load %arg1[%c0, %c0_0, %c0_1] : memref<1x128x128xf32, #tpu.memory_space<vmem>>, vector<1x128x128xf32>
    %1 = vector.shape_cast %0 : vector<1x128x128xf32> to vector<128x128xf32>
    %c0_2 = arith.constant 0 : index
    %c0_3 = arith.constant 0 : index
    %2 = vector.load %arg3[%c0_2, %c0_3] : memref<128x1xf32, #tpu.memory_space<vmem>>, vector<128x1xf32>
    %c0_4 = arith.constant 0 : index
    %c0_5 = arith.constant 0 : index
    %3 = vector.load %arg4[%c0_4, %c0_5] : memref<128x1xf32, #tpu.memory_space<vmem>>, vector<128x1xf32>
    %cst = arith.constant dense<0.000000e+00> : vector<128xf32>
    %4 = vector.multi_reduction <add>, %1, %cst [0] : vector<128x128xf32> to vector<128xf32>
    %5 = vector.shape_cast %4 : vector<128xf32> to vector<1x128xf32>
    %cst_6 = arith.constant 1.280000e+02 : f32
    %6 = vector.broadcast %cst_6 : f32 to vector<1x128xf32>
    %7 = arith.divf %5, %6 : vector<1x128xf32>
    %8 = vector.broadcast %7 : vector<1x128xf32> to vector<128x128xf32>
    %9 = arith.subf %1, %8 : vector<128x128xf32>
    %10 = arith.mulf %9, %9 : vector<128x128xf32>
    %cst_7 = arith.constant dense<0.000000e+00> : vector<128xf32>
    %11 = vector.multi_reduction <add>, %10, %cst_7 [0] : vector<128x128xf32> to vector<128xf32>
    %12 = vector.shape_cast %11 : vector<128xf32> to vector<1x128xf32>
    %cst_8 = arith.constant 1.280000e+02 : f32
    %13 = vector.broadcast %cst_8 : f32 to vector<1x128xf32>
    %14 = arith.divf %12, %13 : vector<1x128xf32>
    %cst_9 = arith.constant 9.99999974E-6 : f32
    %15 = vector.broadcast %cst_9 : f32 to vector<1x128xf32>
    %16 = arith.addf %14, %15 : vector<1x128xf32>
    %17 = math.rsqrt %16 : vector<1x128xf32>
    %18 = vector.broadcast %7 : vector<1x128xf32> to vector<128x128xf32>
    %19 = arith.subf %1, %18 : vector<128x128xf32>
    %20 = vector.broadcast %17 : vector<1x128xf32> to vector<128x128xf32>
    %21 = arith.mulf %19, %20 : vector<128x128xf32>
    %22 = vector.broadcast %2 : vector<128x1xf32> to vector<128x128xf32>
    %23 = arith.mulf %21, %22 : vector<128x128xf32>
    %24 = vector.broadcast %3 : vector<128x1xf32> to vector<128x128xf32>
    %25 = arith.addf %23, %24 : vector<128x128xf32>
    %cst_10 = arith.constant 0.000000e+00 : f32
    %26 = vector.broadcast %cst_10 : f32 to vector<128x128xf32>
    %27 = arith.subf %26, %25 : vector<128x128xf32>
    %28 = math.exp %27 : vector<128x128xf32>
    %cst_11 = arith.constant 1.000000e+00 : f32
    %29 = vector.broadcast %cst_11 : f32 to vector<128x128xf32>
    %30 = arith.addf %29, %28 : vector<128x128xf32>
    %cst_12 = arith.constant 1.000000e+00 : f32
    %31 = vector.broadcast %cst_12 : f32 to vector<128x128xf32>
    %32 = arith.divf %31, %30 : vector<128x128xf32>
    %33 = arith.mulf %25, %32 : vector<128x128xf32>
    %c0_13 = arith.constant 0 : index
    %c0_14 = arith.constant 0 : index
    %34 = vector.load %arg6[%c0_13, %c0_14] : memref<256x1xf32, #tpu.memory_space<vmem>>, vector<256x1xf32>
    %35 = arith.truncf %33 : vector<128x128xf32> to vector<128x128xbf16>
    %cst_15 = arith.constant 0.000000e+00 : bf16
    %36 = vector.broadcast %cst_15 : bf16 to vector<128x1xbf16>
    %37 = vector.extract_strided_slice %35 {offsets = [0, 0], sizes = [128, 127], strides = [1, 1]} : vector<128x128xbf16> to vector<128x127xbf16>
    %38 = tpu.concatenate %36, %37 in 1 : vector<128x1xbf16>, vector<128x127xbf16> -> vector<128x128xbf16>
    %39 = vector.extract_strided_slice %35 {offsets = [0, 1], sizes = [128, 127], strides = [1, 1]} : vector<128x128xbf16> to vector<128x127xbf16>
    %40 = tpu.concatenate %39, %36 in 1 : vector<128x127xbf16>, vector<128x1xbf16> -> vector<128x128xbf16>
    %41 = tpu.concatenate %38, %35, %40 in 0 : vector<128x128xbf16>, vector<128x128xbf16>, vector<128x128xbf16> -> vector<384x128xbf16>
    %c0_16 = arith.constant 0 : index
    %c0_17 = arith.constant 0 : index
    %42 = vector.load %arg5[%c0_16, %c0_17] : memref<256x384xbf16, #tpu.memory_space<vmem>>, vector<256x384xbf16>
    %cst_18 = arith.constant dense<0.000000e+00> : vector<256x128xf32>
    %43 = tpu.matmul %42, %41, %cst_18 {dimension_numbers = #tpu.dot_dimension_numbers<[1], [0], [0], [1], [0, 0, 1, 1], [], []>} : vector<256x384xbf16>, vector<384x128xbf16>, vector<256x128xf32> -> vector<256x128xf32>
    %44 = vector.broadcast %34 : vector<256x1xf32> to vector<256x128xf32>
    %45 = arith.addf %43, %44 : vector<256x128xf32>
    %c0_19 = arith.constant 0 : index
    %c0_20 = arith.constant 0 : index
    %c0_21 = arith.constant 0 : index
    %46 = vector.load %arg2[%c0_19, %c0_20, %c0_21] : memref<1x256x1xf32, #tpu.memory_space<vmem>>, vector<1x256x1xf32>
    %47 = vector.shape_cast %46 : vector<1x256x1xf32> to vector<256x1xf32>
    %48 = vector.broadcast %47 : vector<256x1xf32> to vector<256x128xf32>
    %49 = arith.addf %45, %48 : vector<256x128xf32>
    %c0_22 = arith.constant 0 : index
    %c0_23 = arith.constant 0 : index
    %50 = vector.load %arg7[%c0_22, %c0_23] : memref<256x1xf32, #tpu.memory_space<vmem>>, vector<256x1xf32>
    %c0_24 = arith.constant 0 : index
    %c0_25 = arith.constant 0 : index
    %51 = vector.load %arg8[%c0_24, %c0_25] : memref<256x1xf32, #tpu.memory_space<vmem>>, vector<256x1xf32>
    %cst_26 = arith.constant dense<0.000000e+00> : vector<128xf32>
    %52 = vector.multi_reduction <add>, %49, %cst_26 [0] : vector<256x128xf32> to vector<128xf32>
    %53 = vector.shape_cast %52 : vector<128xf32> to vector<1x128xf32>
    %cst_27 = arith.constant 2.560000e+02 : f32
    %54 = vector.broadcast %cst_27 : f32 to vector<1x128xf32>
    %55 = arith.divf %53, %54 : vector<1x128xf32>
    %56 = vector.broadcast %55 : vector<1x128xf32> to vector<256x128xf32>
    %57 = arith.subf %49, %56 : vector<256x128xf32>
    %58 = arith.mulf %57, %57 : vector<256x128xf32>
    %cst_28 = arith.constant dense<0.000000e+00> : vector<128xf32>
    %59 = vector.multi_reduction <add>, %58, %cst_28 [0] : vector<256x128xf32> to vector<128xf32>
    %60 = vector.shape_cast %59 : vector<128xf32> to vector<1x128xf32>
    %cst_29 = arith.constant 2.560000e+02 : f32
    %61 = vector.broadcast %cst_29 : f32 to vector<1x128xf32>
    %62 = arith.divf %60, %61 : vector<1x128xf32>
    %cst_30 = arith.constant 9.99999974E-6 : f32
    %63 = vector.broadcast %cst_30 : f32 to vector<1x128xf32>
    %64 = arith.addf %62, %63 : vector<1x128xf32>
    %65 = math.rsqrt %64 : vector<1x128xf32>
    %66 = vector.broadcast %55 : vector<1x128xf32> to vector<256x128xf32>
    %67 = arith.subf %49, %66 : vector<256x128xf32>
    %68 = vector.broadcast %65 : vector<1x128xf32> to vector<256x128xf32>
    %69 = arith.mulf %67, %68 : vector<256x128xf32>
    %70 = vector.broadcast %50 : vector<256x1xf32> to vector<256x128xf32>
    %71 = arith.mulf %69, %70 : vector<256x128xf32>
    %72 = vector.broadcast %51 : vector<256x1xf32> to vector<256x128xf32>
    %73 = arith.addf %71, %72 : vector<256x128xf32>
    %cst_31 = arith.constant 0.000000e+00 : f32
    %74 = vector.broadcast %cst_31 : f32 to vector<256x128xf32>
    %75 = arith.subf %74, %73 : vector<256x128xf32>
    %76 = math.exp %75 : vector<256x128xf32>
    %cst_32 = arith.constant 1.000000e+00 : f32
    %77 = vector.broadcast %cst_32 : f32 to vector<256x128xf32>
    %78 = arith.addf %77, %76 : vector<256x128xf32>
    %cst_33 = arith.constant 1.000000e+00 : f32
    %79 = vector.broadcast %cst_33 : f32 to vector<256x128xf32>
    %80 = arith.divf %79, %78 : vector<256x128xf32>
    %81 = arith.mulf %73, %80 : vector<256x128xf32>
    %c0_34 = arith.constant 0 : index
    %c0_35 = arith.constant 0 : index
    %82 = vector.load %arg10[%c0_34, %c0_35] : memref<256x1xf32, #tpu.memory_space<vmem>>, vector<256x1xf32>
    %83 = arith.truncf %81 : vector<256x128xf32> to vector<256x128xbf16>
    %cst_36 = arith.constant 0.000000e+00 : bf16
    %84 = vector.broadcast %cst_36 : bf16 to vector<256x1xbf16>
    %85 = vector.extract_strided_slice %83 {offsets = [0, 0], sizes = [256, 127], strides = [1, 1]} : vector<256x128xbf16> to vector<256x127xbf16>
    %86 = tpu.concatenate %84, %85 in 1 : vector<256x1xbf16>, vector<256x127xbf16> -> vector<256x128xbf16>
    %87 = vector.extract_strided_slice %83 {offsets = [0, 1], sizes = [256, 127], strides = [1, 1]} : vector<256x128xbf16> to vector<256x127xbf16>
    %88 = tpu.concatenate %87, %84 in 1 : vector<256x127xbf16>, vector<256x1xbf16> -> vector<256x128xbf16>
    %89 = tpu.concatenate %86, %83, %88 in 0 : vector<256x128xbf16>, vector<256x128xbf16>, vector<256x128xbf16> -> vector<768x128xbf16>
    %c0_37 = arith.constant 0 : index
    %c0_38 = arith.constant 0 : index
    %90 = vector.load %arg9[%c0_37, %c0_38] : memref<256x768xbf16, #tpu.memory_space<vmem>>, vector<256x768xbf16>
    %cst_39 = arith.constant dense<0.000000e+00> : vector<256x128xf32>
    %91 = tpu.matmul %90, %89, %cst_39 {dimension_numbers = #tpu.dot_dimension_numbers<[1], [0], [0], [1], [0, 0, 1, 1], [], []>} : vector<256x768xbf16>, vector<768x128xbf16>, vector<256x128xf32> -> vector<256x128xf32>
    %92 = vector.broadcast %82 : vector<256x1xf32> to vector<256x128xf32>
    %93 = arith.addf %91, %92 : vector<256x128xf32>
    %c0_40 = arith.constant 0 : index
    %c0_41 = arith.constant 0 : index
    %94 = vector.load %arg11[%c0_40, %c0_41] : memref<256x128xbf16, #tpu.memory_space<vmem>>, vector<256x128xbf16>
    %95 = arith.truncf %1 : vector<128x128xf32> to vector<128x128xbf16>
    %cst_42 = arith.constant dense<0.000000e+00> : vector<256x128xf32>
    %96 = tpu.matmul %94, %95, %cst_42 {dimension_numbers = #tpu.dot_dimension_numbers<[1], [0], [0], [1], [0, 0, 1, 1], [], []>} : vector<256x128xbf16>, vector<128x128xbf16>, vector<256x128xf32> -> vector<256x128xf32>
    %c0_43 = arith.constant 0 : index
    %c0_44 = arith.constant 0 : index
    %97 = vector.load %arg12[%c0_43, %c0_44] : memref<256x1xf32, #tpu.memory_space<vmem>>, vector<256x1xf32>
    %98 = vector.broadcast %97 : vector<256x1xf32> to vector<256x128xf32>
    %99 = arith.addf %96, %98 : vector<256x128xf32>
    %100 = arith.addf %99, %93 : vector<256x128xf32>
    %c0_45 = arith.constant 0 : index
    %c0_46 = arith.constant 0 : index
    %c0_47 = arith.constant 0 : index
    %101 = vector.load %arg13[%c0_45, %c0_46, %c0_47] : memref<1x256x128xf32, #tpu.memory_space<vmem>>, vector<1x256x128xf32>
    %102 = vector.shape_cast %101 : vector<1x256x128xf32> to vector<256x128xf32>
    %103 = vector.shape_cast %100 : vector<256x128xf32> to vector<1x256x128xf32>
    tpu.vector_store %arg13[%c0_45, %c0_46, %c0_47], %103 {strides = array<i32>} : memref<1x256x128xf32, #tpu.memory_space<vmem>>, vector<1x256x128xf32>,
    return
  }
  func.func @transform_0(%arg0: i32) -> (i32, i32, i32) {
    %c0_i32 = arith.constant 0 : i32
    %c0_i32_0 = arith.constant 0 : i32
    %c0_i32_1 = arith.constant 0 : i32
    return %arg0, %c0_i32, %c0_i32_0 : i32, i32, i32
  }
  func.func @transform_1(%arg0: i32) -> (i32, i32, i32) {
    %c0_i32 = arith.constant 0 : i32
    %c0_i32_0 = arith.constant 0 : i32
    %c0_i32_1 = arith.constant 0 : i32
    return %arg0, %c0_i32, %c0_i32_0 : i32, i32, i32
  }
  func.func @transform_2(%arg0: i32) -> (i32, i32) {
    %c0_i32 = arith.constant 0 : i32
    %c0_i32_0 = arith.constant 0 : i32
    %c0_i32_1 = arith.constant 0 : i32
    return %c0_i32, %c0_i32_0 : i32, i32
  }
  func.func @transform_3(%arg0: i32) -> (i32, i32) {
    %c0_i32 = arith.constant 0 : i32
    %c0_i32_0 = arith.constant 0 : i32
    %c0_i32_1 = arith.constant 0 : i32
    return %c0_i32, %c0_i32_0 : i32, i32
  }
  func.func @transform_4(%arg0: i32) -> (i32, i32) {
    %c0_i32 = arith.constant 0 : i32
    %c0_i32_0 = arith.constant 0 : i32
    %c0_i32_1 = arith.constant 0 : i32
    return %c0_i32, %c0_i32_0 : i32, i32
  }
  func.func @transform_5(%arg0: i32) -> (i32, i32) {
    %c0_i32 = arith.constant 0 : i32
    %c0_i32_0 = arith.constant 0 : i32
    %c0_i32_1 = arith.constant 0 : i32
    return %c0_i32, %c0_i32_0 : i32, i32
  }
  func.func @transform_6(%arg0: i32) -> (i32, i32) {
    %c0_i32 = arith.constant 0 : i32
    %c0_i32_0 = arith.constant 0 : i32
    %c0_i32_1 = arith.constant 0 : i32
    return %c0_i32, %c0_i32_0 : i32, i32
  }
  func.func @transform_7(%arg0: i32) -> (i32, i32) {
    %c0_i32 = arith.constant 0 : i32
    %c0_i32_0 = arith.constant 0 : i32
    %c0_i32_1 = arith.constant 0 : i32
    return %c0_i32, %c0_i32_0 : i32, i32
  }
  func.func @transform_8(%arg0: i32) -> (i32, i32) {
    %c0_i32 = arith.constant 0 : i32
    %c0_i32_0 = arith.constant 0 : i32
    %c0_i32_1 = arith.constant 0 : i32
    return %c0_i32, %c0_i32_0 : i32, i32
  }
  func.func @transform_9(%arg0: i32) -> (i32, i32) {
    %c0_i32 = arith.constant 0 : i32
    %c0_i32_0 = arith.constant 0 : i32
    %c0_i32_1 = arith.constant 0 : i32
    return %c0_i32, %c0_i32_0 : i32, i32
  }
  func.func @transform_10(%arg0: i32) -> (i32, i32) {
    %c0_i32 = arith.constant 0 : i32
    %c0_i32_0 = arith.constant 0 : i32
    %c0_i32_1 = arith.constant 0 : i32
    return %c0_i32, %c0_i32_0 : i32, i32
  }
  func.func @transform_11(%arg0: i32) -> (i32, i32) {
    %c0_i32 = arith.constant 0 : i32
    %c0_i32_0 = arith.constant 0 : i32
    %c0_i32_1 = arith.constant 0 : i32
    return %c0_i32, %c0_i32_0 : i32, i32
  }
  func.func @transform_12(%arg0: i32) -> (i32, i32, i32) {
    %c0_i32 = arith.constant 0 : i32
    %c0_i32_0 = arith.constant 0 : i32
    %c0_i32_1 = arith.constant 0 : i32
    return %arg0, %c0_i32, %c0_i32_0 : i32, i32, i32
  }
}

</mosaic_0001>

<llo_original>
// kernel: tpu_custom_call.1
$region0: #{tpu_custom_call.1}
  #allocation0 [shape = 'u32[]', space=smem, size = 0x4, offset = 0x4, fixed_abs, tag = 'smem constant byte address 0x4 - core index']
  #allocation1 [shape = 'u32[144,128]{1,0:T(1,128)}', space=vmem, size = 0x12000, scoped, tag = 'internal scratch']
  %s0 = inlined_call_operand.vmem [shape: f32[2,128,128], index: 0, kind: input, shape index: {}]
  %s1 = inlined_call_operand.vmem [shape: f32[2,256,1], index: 1, kind: input, shape index: {}]
  %s2 = inlined_call_operand.vmem [shape: f32[128,1], index: 2, kind: input, shape index: {}]
  %s3 = inlined_call_operand.vmem [shape: f32[128,1], index: 3, kind: input, shape index: {}]
  %s4 = inlined_call_operand.vmem [shape: bf16[256,384], index: 4, kind: input, shape index: {}]
  %s5 = inlined_call_operand.vmem [shape: f32[256,1], index: 5, kind: input, shape index: {}]
  %s6 = inlined_call_operand.vmem [shape: f32[256,1], index: 6, kind: input, shape index: {}]
  %s7 = inlined_call_operand.vmem [shape: f32[256,1], index: 7, kind: input, shape index: {}]
  %s8 = inlined_call_operand.vmem [shape: bf16[256,768], index: 8, kind: input, shape index: {}]
  %s9 = inlined_call_operand.vmem [shape: f32[256,1], index: 9, kind: input, shape index: {}]
  %s10 = inlined_call_operand.vmem [shape: bf16[256,128], index: 10, kind: input, shape index: {}]
  %s11 = inlined_call_operand.vmem [shape: f32[256,1], index: 11, kind: input, shape index: {}]
  %s12 = inlined_call_operand.hbm [shape: f32[2,256,128], index: 12, kind: output, shape index: {}]
  %s13 = sld [smem:[#allocation0]]
  $region81: #{tpu_custom_call.1} parent=0
    _
  %s15 = ssub.s32 1, %s13
  %s16 = scalar_select 0, %s15, %s13
  $region1: #{tpu_custom_call.1} parent=0
    #allocation2 [shape = 'u8[262144]{0}', space=vmem, size = 0x40000, scoped, tag = 'output window, operand 0']
    #allocation3 [shape = 's32[2]{0}', space=sflag, size = 0x8, scoped, tag = 'scoped memory for tpu_custom_call.1']
    %17 = vsyncpa [#allocation3], 0
    %s18 = scalar_lea.sflag [#allocation3], 1
    %19 = vsyncpa %s18, 0
    loop: start=0, step=1, limit=4
    $region2: #{tpu_custom_call.1} parent=1 // loop_pre_header
      _
    $region3: #{tpu_custom_call.1} parent=1 // loop_header
      %s21 = sphi 0, %s25
      %p22 = scmp.ge.s32.totalorder %s21, 4
      %s31 = sphi 0, %s33
      %s34 = sphi 0, %s31
      %s35 = sphi 0, %s34
      %s51 = sphi 0, %s35
      %s57 = sphi 0, %s59
      %s60 = sphi 0, %s57
      %s61 = sphi 0, %s60
      %s77 = sphi 0, %s61
      %s81 = sphi 0, %s81
      %s83 = sphi 0, %s81
      %s84 = sphi 0, %s83
      %s98 = sphi 0, %s84
      %s102 = sphi 0, %s102
      %s104 = sphi 0, %s102
      %s105 = sphi 0, %s104
      %s119 = sphi 0, %s105
      %s123 = sphi 0, %s123
      %s125 = sphi 0, %s123
      %s126 = sphi 0, %s125
      %s140 = sphi 0, %s126
      %s144 = sphi 0, %s144
      %s146 = sphi 0, %s144
      %s147 = sphi 0, %s146
      %s161 = sphi 0, %s147
      %s165 = sphi 0, %s165
      %s167 = sphi 0, %s165
      %s168 = sphi 0, %s167
      %s182 = sphi 0, %s168
      %s186 = sphi 0, %s186
      %s188 = sphi 0, %s186
      %s189 = sphi 0, %s188
      %s203 = sphi 0, %s189
      %s207 = sphi 0, %s207
      %s209 = sphi 0, %s207
      %s210 = sphi 0, %s209
      %s224 = sphi 0, %s210
      %s228 = sphi 0, %s228
      %s230 = sphi 0, %s228
      %s231 = sphi 0, %s230
      %s245 = sphi 0, %s231
      %s249 = sphi 0, %s249
      %s251 = sphi 0, %s249
      %s252 = sphi 0, %s251
      %s266 = sphi 0, %s252
      %s270 = sphi 0, %s270
      %s272 = sphi 0, %s270
      %s273 = sphi 0, %s272
      %s287 = sphi 0, %s273
      %s293 = sphi 0, %s295
      %s296 = sphi 0, %s293
      %s297 = sphi 0, %s296
      %s313 = sphi 0, %s297
    $region4: #{tpu_custom_call.1} parent=1 // loop_header_branch
      %24 = sbr.rel (%p22) target = $region8
    $region5: #{tpu_custom_call.1} parent=1 // loop_body
      %s26 = ssub.s32 %s21, 1
      %s27 = ssub.s32 %s21, 2
      %s28 = sadd.s32 %s21, 1
      %s29 = ssub.s32 %s21, %s28
      %p30 = scmp.eq.s32.totalorder %s29, 0
      %s32 = sadd.s32 %s31, 1
      %s33 = scalar_select %p30, %s31, %s32
      %p36 = pneg %p30
      %p37 = scmp.eq.s32.totalorder %s21, 1
      %p38 = por %p36, %p37
      %p39 = scmp.ne.s32.totalorder %s31, %s34
      %p40 = scmp.eq.s32.totalorder %s21, 0
      %p41 = por %p39, %p40
      %p42 = scmp.ne.s32.totalorder %s31, %s34
      %p43 = scmp.eq.s32.totalorder %s26, 1
      %p44 = por %p42, %p43
      %p45 = scmp.ne.s32.totalorder %s34, %s35
      %p46 = scmp.eq.s32.totalorder %s26, 0
      %p47 = por %p45, %p46
      %p48 = scmp.ne.s32.totalorder %s34, %s35
      %p49 = scmp.eq.s32.totalorder %s27, 1
      %p50 = por %p48, %p49
      %p52 = scmp.ne.s32.totalorder %s35, %s51
      %p53 = scmp.eq.s32.totalorder %s27, 0
      %p54 = por %p52, %p53
      %s55 = ssub.s32 %s21, %s28
      %p56 = scmp.eq.s32.totalorder %s55, 0
      %s58 = sadd.s32 %s57, 1
      %s59 = scalar_select %p56, %s57, %s58
      %p62 = pneg %p56
      %p63 = scmp.eq.s32.totalorder %s21, 1
      %p64 = por %p62, %p63
      %p65 = scmp.ne.s32.totalorder %s57, %s60
      %p66 = scmp.eq.s32.totalorder %s21, 0
      %p67 = por %p65, %p66
      %p68 = scmp.ne.s32.totalorder %s57, %s60
      %p69 = scmp.eq.s32.totalorder %s26, 1
      %p70 = por %p68, %p69
      %p71 = scmp.ne.s32.totalorder %s60, %s61
      %p72 = scmp.eq.s32.totalorder %s26, 0
      %p73 = por %p71, %p72
      %p74 = scmp.ne.s32.totalorder %s60, %s61
      %p75 = scmp.eq.s32.totalorder %s27, 1
      %p76 = por %p74, %p75
      %p78 = scmp.ne.s32.totalorder %s61, %s77
      %p79 = scmp.eq.s32.totalorder %s27, 0
      %p80 = por %p78, %p79
      %s82 = sadd.s32 %s81, 1
      %p85 = scmp.eq.s32.totalorder %s21, 1
      %p86 = scmp.ne.s32.totalorder %s81, %s83
      %p87 = scmp.eq.s32.totalorder %s21, 0
      %p88 = por %p86, %p87
      %p89 = scmp.ne.s32.totalorder %s81, %s83
      %p90 = scmp.eq.s32.totalorder %s26, 1
      %p91 = por %p89, %p90
      %p92 = scmp.ne.s32.totalorder %s83, %s84
      %p93 = scmp.eq.s32.totalorder %s26, 0
      %p94 = por %p92, %p93
      %p95 = scmp.ne.s32.totalorder %s83, %s84
      %p96 = scmp.eq.s32.totalorder %s27, 1
      %p97 = por %p95, %p96
      %p99 = scmp.ne.s32.totalorder %s84, %s98
      %p100 = scmp.eq.s32.totalorder %s27, 0
      %p101 = por %p99, %p100
      %s103 = sadd.s32 %s102, 1
      %p106 = scmp.eq.s32.totalorder %s21, 1
      %p107 = scmp.ne.s32.totalorder %s102, %s104
      %p108 = scmp.eq.s32.totalorder %s21, 0
      %p109 = por %p107, %p108
      %p110 = scmp.ne.s32.totalorder %s102, %s104
      %p111 = scmp.eq.s32.totalorder %s26, 1
      %p112 = por %p110, %p111
      %p113 = scmp.ne.s32.totalorder %s104, %s105
      %p114 = scmp.eq.s32.totalorder %s26, 0
      %p115 = por %p113, %p114
      %p116 = scmp.ne.s32.totalorder %s104, %s105
      %p117 = scmp.eq.s32.totalorder %s27, 1
      %p118 = por %p116, %p117
      %p120 = scmp.ne.s32.totalorder %s105, %s119
      %p121 = scmp.eq.s32.totalorder %s27, 0
      %p122 = por %p120, %p121
      %s124 = sadd.s32 %s123, 1
      %p127 = scmp.eq.s32.totalorder %s21, 1
      %p128 = scmp.ne.s32.totalorder %s123, %s125
      %p129 = scmp.eq.s32.totalorder %s21, 0
      %p130 = por %p128, %p129
      %p131 = scmp.ne.s32.totalorder %s123, %s125
      %p132 = scmp.eq.s32.totalorder %s26, 1
      %p133 = por %p131, %p132
      %p134 = scmp.ne.s32.totalorder %s125, %s126
      %p135 = scmp.eq.s32.totalorder %s26, 0
      %p136 = por %p134, %p135
      %p137 = scmp.ne.s32.totalorder %s125, %s126
      %p138 = scmp.eq.s32.totalorder %s27, 1
      %p139 = por %p137, %p138
      %p141 = scmp.ne.s32.totalorder %s126, %s140
      %p142 = scmp.eq.s32.totalorder %s27, 0
      %p143 = por %p141, %p142
      %s145 = sadd.s32 %s144, 1
      %p148 = scmp.eq.s32.totalorder %s21, 1
      %p149 = scmp.ne.s32.totalorder %s144, %s146
      %p150 = scmp.eq.s32.totalorder %s21, 0
      %p151 = por %p149, %p150
      %p152 = scmp.ne.s32.totalorder %s144, %s146
      %p153 = scmp.eq.s32.totalorder %s26, 1
      %p154 = por %p152, %p153
      %p155 = scmp.ne.s32.totalorder %s146, %s147
      %p156 = scmp.eq.s32.totalorder %s26, 0
      %p157 = por %p155, %p156
      %p158 = scmp.ne.s32.totalorder %s146, %s147
      %p159 = scmp.eq.s32.totalorder %s27, 1
      %p160 = por %p158, %p159
      %p162 = scmp.ne.s32.totalorder %s147, %s161
      %p163 = scmp.eq.s32.totalorder %s27, 0
      %p164 = por %p162, %p163
      %s166 = sadd.s32 %s165, 1
      %p169 = scmp.eq.s32.totalorder %s21, 1
      %p170 = scmp.ne.s32.totalorder %s165, %s167
      %p171 = scmp.eq.s32.totalorder %s21, 0
      %p172 = por %p170, %p171
      %p173 = scmp.ne.s32.totalorder %s165, %s167
      %p174 = scmp.eq.s32.totalorder %s26, 1
      %p175 = por %p173, %p174
      %p176 = scmp.ne.s32.totalorder %s167, %s168
      %p177 = scmp.eq.s32.totalorder %s26, 0
      %p178 = por %p176, %p177
      %p179 = scmp.ne.s32.totalorder %s167, %s168
      %p180 = scmp.eq.s32.totalorder %s27, 1
      %p181 = por %p179, %p180
      %p183 = scmp.ne.s32.totalorder %s168, %s182
      %p184 = scmp.eq.s32.totalorder %s27, 0
      %p185 = por %p183, %p184
      %s187 = sadd.s32 %s186, 1
      %p190 = scmp.eq.s32.totalorder %s21, 1
      %p191 = scmp.ne.s32.totalorder %s186, %s188
      %p192 = scmp.eq.s32.totalorder %s21, 0
      %p193 = por %p191, %p192
      %p194 = scmp.ne.s32.totalorder %s186, %s188
      %p195 = scmp.eq.s32.totalorder %s26, 1
      %p196 = por %p194, %p195
      %p197 = scmp.ne.s32.totalorder %s188, %s189
      %p198 = scmp.eq.s32.totalorder %s26, 0
      %p199 = por %p197, %p198
      %p200 = scmp.ne.s32.totalorder %s188, %s189
      %p201 = scmp.eq.s32.totalorder %s27, 1
      %p202 = por %p200, %p201
      %p204 = scmp.ne.s32.totalorder %s189, %s203
      %p205 = scmp.eq.s32.totalorder %s27, 0
      %p206 = por %p204, %p205
      %s208 = sadd.s32 %s207, 1
      %p211 = scmp.eq.s32.totalorder %s21, 1
      %p212 = scmp.ne.s32.totalorder %s207, %s209
      %p213 = scmp.eq.s32.totalorder %s21, 0
      %p214 = por %p212, %p213
      %p215 = scmp.ne.s32.totalorder %s207, %s209
      %p216 = scmp.eq.s32.totalorder %s26, 1
      %p217 = por %p215, %p216
      %p218 = scmp.ne.s32.totalorder %s209, %s210
      %p219 = scmp.eq.s32.totalorder %s26, 0
      %p220 = por %p218, %p219
      %p221 = scmp.ne.s32.totalorder %s209, %s210
      %p222 = scmp.eq.s32.totalorder %s27, 1
      %p223 = por %p221, %p222
      %p225 = scmp.ne.s32.totalorder %s210, %s224
      %p226 = scmp.eq.s32.totalorder %s27, 0
      %p227 = por %p225, %p226
      %s229 = sadd.s32 %s228, 1
      %p232 = scmp.eq.s32.totalorder %s21, 1
      %p233 = scmp.ne.s32.totalorder %s228, %s230
      %p234 = scmp.eq.s32.totalorder %s21, 0
      %p235 = por %p233, %p234
      %p236 = scmp.ne.s32.totalorder %s228, %s230
      %p237 = scmp.eq.s32.totalorder %s26, 1
      %p238 = por %p236, %p237
      %p239 = scmp.ne.s32.totalorder %s230, %s231
      %p240 = scmp.eq.s32.totalorder %s26, 0
      %p241 = por %p239, %p240
      %p242 = scmp.ne.s32.totalorder %s230, %s231
      %p243 = scmp.eq.s32.totalorder %s27, 1
      %p244 = por %p242, %p243
      %p246 = scmp.ne.s32.totalorder %s231, %s245
      %p247 = scmp.eq.s32.totalorder %s27, 0
      %p248 = por %p246, %p247
      %s250 = sadd.s32 %s249, 1
      %p253 = scmp.eq.s32.totalorder %s21, 1
      %p254 = scmp.ne.s32.totalorder %s249, %s251
      %p255 = scmp.eq.s32.totalorder %s21, 0
      %p256 = por %p254, %p255
      %p257 = scmp.ne.s32.totalorder %s249, %s251
      %p258 = scmp.eq.s32.totalorder %s26, 1
      %p259 = por %p257, %p258
      %p260 = scmp.ne.s32.totalorder %s251, %s252
      %p261 = scmp.eq.s32.totalorder %s26, 0
      %p262 = por %p260, %p261
      %p263 = scmp.ne.s32.totalorder %s251, %s252
      %p264 = scmp.eq.s32.totalorder %s27, 1
      %p265 = por %p263, %p264
      %p267 = scmp.ne.s32.totalorder %s252, %s266
      %p268 = scmp.eq.s32.totalorder %s27, 0
      %p269 = por %p267, %p268
      %s271 = sadd.s32 %s270, 1
      %p274 = scmp.eq.s32.totalorder %s21, 1
      %p275 = scmp.ne.s32.totalorder %s270, %s272
      %p276 = scmp.eq.s32.totalorder %s21, 0
      %p277 = por %p275, %p276
      %p278 = scmp.ne.s32.totalorder %s270, %s272
      %p279 = scmp.eq.s32.totalorder %s26, 1
      %p280 = por %p278, %p279
      %p281 = scmp.ne.s32.totalorder %s272, %s273
      %p282 = scmp.eq.s32.totalorder %s26, 0
      %p283 = por %p281, %p282
      %p284 = scmp.ne.s32.totalorder %s272, %s273
      %p285 = scmp.eq.s32.totalorder %s27, 1
      %p286 = por %p284, %p285
      %p288 = scmp.ne.s32.totalorder %s273, %s287
      %p289 = scmp.eq.s32.totalorder %s27, 0
      %p290 = por %p288, %p289
      %s291 = ssub.s32 %s21, %s28
      %p292 = scmp.eq.s32.totalorder %s291, 0
      %s294 = sadd.s32 %s293, 1
      %s295 = scalar_select %p292, %s293, %s294
      %p298 = pneg %p292
      %p299 = scmp.eq.s32.totalorder %s21, 1
      %p300 = por %p298, %p299
      %p301 = scmp.ne.s32.totalorder %s293, %s296
      %p302 = scmp.eq.s32.totalorder %s21, 0
      %p303 = por %p301, %p302
      %p304 = scmp.ne.s32.totalorder %s293, %s296
      %p305 = scmp.eq.s32.totalorder %s26, 1
      %p306 = por %p304, %p305
      %p307 = scmp.ne.s32.totalorder %s296, %s297
      %p308 = scmp.eq.s32.totalorder %s26, 0
      %p309 = por %p307, %p308
      %p310 = scmp.ne.s32.totalorder %s296, %s297
      %p311 = scmp.eq.s32.totalorder %s27, 1
      %p312 = por %p310, %p311
      %p314 = scmp.ne.s32.totalorder %s297, %s313
      %p315 = scmp.eq.s32.totalorder %s27, 0
      %p316 = por %p314, %p315
      %p317 = scmp.le.s32.totalorder 1, %s21
      %p318 = scmp.lt.s32.totalorder %s21, 3
      %p319 = pnand %p317, %p318
      %p320 = pneg %p319
      // Predicated region
      $region9: #{tpu_custom_call.1} parent=5 // pred_check
        _
      $region10: #{tpu_custom_call.1} parent=5 // pred_check_branch
        %322 = sbr.rel (%p319) target = $region12
      $region11: #{tpu_custom_call.1} parent=5 // pred_region
        %s323 = ssub.s32 %s21, 1
        // Predicated region
        $region13: #{tpu_custom_call.1} parent=11 // pred_check
          %p324 = pneg %p94
        $region14: #{tpu_custom_call.1} parent=11 // pred_check_branch
          %326 = sbr.rel (%p324) target = $region16
        $region15: #{tpu_custom_call.1} parent=11 // pred_region
          _
        $region16: #{tpu_custom_call.1} parent=11 // pred_fallthru
          _
        // Predicated region
        $region17: #{tpu_custom_call.1} parent=11 // pred_check
          %p327 = pneg %p115
        $region18: #{tpu_custom_call.1} parent=11 // pred_check_branch
          %329 = sbr.rel (%p327) target = $region20
        $region19: #{tpu_custom_call.1} parent=11 // pred_region
          _
        $region20: #{tpu_custom_call.1} parent=11 // pred_fallthru
          _
        // Predicated region
        $region21: #{tpu_custom_call.1} parent=11 // pred_check
          %p330 = pneg %p136
        $region22: #{tpu_custom_call.1} parent=11 // pred_check_branch
          %332 = sbr.rel (%p330) target = $region24
        $region23: #{tpu_custom_call.1} parent=11 // pred_region
          _
        $region24: #{tpu_custom_call.1} parent=11 // pred_fallthru
          _
        // Predicated region
        $region25: #{tpu_custom_call.1} parent=11 // pred_check
          %p333 = pneg %p157
        $region26: #{tpu_custom_call.1} parent=11 // pred_check_branch
          %335 = sbr.rel (%p333) target = $region28
        $region27: #{tpu_custom_call.1} parent=11 // pred_region
          _
        $region28: #{tpu_custom_call.1} parent=11 // pred_fallthru
          _
        // Predicated region
        $region29: #{tpu_custom_call.1} parent=11 // pred_check
          %p336 = pneg %p178
        $region30: #{tpu_custom_call.1} parent=11 // pred_check_branch
          %338 = sbr.rel (%p336) target = $region32
        $region31: #{tpu_custom_call.1} parent=11 // pred_region
          _
        $region32: #{tpu_custom_call.1} parent=11 // pred_fallthru
          _
        // Predicated region
        $region33: #{tpu_custom_call.1} parent=11 // pred_check
          %p339 = pneg %p199
        $region34: #{tpu_custom_call.1} parent=11 // pred_check_branch
          %341 = sbr.rel (%p339) target = $region36
        $region35: #{tpu_custom_call.1} parent=11 // pred_region
          _
        $region36: #{tpu_custom_call.1} parent=11 // pred_fallthru
          _
        // Predicated region
        $region37: #{tpu_custom_call.1} parent=11 // pred_check
          %p342 = pneg %p220
        $region38: #{tpu_custom_call.1} parent=11 // pred_check_branch
          %344 = sbr.rel (%p342) target = $region40
        $region39: #{tpu_custom_call.1} parent=11 // pred_region
          _
        $region40: #{tpu_custom_call.1} parent=11 // pred_fallthru
          _
        // Predicated region
        $region41: #{tpu_custom_call.1} parent=11 // pred_check
          %p345 = pneg %p241
        $region42: #{tpu_custom_call.1} parent=11 // pred_check_branch
          %347 = sbr.rel (%p345) target = $region44
        $region43: #{tpu_custom_call.1} parent=11 // pred_region
          _
        $region44: #{tpu_custom_call.1} parent=11 // pred_fallthru
          _
        // Predicated region
        $region45: #{tpu_custom_call.1} parent=11 // pred_check
          %p348 = pneg %p262
        $region46: #{tpu_custom_call.1} parent=11 // pred_check_branch
          %350 = sbr.rel (%p348) target = $region48
        $region47: #{tpu_custom_call.1} parent=11 // pred_region
          _
        $region48: #{tpu_custom_call.1} parent=11 // pred_fallthru
          _
        // Predicated region
        $region49: #{tpu_custom_call.1} parent=11 // pred_check
          %p351 = pneg %p283
        $region50: #{tpu_custom_call.1} parent=11 // pred_check_branch
          %353 = sbr.rel (%p351) target = $region52
        $region51: #{tpu_custom_call.1} parent=11 // pred_region
          _
        $region52: #{tpu_custom_call.1} parent=11 // pred_fallthru
          _
      $region12: #{tpu_custom_call.1} parent=5 // pred_fallthru
        _
      %p354 = scmp.lt.s32.totalorder %s21, 2
      // Predicated region
      $region53: #{tpu_custom_call.1} parent=5 // pred_check
        %p355 = pneg %p354
      $region54: #{tpu_custom_call.1} parent=5 // pred_check_branch
        %357 = sbr.rel (%p355) target = $region56
      $region55: #{tpu_custom_call.1} parent=5 // pred_region
        // Predicated region
        $region57: #{tpu_custom_call.1} parent=55 // pred_check
          %p358 = pneg %p41
        $region58: #{tpu_custom_call.1} parent=55 // pred_check_branch
          %360 = sbr.rel (%p358) target = $region60
        $region59: #{tpu_custom_call.1} parent=55 // pred_region
          %p361 = scmp.lt.s32.totalorder %s21, 1
          %s362 = scalar_select %p361, %s21, 1
          %s363 = smul.addr %s362, 16
          %s364 = smul.addr %s363, 8
          %s365 = scalar_lea.vmem %s0, %s364
        $region60: #{tpu_custom_call.1} parent=55 // pred_fallthru
          _
        // Predicated region
        $region61: #{tpu_custom_call.1} parent=55 // pred_check
          %p366 = pneg %p67
        $region62: #{tpu_custom_call.1} parent=55 // pred_check_branch
          %368 = sbr.rel (%p366) target = $region64
        $region63: #{tpu_custom_call.1} parent=55 // pred_region
          %p369 = scmp.lt.s32.totalorder %s21, 1
          %s370 = scalar_select %p369, %s21, 1
          %s371 = smul.addr %s370, 32
          %s372 = smul.addr %s371, 8
          %s373 = scalar_lea.vmem %s1, %s372
        $region64: #{tpu_custom_call.1} parent=55 // pred_fallthru
          _
      $region56: #{tpu_custom_call.1} parent=5 // pred_fallthru
        _
      %p374 = scmp.le.s32.totalorder 1, %s21
      %p375 = scmp.lt.s32.totalorder %s21, 3
      %p376 = pnand %p374, %p375
      %p377 = pneg %p376
      // Predicated region
      $region65: #{tpu_custom_call.1} parent=5 // pred_check
        _
      $region66: #{tpu_custom_call.1} parent=5 // pred_check_branch
        %379 = sbr.rel (%p376) target = $region68
      $region67: #{tpu_custom_call.1} parent=5 // pred_region
        %s380 = ssub.s32 %s21, 1
        %p381 = scmp.lt.s32.totalorder %s26, 1
        %s382 = scalar_select %p381, %s26, 1
        %s383 = smul.addr %s382, 16
        %s384 = smul.addr %s383, 8
        %s385 = scalar_lea.vmem %s0, %s384
        %p386 = pneg %p47
        %p387 = pneg %p44
        %p388 = scmp.lt.s32.totalorder %s26, 1
        %s389 = scalar_select %p388, %s26, 1
        %s390 = smul.addr %s389, 32
        %s391 = smul.addr %s390, 8
        %s392 = scalar_lea.vmem %s1, %s391
        %p393 = pneg %p73
        %p394 = pneg %p70
        %p395 = pneg %p94
        %p396 = pneg %p91
        %p397 = pneg %p115
        %p398 = pneg %p112
        %p399 = pneg %p136
        %p400 = pneg %p133
        %p401 = pneg %p157
        %p402 = pneg %p154
        %p403 = pneg %p178
        %p404 = pneg %p175
        %p405 = pneg %p199
        %p406 = pneg %p196
        %p407 = pneg %p220
        %p408 = pneg %p217
        %p409 = pneg %p241
        %p410 = pneg %p238
        %p411 = pneg %p262
        %p412 = pneg %p259
        %p413 = pneg %p283
        %p414 = pneg %p280
        %p415 = pneg %p309
        %p416 = pneg %p306
        %s417 = sand.u32 %s296, 1
        %s418 = scalar_lea.sflag [#allocation3], %s417
        %s419 = sand.u32 %s296, 1
        %s420 = smul.addr %s419, 256
        %s421 = scalar_lea.vmem [#allocation2], %s420
        %p422 = scmp.lt.s32.totalorder %s26, 1
        %s423 = scalar_select %p422, %s26, 1
        %s424 = smul.addr %s423, 16
        %s425 = smul.addr %s424, 8
        %s426 = scalar_lea.vmem %s0, %s425
        %p427 = scmp.lt.s32.totalorder %s26, 1
        %s428 = scalar_select %p427, %s26, 1
        %s429 = smul.addr %s428, 32
        %s430 = smul.addr %s429, 8
        %s431 = scalar_lea.vmem %s1, %s430
        %v433 = vld [vmem:[%s426] sm:$0xff]
        %v434 = vld [vmem:[%s426 + $0x8] sm:$0xff]
        %v435 = vld [vmem:[%s426 + $0x10] sm:$0xff]
        %v436 = vld [vmem:[%s426 + $0x18] sm:$0xff]
        %v437 = vld [vmem:[%s426 + $0x20] sm:$0xff]
        %v438 = vld [vmem:[%s426 + $0x28] sm:$0xff]
        %v439 = vld [vmem:[%s426 + $0x30] sm:$0xff]
        %v440 = vld [vmem:[%s426 + $0x38] sm:$0xff]
        %v441 = vld [vmem:[%s426 + $0x40] sm:$0xff]
        %v442 = vld [vmem:[%s426 + $0x48] sm:$0xff]
        %v443 = vld [vmem:[%s426 + $0x50] sm:$0xff]
        %v444 = vld [vmem:[%s426 + $0x58] sm:$0xff]
        %v445 = vld [vmem:[%s426 + $0x60] sm:$0xff]
        %v446 = vld [vmem:[%s426 + $0x68] sm:$0xff]
        %v447 = vld [vmem:[%s426 + $0x70] sm:$0xff]
        %v448 = vld [vmem:[%s426 + $0x78] sm:$0xff]
        %v449 = vld [vmem:[%s2] sm:$0xff]
        %v450 = vld [vmem:[%s2 + $0x8] sm:$0xff]
        %v451 = vld [vmem:[%s2 + $0x10] sm:$0xff]
        %v452 = vld [vmem:[%s2 + $0x18] sm:$0xff]
        %v453 = vld [vmem:[%s2 + $0x20] sm:$0xff]
        %v454 = vld [vmem:[%s2 + $0x28] sm:$0xff]
        %v455 = vld [vmem:[%s2 + $0x30] sm:$0xff]
        %v456 = vld [vmem:[%s2 + $0x38] sm:$0xff]
        %v457 = vld [vmem:[%s2 + $0x40] sm:$0xff]
        %v458 = vld [vmem:[%s2 + $0x48] sm:$0xff]
        %v459 = vld [vmem:[%s2 + $0x50] sm:$0xff]
        %v460 = vld [vmem:[%s2 + $0x58] sm:$0xff]
        %v461 = vld [vmem:[%s2 + $0x60] sm:$0xff]
        %v462 = vld [vmem:[%s2 + $0x68] sm:$0xff]
        %v463 = vld [vmem:[%s2 + $0x70] sm:$0xff]
        %v464 = vld [vmem:[%s2 + $0x78] sm:$0xff]
        %v465 = vld [vmem:[%s3] sm:$0xff]
        %v466 = vld [vmem:[%s3 + $0x8] sm:$0xff]
        %v467 = vld [vmem:[%s3 + $0x10] sm:$0xff]
        %v468 = vld [vmem:[%s3 + $0x18] sm:$0xff]
        %v469 = vld [vmem:[%s3 + $0x20] sm:$0xff]
        %v470 = vld [vmem:[%s3 + $0x28] sm:$0xff]
        %v471 = vld [vmem:[%s3 + $0x30] sm:$0xff]
        %v472 = vld [vmem:[%s3 + $0x38] sm:$0xff]
        %v473 = vld [vmem:[%s3 + $0x40] sm:$0xff]
        %v474 = vld [vmem:[%s3 + $0x48] sm:$0xff]
        %v475 = vld [vmem:[%s3 + $0x50] sm:$0xff]
        %v476 = vld [vmem:[%s3 + $0x58] sm:$0xff]
        %v477 = vld [vmem:[%s3 + $0x60] sm:$0xff]
        %v478 = vld [vmem:[%s3 + $0x68] sm:$0xff]
        %v479 = vld [vmem:[%s3 + $0x70] sm:$0xff]
        %v480 = vld [vmem:[%s3 + $0x78] sm:$0xff]
        %v481 = vadd.f32 %v433, %v434
        %v482 = vadd.f32 %v481, %v435
        %v483 = vadd.f32 %v482, %v436
        %v484 = vadd.f32 %v483, %v437
        %v485 = vadd.f32 %v484, %v438
        %v486 = vadd.f32 %v485, %v439
        %v487 = vadd.f32 %v486, %v440
        %v488 = vadd.f32 %v487, %v441
        %v489 = vadd.f32 %v488, %v442
        %v490 = vadd.f32 %v489, %v443
        %v491 = vadd.f32 %v490, %v444
        %v492 = vadd.f32 %v491, %v445
        %v493 = vadd.f32 %v492, %v446
        %v494 = vadd.f32 %v493, %v447
        %v495 = vadd.f32 %v494, %v448
        %v496 = vrot.slane %v495, 4
        %v497 = vadd.f32 %v495, %v496
        %v498 = vrot.slane %v497, 2
        %v499 = vadd.f32 %v497, %v498
        %v500 = vrot.slane %v499, 1
        %v501 = vadd.f32 %v499, %v500
        %v502 = vrcp.pop 128.0
        %v503 = vmul.f32 %v501, %v502
        %v504 = vsub.f32 %v433, %v503
        %v505 = vsub.f32 %v434, %v503
        %v506 = vsub.f32 %v435, %v503
        %v507 = vsub.f32 %v436, %v503
        %v508 = vsub.f32 %v437, %v503
        %v509 = vsub.f32 %v438, %v503
        %v510 = vsub.f32 %v439, %v503
        %v511 = vsub.f32 %v440, %v503
        %v512 = vsub.f32 %v441, %v503
        %v513 = vsub.f32 %v442, %v503
        %v514 = vsub.f32 %v443, %v503
        %v515 = vsub.f32 %v444, %v503
        %v516 = vsub.f32 %v445, %v503
        %v517 = vsub.f32 %v446, %v503
        %v518 = vsub.f32 %v447, %v503
        %v519 = vsub.f32 %v448, %v503
        %v520 = vmul.f32 %v504, %v504
        %v521 = vmul.f32 %v505, %v505
        %v522 = vmul.f32 %v506, %v506
        %v523 = vmul.f32 %v507, %v507
        %v524 = vmul.f32 %v508, %v508
        %v525 = vmul.f32 %v509, %v509
        %v526 = vmul.f32 %v510, %v510
        %v527 = vmul.f32 %v511, %v511
        %v528 = vmul.f32 %v512, %v512
        %v529 = vmul.f32 %v513, %v513
        %v530 = vmul.f32 %v514, %v514
        %v531 = vmul.f32 %v515, %v515
        %v532 = vmul.f32 %v516, %v516
        %v533 = vmul.f32 %v517, %v517
        %v534 = vmul.f32 %v518, %v518
        %v535 = vmul.f32 %v519, %v519
        %v536 = vadd.f32 %v520, %v521
        %v537 = vadd.f32 %v536, %v522
        %v538 = vadd.f32 %v537, %v523
        %v539 = vadd.f32 %v538, %v524
        %v540 = vadd.f32 %v539, %v525
        %v541 = vadd.f32 %v540, %v526
        %v542 = vadd.f32 %v541, %v527
        %v543 = vadd.f32 %v542, %v528
        %v544 = vadd.f32 %v543, %v529
        %v545 = vadd.f32 %v544, %v530
        %v546 = vadd.f32 %v545, %v531
        %v547 = vadd.f32 %v546, %v532
        %v548 = vadd.f32 %v547, %v533
        %v549 = vadd.f32 %v548, %v534
        %v550 = vadd.f32 %v549, %v535
        %v551 = vrot.slane %v550, 4
        %v552 = vadd.f32 %v550, %v551
        %v553 = vrot.slane %v552, 2
        %v554 = vadd.f32 %v552, %v553
        %v555 = vrot.slane %v554, 1
        %v556 = vadd.f32 %v554, %v555
        %v557 = vmul.f32 %v556, %v502
        %v558 = vadd.f32 %v557, 1e-05
        %v559 = vrsqrt.pop %v558
        %v560 = vmul.f32 %v504, %v559
        %v561 = vmul.f32 %v505, %v559
        %v562 = vmul.f32 %v506, %v559
        %v563 = vmul.f32 %v507, %v559
        %v564 = vmul.f32 %v508, %v559
        %v565 = vmul.f32 %v509, %v559
        %v566 = vmul.f32 %v510, %v559
        %v567 = vmul.f32 %v511, %v559
        %v568 = vmul.f32 %v512, %v559
        %v569 = vmul.f32 %v513, %v559
        %v570 = vmul.f32 %v514, %v559
        %v571 = vmul.f32 %v515, %v559
        %v572 = vmul.f32 %v516, %v559
        %v573 = vmul.f32 %v517, %v559
        %v574 = vmul.f32 %v518, %v559
        %v575 = vmul.f32 %v519, %v559
        %577 = vset.pattern.permute.xlu0 0
        %578 = vperm.xlu0 %577, %v449
        %v579 = vpop.permute.xlu0 %578
        %582 = vset.pattern.permute.xlu0 0
        %583 = vperm.xlu0 %582, %v450
        %v584 = vpop.permute.xlu0 %583
        %587 = vset.pattern.permute.xlu0 0
        %588 = vperm.xlu0 %587, %v451
        %v589 = vpop.permute.xlu0 %588
        %592 = vset.pattern.permute.xlu0 0
        %593 = vperm.xlu0 %592, %v452
        %v594 = vpop.permute.xlu0 %593
        %597 = vset.pattern.permute.xlu0 0
        %598 = vperm.xlu0 %597, %v453
        %v599 = vpop.permute.xlu0 %598
        %602 = vset.pattern.permute.xlu0 0
        %603 = vperm.xlu0 %602, %v454
        %v604 = vpop.permute.xlu0 %603
        %607 = vset.pattern.permute.xlu0 0
        %608 = vperm.xlu0 %607, %v455
        %v609 = vpop.permute.xlu0 %608
        %612 = vset.pattern.permute.xlu0 0
        %613 = vperm.xlu0 %612, %v456
        %v614 = vpop.permute.xlu0 %613
        %617 = vset.pattern.permute.xlu0 0
        %618 = vperm.xlu0 %617, %v457
        %v619 = vpop.permute.xlu0 %618
        %622 = vset.pattern.permute.xlu0 0
        %623 = vperm.xlu0 %622, %v458
        %v624 = vpop.permute.xlu0 %623
        %627 = vset.pattern.permute.xlu0 0
        %628 = vperm.xlu0 %627, %v459
        %v629 = vpop.permute.xlu0 %628
        %632 = vset.pattern.permute.xlu0 0
        %633 = vperm.xlu0 %632, %v460
        %v634 = vpop.permute.xlu0 %633
        %637 = vset.pattern.permute.xlu0 0
        %638 = vperm.xlu0 %637, %v461
        %v639 = vpop.permute.xlu0 %638
        %642 = vset.pattern.permute.xlu0 0
        %643 = vperm.xlu0 %642, %v462
        %v644 = vpop.permute.xlu0 %643
        %647 = vset.pattern.permute.xlu0 0
        %648 = vperm.xlu0 %647, %v463
        %v649 = vpop.permute.xlu0 %648
        %652 = vset.pattern.permute.xlu0 0
        %653 = vperm.xlu0 %652, %v464
        %v654 = vpop.permute.xlu0 %653
        %v656 = vmul.f32 %v560, %v579
        %v657 = vmul.f32 %v561, %v584
        %v658 = vmul.f32 %v562, %v589
        %v659 = vmul.f32 %v563, %v594
        %v660 = vmul.f32 %v564, %v599
        %v661 = vmul.f32 %v565, %v604
        %v662 = vmul.f32 %v566, %v609
        %v663 = vmul.f32 %v567, %v614
        %v664 = vmul.f32 %v568, %v619
        %v665 = vmul.f32 %v569, %v624
        %v666 = vmul.f32 %v570, %v629
        %v667 = vmul.f32 %v571, %v634
        %v668 = vmul.f32 %v572, %v639
        %v669 = vmul.f32 %v573, %v644
        %v670 = vmul.f32 %v574, %v649
        %v671 = vmul.f32 %v575, %v654
        %673 = vset.pattern.permute.xlu0 0
        %674 = vperm.xlu0 %673, %v465
        %v675 = vpop.permute.xlu0 %674
        %678 = vset.pattern.permute.xlu0 0
        %679 = vperm.xlu0 %678, %v466
        %v680 = vpop.permute.xlu0 %679
        %683 = vset.pattern.permute.xlu0 0
        %684 = vperm.xlu0 %683, %v467
        %v685 = vpop.permute.xlu0 %684
        %688 = vset.pattern.permute.xlu0 0
        %689 = vperm.xlu0 %688, %v468
        %v690 = vpop.permute.xlu0 %689
        %693 = vset.pattern.permute.xlu0 0
        %694 = vperm.xlu0 %693, %v469
        %v695 = vpop.permute.xlu0 %694
        %698 = vset.pattern.permute.xlu0 0
        %699 = vperm.xlu0 %698, %v470
        %v700 = vpop.permute.xlu0 %699
        %703 = vset.pattern.permute.xlu0 0
        %704 = vperm.xlu0 %703, %v471
        %v705 = vpop.permute.xlu0 %704
        %708 = vset.pattern.permute.xlu0 0
        %709 = vperm.xlu0 %708, %v472
        %v710 = vpop.permute.xlu0 %709
        %713 = vset.pattern.permute.xlu0 0
        %714 = vperm.xlu0 %713, %v473
        %v715 = vpop.permute.xlu0 %714
        %718 = vset.pattern.permute.xlu0 0
        %719 = vperm.xlu0 %718, %v474
        %v720 = vpop.permute.xlu0 %719
        %723 = vset.pattern.permute.xlu0 0
        %724 = vperm.xlu0 %723, %v475
        %v725 = vpop.permute.xlu0 %724
        %728 = vset.pattern.permute.xlu0 0
        %729 = vperm.xlu0 %728, %v476
        %v730 = vpop.permute.xlu0 %729
        %733 = vset.pattern.permute.xlu0 0
        %734 = vperm.xlu0 %733, %v477
        %v735 = vpop.permute.xlu0 %734
        %738 = vset.pattern.permute.xlu0 0
        %739 = vperm.xlu0 %738, %v478
        %v740 = vpop.permute.xlu0 %739
        %743 = vset.pattern.permute.xlu0 0
        %744 = vperm.xlu0 %743, %v479
        %v745 = vpop.permute.xlu0 %744
        %748 = vset.pattern.permute.xlu0 0
        %749 = vperm.xlu0 %748, %v480
        %v750 = vpop.permute.xlu0 %749
        %v752 = vadd.f32 %v656, %v675
        %v753 = vadd.f32 %v657, %v680
        %v754 = vadd.f32 %v658, %v685
        %v755 = vadd.f32 %v659, %v690
        %v756 = vadd.f32 %v660, %v695
        %v757 = vadd.f32 %v661, %v700
        %v758 = vadd.f32 %v662, %v705
        %v759 = vadd.f32 %v663, %v710
        %v760 = vadd.f32 %v664, %v715
        %v761 = vadd.f32 %v665, %v720
        %v762 = vadd.f32 %v666, %v725
        %v763 = vadd.f32 %v667, %v730
        %v764 = vadd.f32 %v668, %v735
        %v765 = vadd.f32 %v669, %v740
        %v766 = vadd.f32 %v670, %v745
        %v767 = vadd.f32 %v671, %v750
        %v768 = vsub.f32 0.0, %v752
        %v769 = vsub.f32 0.0, %v753
        %v770 = vsub.f32 0.0, %v754
        %v771 = vsub.f32 0.0, %v755
        %v772 = vsub.f32 0.0, %v756
        %v773 = vsub.f32 0.0, %v757
        %v774 = vsub.f32 0.0, %v758
        %v775 = vsub.f32 0.0, %v759
        %v776 = vsub.f32 0.0, %v760
        %v777 = vsub.f32 0.0, %v761
        %v778 = vsub.f32 0.0, %v762
        %v779 = vsub.f32 0.0, %v763
        %v780 = vsub.f32 0.0, %v764
        %v781 = vsub.f32 0.0, %v765
        %v782 = vsub.f32 0.0, %v766
        %v783 = vsub.f32 0.0, %v767
        %v784 = vmul.f32 %v768, 1.442695
        %v785 = vpow.pop %v784
        %v786 = vmul.f32 %v769, 1.442695
        %v787 = vpow.pop %v786
        %v788 = vmul.f32 %v770, 1.442695
        %v789 = vpow.pop %v788
        %v790 = vmul.f32 %v771, 1.442695
        %v791 = vpow.pop %v790
        %v792 = vmul.f32 %v772, 1.442695
        %v793 = vpow.pop %v792
        %v794 = vmul.f32 %v773, 1.442695
        %v795 = vpow.pop %v794
        %v796 = vmul.f32 %v774, 1.442695
        %v797 = vpow.pop %v796
        %v798 = vmul.f32 %v775, 1.442695
        %v799 = vpow.pop %v798
        %v800 = vmul.f32 %v776, 1.442695
        %v801 = vpow.pop %v800
        %v802 = vmul.f32 %v777, 1.442695
        %v803 = vpow.pop %v802
        %v804 = vmul.f32 %v778, 1.442695
        %v805 = vpow.pop %v804
        %v806 = vmul.f32 %v779, 1.442695
        %v807 = vpow.pop %v806
        %v808 = vmul.f32 %v780, 1.442695
        %v809 = vpow.pop %v808
        %v810 = vmul.f32 %v781, 1.442695
        %v811 = vpow.pop %v810
        %v812 = vmul.f32 %v782, 1.442695
        %v813 = vpow.pop %v812
        %v814 = vmul.f32 %v783, 1.442695
        %v815 = vpow.pop %v814
        %v816 = vadd.f32 %v785, 1.0
        %v817 = vadd.f32 %v787, 1.0
        %v818 = vadd.f32 %v789, 1.0
        %v819 = vadd.f32 %v791, 1.0
        %v820 = vadd.f32 %v793, 1.0
        %v821 = vadd.f32 %v795, 1.0
        %v822 = vadd.f32 %v797, 1.0
        %v823 = vadd.f32 %v799, 1.0
        %v824 = vadd.f32 %v801, 1.0
        %v825 = vadd.f32 %v803, 1.0
        %v826 = vadd.f32 %v805, 1.0
        %v827 = vadd.f32 %v807, 1.0
        %v828 = vadd.f32 %v809, 1.0
        %v829 = vadd.f32 %v811, 1.0
        %v830 = vadd.f32 %v813, 1.0
        %v831 = vadd.f32 %v815, 1.0
        %v832 = vrcp.pop %v816
        %v833 = vmul.f32 1.0, %v832
        %v834 = vrcp.pop %v817
        %v835 = vmul.f32 1.0, %v834
        %v836 = vrcp.pop %v818
        %v837 = vmul.f32 1.0, %v836
        %v838 = vrcp.pop %v819
        %v839 = vmul.f32 1.0, %v838
        %v840 = vrcp.pop %v820
        %v841 = vmul.f32 1.0, %v840
        %v842 = vrcp.pop %v821
        %v843 = vmul.f32 1.0, %v842
        %v844 = vrcp.pop %v822
        %v845 = vmul.f32 1.0, %v844
        %v846 = vrcp.pop %v823
        %v847 = vmul.f32 1.0, %v846
        %v848 = vrcp.pop %v824
        %v849 = vmul.f32 1.0, %v848
        %v850 = vrcp.pop %v825
        %v851 = vmul.f32 1.0, %v850
        %v852 = vrcp.pop %v826
        %v853 = vmul.f32 1.0, %v852
        %v854 = vrcp.pop %v827
        %v855 = vmul.f32 1.0, %v854
        %v856 = vrcp.pop %v828
        %v857 = vmul.f32 1.0, %v856
        %v858 = vrcp.pop %v829
        %v859 = vmul.f32 1.0, %v858
        %v860 = vrcp.pop %v830
        %v861 = vmul.f32 1.0, %v860
        %v862 = vrcp.pop %v831
        %v863 = vmul.f32 1.0, %v862
        %v864 = vmul.f32 %v752, %v833
        %v865 = vmul.f32 %v753, %v835
        %v866 = vmul.f32 %v754, %v837
        %v867 = vmul.f32 %v755, %v839
        %v868 = vmul.f32 %v756, %v841
        %v869 = vmul.f32 %v757, %v843
        %v870 = vmul.f32 %v758, %v845
        %v871 = vmul.f32 %v759, %v847
        %v872 = vmul.f32 %v760, %v849
        %v873 = vmul.f32 %v761, %v851
        %v874 = vmul.f32 %v762, %v853
        %v875 = vmul.f32 %v763, %v855
        %v876 = vmul.f32 %v764, %v857
        %v877 = vmul.f32 %v765, %v859
        %v878 = vmul.f32 %v766, %v861
        %v879 = vmul.f32 %v767, %v863
        %v880 = vld [vmem:[%s5] sm:$0xff]
        %v881 = vld [vmem:[%s5 + $0x8] sm:$0xff]
        %v882 = vld [vmem:[%s5 + $0x10] sm:$0xff]
        %v883 = vld [vmem:[%s5 + $0x18] sm:$0xff]
        %v884 = vld [vmem:[%s5 + $0x20] sm:$0xff]
        %v885 = vld [vmem:[%s5 + $0x28] sm:$0xff]
        %v886 = vld [vmem:[%s5 + $0x30] sm:$0xff]
        %v887 = vld [vmem:[%s5 + $0x38] sm:$0xff]
        %v888 = vld [vmem:[%s5 + $0x40] sm:$0xff]
        %v889 = vld [vmem:[%s5 + $0x48] sm:$0xff]
        %v890 = vld [vmem:[%s5 + $0x50] sm:$0xff]
        %v891 = vld [vmem:[%s5 + $0x58] sm:$0xff]
        %v892 = vld [vmem:[%s5 + $0x60] sm:$0xff]
        %v893 = vld [vmem:[%s5 + $0x68] sm:$0xff]
        %v894 = vld [vmem:[%s5 + $0x70] sm:$0xff]
        %v895 = vld [vmem:[%s5 + $0x78] sm:$0xff]
        %v896 = vld [vmem:[%s5 + $0x80] sm:$0xff]
        %v897 = vld [vmem:[%s5 + $0x88] sm:$0xff]
        %v898 = vld [vmem:[%s5 + $0x90] sm:$0xff]
        %v899 = vld [vmem:[%s5 + $0x98] sm:$0xff]
        %v900 = vld [vmem:[%s5 + $0xa0] sm:$0xff]
        %v901 = vld [vmem:[%s5 + $0xa8] sm:$0xff]
        %v902 = vld [vmem:[%s5 + $0xb0] sm:$0xff]
        %v903 = vld [vmem:[%s5 + $0xb8] sm:$0xff]
        %v904 = vld [vmem:[%s5 + $0xc0] sm:$0xff]
        %v905 = vld [vmem:[%s5 + $0xc8] sm:$0xff]
        %v906 = vld [vmem:[%s5 + $0xd0] sm:$0xff]
        %v907 = vld [vmem:[%s5 + $0xd8] sm:$0xff]
        %v908 = vld [vmem:[%s5 + $0xe0] sm:$0xff]
        %v909 = vld [vmem:[%s5 + $0xe8] sm:$0xff]
        %v910 = vld [vmem:[%s5 + $0xf0] sm:$0xff]
        %v911 = vld [vmem:[%s5 + $0xf8] sm:$0xff]
        %v912 = vpack.c.bf16 %v865, %v864
        %v913 = vpack.c.bf16 %v867, %v866
        %v914 = vpack.c.bf16 %v869, %v868
        %v915 = vpack.c.bf16 %v871, %v870
        %v916 = vpack.c.bf16 %v873, %v872
        %v917 = vpack.c.bf16 %v875, %v874
        %v918 = vpack.c.bf16 %v877, %v876
        %v919 = vpack.c.bf16 %v879, %v878
        %928 = vrot.lane.b32.xlu0 %v912, 1
        %v929 = vpop.permute.xlu0 %928
        %930 = vrot.lane.b32.xlu0 %v913, 1
        %v931 = vpop.permute.xlu0 %930
        %932 = vrot.lane.b32.xlu0 %v914, 1
        %v933 = vpop.permute.xlu0 %932
        %934 = vrot.lane.b32.xlu0 %v915, 1
        %v935 = vpop.permute.xlu0 %934
        %936 = vrot.lane.b32.xlu0 %v916, 1
        %v937 = vpop.permute.xlu0 %936
        %938 = vrot.lane.b32.xlu0 %v917, 1
        %v939 = vpop.permute.xlu0 %938
        %940 = vrot.lane.b32.xlu0 %v918, 1
        %v941 = vpop.permute.xlu0 %940
        %942 = vrot.lane.b32.xlu0 %v919, 1
        %v943 = vpop.permute.xlu0 %942
        %vm944 = vcmask 7168
        %v947 = vsel %vm944, 0, %v929
        %v950 = vsel %vm944, 0, %v931
        %v953 = vsel %vm944, 0, %v933
        %v956 = vsel %vm944, 0, %v935
        %v959 = vsel %vm944, 0, %v937
        %v962 = vsel %vm944, 0, %v939
        %v965 = vsel %vm944, 0, %v941
        %v968 = vsel %vm944, 0, %v943
        %970 = vrot.lane.b32.xlu0 %v912, 127
        %v971 = vpop.permute.xlu0 %970
        %972 = vrot.lane.b32.xlu0 %v913, 127
        %v973 = vpop.permute.xlu0 %972
        %974 = vrot.lane.b32.xlu0 %v914, 127
        %v975 = vpop.permute.xlu0 %974
        %976 = vrot.lane.b32.xlu0 %v915, 127
        %v977 = vpop.permute.xlu0 %976
        %978 = vrot.lane.b32.xlu0 %v916, 127
        %v979 = vpop.permute.xlu0 %978
        %980 = vrot.lane.b32.xlu0 %v917, 127
        %v981 = vpop.permute.xlu0 %980
        %982 = vrot.lane.b32.xlu0 %v918, 127
        %v983 = vpop.permute.xlu0 %982
        %984 = vrot.lane.b32.xlu0 %v919, 127
        %v985 = vpop.permute.xlu0 %984
        %vm986 = vcmask 1039360
        %v988 = vsel %vm986, %v971, 0
        %v991 = vsel %vm986, %v973, 0
        %v994 = vsel %vm986, %v975, 0
        %v997 = vsel %vm986, %v977, 0
        %v1000 = vsel %vm986, %v979, 0
        %v1003 = vsel %vm986, %v981, 0
        %v1006 = vsel %vm986, %v983, 0
        %v1009 = vsel %vm986, %v985, 0
        %v1011 = vld [vmem:[%s4] sm:$0xff]
        %v1012 = vld [vmem:[%s4 + $0x8] sm:$0xf]
        %v1013 = vld [vmem:[%s4 + $0xc] sm:$0xff]
        %v1014 = vld [vmem:[%s4 + $0x14] sm:$0xf]
        %v1015 = vld [vmem:[%s4 + $0x18] sm:$0xff]
        %v1016 = vld [vmem:[%s4 + $0x20] sm:$0xf]
        %v1017 = vld [vmem:[%s4 + $0x24] sm:$0xff]
        %v1018 = vld [vmem:[%s4 + $0x2c] sm:$0xf]
        %v1019 = vld [vmem:[%s4 + $0x30] sm:$0xff]
        %v1020 = vld [vmem:[%s4 + $0x38] sm:$0xf]
        %v1021 = vld [vmem:[%s4 + $0x3c] sm:$0xff]
        %v1022 = vld [vmem:[%s4 + $0x44] sm:$0xf]
        %v1023 = vld [vmem:[%s4 + $0x48] sm:$0xff]
        %v1024 = vld [vmem:[%s4 + $0x50] sm:$0xf]
        %v1025 = vld [vmem:[%s4 + $0x54] sm:$0xff]
        %v1026 = vld [vmem:[%s4 + $0x5c] sm:$0xf]
        %v1027 = vld [vmem:[%s4 + $0x60] sm:$0xff]
        %v1028 = vld [vmem:[%s4 + $0x68] sm:$0xf]
        %v1029 = vld [vmem:[%s4 + $0x6c] sm:$0xff]
        %v1030 = vld [vmem:[%s4 + $0x74] sm:$0xf]
        %v1031 = vld [vmem:[%s4 + $0x78] sm:$0xff]
        %v1032 = vld [vmem:[%s4 + $0x80] sm:$0xf]
        %v1033 = vld [vmem:[%s4 + $0x84] sm:$0xff]
        %v1034 = vld [vmem:[%s4 + $0x8c] sm:$0xf]
        %v1035 = vld [vmem:[%s4 + $0x90] sm:$0xff]
        %v1036 = vld [vmem:[%s4 + $0x98] sm:$0xf]
        %v1037 = vld [vmem:[%s4 + $0x9c] sm:$0xff]
        %v1038 = vld [vmem:[%s4 + $0xa4] sm:$0xf]
        %v1039 = vld [vmem:[%s4 + $0xa8] sm:$0xff]
        %v1040 = vld [vmem:[%s4 + $0xb0] sm:$0xf]
        %v1041 = vld [vmem:[%s4 + $0xb4] sm:$0xff]
        %v1042 = vld [vmem:[%s4 + $0xbc] sm:$0xf]
        %v1043 = vld [vmem:[%s4 + $0xc0] sm:$0xff]
        %v1044 = vld [vmem:[%s4 + $0xc8] sm:$0xf]
        %v1045 = vld [vmem:[%s4 + $0xcc] sm:$0xff]
        %v1046 = vld [vmem:[%s4 + $0xd4] sm:$0xf]
        %v1047 = vld [vmem:[%s4 + $0xd8] sm:$0xff]
        %v1048 = vld [vmem:[%s4 + $0xe0] sm:$0xf]
        %v1049 = vld [vmem:[%s4 + $0xe4] sm:$0xff]
        %v1050 = vld [vmem:[%s4 + $0xec] sm:$0xf]
        %v1051 = vld [vmem:[%s4 + $0xf0] sm:$0xff]
        %v1052 = vld [vmem:[%s4 + $0xf8] sm:$0xf]
        %v1053 = vld [vmem:[%s4 + $0xfc] sm:$0xff]
        %v1054 = vld [vmem:[%s4 + $0x104] sm:$0xf]
        %v1055 = vld [vmem:[%s4 + $0x108] sm:$0xff]
        %v1056 = vld [vmem:[%s4 + $0x110] sm:$0xf]
        %v1057 = vld [vmem:[%s4 + $0x114] sm:$0xff]
        %v1058 = vld [vmem:[%s4 + $0x11c] sm:$0xf]
        %v1059 = vld [vmem:[%s4 + $0x120] sm:$0xff]
        %v1060 = vld [vmem:[%s4 + $0x128] sm:$0xf]
        %v1061 = vld [vmem:[%s4 + $0x12c] sm:$0xff]
        %v1062 = vld [vmem:[%s4 + $0x134] sm:$0xf]
        %v1063 = vld [vmem:[%s4 + $0x138] sm:$0xff]
        %v1064 = vld [vmem:[%s4 + $0x140] sm:$0xf]
        %v1065 = vld [vmem:[%s4 + $0x144] sm:$0xff]
        %v1066 = vld [vmem:[%s4 + $0x14c] sm:$0xf]
        %v1067 = vld [vmem:[%s4 + $0x150] sm:$0xff]
        %v1068 = vld [vmem:[%s4 + $0x158] sm:$0xf]
        %v1069 = vld [vmem:[%s4 + $0x15c] sm:$0xff]
        %v1070 = vld [vmem:[%s4 + $0x164] sm:$0xf]
        %v1071 = vld [vmem:[%s4 + $0x168] sm:$0xff]
        %v1072 = vld [vmem:[%s4 + $0x170] sm:$0xf]
        %v1073 = vld [vmem:[%s4 + $0x174] sm:$0xff]
        %v1074 = vld [vmem:[%s4 + $0x17c] sm:$0xf]
        %1076 = vset.pattern.permute.xlu0 0
        %1077 = vperm.xlu0 %1076, %v880
        %v1078 = vpop.permute.xlu0 %1077
        %1081 = vset.pattern.permute.xlu0 0
        %1082 = vperm.xlu0 %1081, %v881
        %v1083 = vpop.permute.xlu0 %1082
        %1086 = vset.pattern.permute.xlu0 0
        %1087 = vperm.xlu0 %1086, %v882
        %v1088 = vpop.permute.xlu0 %1087
        %1091 = vset.pattern.permute.xlu0 0
        %1092 = vperm.xlu0 %1091, %v883
        %v1093 = vpop.permute.xlu0 %1092
        %1096 = vset.pattern.permute.xlu0 0
        %1097 = vperm.xlu0 %1096, %v884
        %v1098 = vpop.permute.xlu0 %1097
        %1101 = vset.pattern.permute.xlu0 0
        %1102 = vperm.xlu0 %1101, %v885
        %v1103 = vpop.permute.xlu0 %1102
        %1106 = vset.pattern.permute.xlu0 0
        %1107 = vperm.xlu0 %1106, %v886
        %v1108 = vpop.permute.xlu0 %1107
        %1111 = vset.pattern.permute.xlu0 0
        %1112 = vperm.xlu0 %1111, %v887
        %v1113 = vpop.permute.xlu0 %1112
        %1116 = vset.pattern.permute.xlu0 0
        %1117 = vperm.xlu0 %1116, %v888
        %v1118 = vpop.permute.xlu0 %1117
        %1121 = vset.pattern.permute.xlu0 0
        %1122 = vperm.xlu0 %1121, %v889
        %v1123 = vpop.permute.xlu0 %1122
        %1126 = vset.pattern.permute.xlu0 0
        %1127 = vperm.xlu0 %1126, %v890
        %v1128 = vpop.permute.xlu0 %1127
        %1131 = vset.pattern.permute.xlu0 0
        %1132 = vperm.xlu0 %1131, %v891
        %v1133 = vpop.permute.xlu0 %1132
        %1136 = vset.pattern.permute.xlu0 0
        %1137 = vperm.xlu0 %1136, %v892
        %v1138 = vpop.permute.xlu0 %1137
        %1141 = vset.pattern.permute.xlu0 0
        %1142 = vperm.xlu0 %1141, %v893
        %v1143 = vpop.permute.xlu0 %1142
        %1146 = vset.pattern.permute.xlu0 0
        %1147 = vperm.xlu0 %1146, %v894
        %v1148 = vpop.permute.xlu0 %1147
        %1151 = vset.pattern.permute.xlu0 0
        %1152 = vperm.xlu0 %1151, %v895
        %v1153 = vpop.permute.xlu0 %1152
        %1156 = vset.pattern.permute.xlu0 0
        %1157 = vperm.xlu0 %1156, %v896
        %v1158 = vpop.permute.xlu0 %1157
        %1161 = vset.pattern.permute.xlu0 0
        %1162 = vperm.xlu0 %1161, %v897
        %v1163 = vpop.permute.xlu0 %1162
        %1166 = vset.pattern.permute.xlu0 0
        %1167 = vperm.xlu0 %1166, %v898
        %v1168 = vpop.permute.xlu0 %1167
        %1171 = vset.pattern.permute.xlu0 0
        %1172 = vperm.xlu0 %1171, %v899
        %v1173 = vpop.permute.xlu0 %1172
        %1176 = vset.pattern.permute.xlu0 0
        %1177 = vperm.xlu0 %1176, %v900
        %v1178 = vpop.permute.xlu0 %1177
        %1181 = vset.pattern.permute.xlu0 0
        %1182 = vperm.xlu0 %1181, %v901
        %v1183 = vpop.permute.xlu0 %1182
        %1186 = vset.pattern.permute.xlu0 0
        %1187 = vperm.xlu0 %1186, %v902
        %v1188 = vpop.permute.xlu0 %1187
        %1191 = vset.pattern.permute.xlu0 0
        %1192 = vperm.xlu0 %1191, %v903
        %v1193 = vpop.permute.xlu0 %1192
        %1196 = vset.pattern.permute.xlu0 0
        %1197 = vperm.xlu0 %1196, %v904
        %v1198 = vpop.permute.xlu0 %1197
        %1201 = vset.pattern.permute.xlu0 0
        %1202 = vperm.xlu0 %1201, %v905
        %v1203 = vpop.permute.xlu0 %1202
        %1206 = vset.pattern.permute.xlu0 0
        %1207 = vperm.xlu0 %1206, %v906
        %v1208 = vpop.permute.xlu0 %1207
        %1211 = vset.pattern.permute.xlu0 0
        %1212 = vperm.xlu0 %1211, %v907
        %v1213 = vpop.permute.xlu0 %1212
        %1216 = vset.pattern.permute.xlu0 0
        %1217 = vperm.xlu0 %1216, %v908
        %v1218 = vpop.permute.xlu0 %1217
        %1221 = vset.pattern.permute.xlu0 0
        %1222 = vperm.xlu0 %1221, %v909
        %v1223 = vpop.permute.xlu0 %1222
        %1226 = vset.pattern.permute.xlu0 0
        %1227 = vperm.xlu0 %1226, %v910
        %v1228 = vpop.permute.xlu0 %1227
        %1231 = vset.pattern.permute.xlu0 0
        %1232 = vperm.xlu0 %1231, %v911
        %v1233 = vpop.permute.xlu0 %1232
        %v1299 = vunpack.c.l.b16 %v1011
        %v1300 = vunpack.c.h.b16 %v1011
        %v1301 = vunpack.c.l.b16 %v1012
        %v1302 = vunpack.c.l.b16 %v1013
        %v1303 = vunpack.c.h.b16 %v1013
        %v1304 = vunpack.c.l.b16 %v1014
        %v1305 = vunpack.c.l.b16 %v1015
        %v1306 = vunpack.c.h.b16 %v1015
        %v1307 = vunpack.c.l.b16 %v1016
        %v1308 = vunpack.c.l.b16 %v1017
        %v1309 = vunpack.c.h.b16 %v1017
        %v1310 = vunpack.c.l.b16 %v1018
        %v1311 = vunpack.c.l.b16 %v1019
        %v1312 = vunpack.c.h.b16 %v1019
        %v1313 = vunpack.c.l.b16 %v1020
        %v1314 = vunpack.c.l.b16 %v1021
        %v1315 = vunpack.c.h.b16 %v1021
        %v1316 = vunpack.c.l.b16 %v1022
        %v1317 = vunpack.c.l.b16 %v1023
        %v1318 = vunpack.c.h.b16 %v1023
        %v1319 = vunpack.c.l.b16 %v1024
        %v1320 = vunpack.c.l.b16 %v1025
        %v1321 = vunpack.c.h.b16 %v1025
        %v1322 = vunpack.c.l.b16 %v1026
        %v1323 = vunpack.c.l.b16 %v1027
        %v1324 = vunpack.c.h.b16 %v1027
        %v1325 = vunpack.c.l.b16 %v1028
        %v1326 = vunpack.c.l.b16 %v1029
        %v1327 = vunpack.c.h.b16 %v1029
        %v1328 = vunpack.c.l.b16 %v1030
        %v1329 = vunpack.c.l.b16 %v1031
        %v1330 = vunpack.c.h.b16 %v1031
        %v1331 = vunpack.c.l.b16 %v1032
        %v1332 = vunpack.c.l.b16 %v1033
        %v1333 = vunpack.c.h.b16 %v1033
        %v1334 = vunpack.c.l.b16 %v1034
        %v1335 = vunpack.c.l.b16 %v1035
        %v1336 = vunpack.c.h.b16 %v1035
        %v1337 = vunpack.c.l.b16 %v1036
        %v1338 = vunpack.c.l.b16 %v1037
        %v1339 = vunpack.c.h.b16 %v1037
        %v1340 = vunpack.c.l.b16 %v1038
        %v1341 = vunpack.c.l.b16 %v1039
        %v1342 = vunpack.c.h.b16 %v1039
        %v1343 = vunpack.c.l.b16 %v1040
        %v1344 = vunpack.c.l.b16 %v1041
        %v1345 = vunpack.c.h.b16 %v1041
        %v1346 = vunpack.c.l.b16 %v1042
        %v1347 = vunpack.c.l.b16 %v1043
        %v1348 = vunpack.c.h.b16 %v1043
        %v1349 = vunpack.c.l.b16 %v1044
        %v1350 = vunpack.c.l.b16 %v1045
        %v1351 = vunpack.c.h.b16 %v1045
        %v1352 = vunpack.c.l.b16 %v1046
        %v1353 = vunpack.c.l.b16 %v1047
        %v1354 = vunpack.c.h.b16 %v1047
        %v1355 = vunpack.c.l.b16 %v1048
        %v1356 = vunpack.c.l.b16 %v1049
        %v1357 = vunpack.c.h.b16 %v1049
        %v1358 = vunpack.c.l.b16 %v1050
        %v1359 = vunpack.c.l.b16 %v1051
        %v1360 = vunpack.c.h.b16 %v1051
        %v1361 = vunpack.c.l.b16 %v1052
        %v1362 = vunpack.c.l.b16 %v1053
        %v1363 = vunpack.c.h.b16 %v1053
        %v1364 = vunpack.c.l.b16 %v1054
        %v1365 = vunpack.c.l.b16 %v1055
        %v1366 = vunpack.c.h.b16 %v1055
        %v1367 = vunpack.c.l.b16 %v1056
        %v1368 = vunpack.c.l.b16 %v1057
        %v1369 = vunpack.c.h.b16 %v1057
        %v1370 = vunpack.c.l.b16 %v1058
        %v1371 = vunpack.c.l.b16 %v1059
        %v1372 = vunpack.c.h.b16 %v1059
        %v1373 = vunpack.c.l.b16 %v1060
        %v1374 = vunpack.c.l.b16 %v1061
        %v1375 = vunpack.c.h.b16 %v1061
        %v1376 = vunpack.c.l.b16 %v1062
        %v1377 = vunpack.c.l.b16 %v1063
        %v1378 = vunpack.c.h.b16 %v1063
        %v1379 = vunpack.c.l.b16 %v1064
        %v1380 = vunpack.c.l.b16 %v1065
        %v1381 = vunpack.c.h.b16 %v1065
        %v1382 = vunpack.c.l.b16 %v1066
        %v1383 = vunpack.c.l.b16 %v1067
        %v1384 = vunpack.c.h.b16 %v1067
        %v1385 = vunpack.c.l.b16 %v1068
        %v1386 = vunpack.c.l.b16 %v1069
        %v1387 = vunpack.c.h.b16 %v1069
        %v1388 = vunpack.c.l.b16 %v1070
        %v1389 = vunpack.c.l.b16 %v1071
        %v1390 = vunpack.c.h.b16 %v1071
        %v1391 = vunpack.c.l.b16 %v1072
        %v1392 = vunpack.c.l.b16 %v1073
        %v1393 = vunpack.c.h.b16 %v1073
        %v1394 = vunpack.c.l.b16 %v1074
        %v1395 = vpack.c.b16 %v1302, %v1299
        %v1396 = vpack.c.b16 %v1303, %v1300
        %v1397 = vpack.c.b16 %v1304, %v1301
        %v1398 = vpack.c.b16 %v1308, %v1305
        %v1399 = vpack.c.b16 %v1309, %v1306
        %v1400 = vpack.c.b16 %v1310, %v1307
        %v1401 = vpack.c.b16 %v1314, %v1311
        %v1402 = vpack.c.b16 %v1315, %v1312
        %v1403 = vpack.c.b16 %v1316, %v1313
        %v1404 = vpack.c.b16 %v1320, %v1317
        %v1405 = vpack.c.b16 %v1321, %v1318
        %v1406 = vpack.c.b16 %v1322, %v1319
        %v1407 = vpack.c.b16 %v1326, %v1323
        %v1408 = vpack.c.b16 %v1327, %v1324
        %v1409 = vpack.c.b16 %v1328, %v1325
        %v1410 = vpack.c.b16 %v1332, %v1329
        %v1411 = vpack.c.b16 %v1333, %v1330
        %v1412 = vpack.c.b16 %v1334, %v1331
        %v1413 = vpack.c.b16 %v1338, %v1335
        %v1414 = vpack.c.b16 %v1339, %v1336
        %v1415 = vpack.c.b16 %v1340, %v1337
        %v1416 = vpack.c.b16 %v1344, %v1341
        %v1417 = vpack.c.b16 %v1345, %v1342
        %v1418 = vpack.c.b16 %v1346, %v1343
        %v1419 = vpack.c.b16 %v1350, %v1347
        %v1420 = vpack.c.b16 %v1351, %v1348
        %v1421 = vpack.c.b16 %v1352, %v1349
        %v1422 = vpack.c.b16 %v1356, %v1353
        %v1423 = vpack.c.b16 %v1357, %v1354
        %v1424 = vpack.c.b16 %v1358, %v1355
        %v1425 = vpack.c.b16 %v1362, %v1359
        %v1426 = vpack.c.b16 %v1363, %v1360
        %v1427 = vpack.c.b16 %v1364, %v1361
        %v1428 = vpack.c.b16 %v1368, %v1365
        %v1429 = vpack.c.b16 %v1369, %v1366
        %v1430 = vpack.c.b16 %v1370, %v1367
        %v1431 = vpack.c.b16 %v1374, %v1371
        %v1432 = vpack.c.b16 %v1375, %v1372
        %v1433 = vpack.c.b16 %v1376, %v1373
        %v1434 = vpack.c.b16 %v1380, %v1377
        %v1435 = vpack.c.b16 %v1381, %v1378
        %v1436 = vpack.c.b16 %v1382, %v1379
        %v1437 = vpack.c.b16 %v1386, %v1383
        %v1438 = vpack.c.b16 %v1387, %v1384
        %v1439 = vpack.c.b16 %v1388, %v1385
        %v1440 = vpack.c.b16 %v1392, %v1389
        %v1441 = vpack.c.b16 %v1393, %v1390
        %v1442 = vpack.c.b16 %v1394, %v1391
        %1491 = vmatprep.subr.bf16.mxu0 0
        %1492 = vmatpush1.bf16.msra.mxu0 %v968
        %1493 = vmatprep.subr.bf16.mxu0 0
        %1494 = vmatpush1.bf16.msra.mxu0 %v965
        %1495 = vmatprep.subr.bf16.mxu0 0
        %1496 = vmatpush1.bf16.msra.mxu0 %v962
        %1497 = vmatprep.subr.bf16.mxu0 0
        %1498 = vmatpush1.bf16.msra.mxu0 %v959
        %1499 = vmatprep.subr.bf16.mxu0 0
        %1500 = vmatpush1.bf16.msra.mxu0 %v956
        %1501 = vmatprep.subr.bf16.mxu0 0
        %1502 = vmatpush1.bf16.msra.mxu0 %v953
        %1503 = vmatprep.subr.bf16.mxu0 0
        %1504 = vmatpush1.bf16.msra.mxu0 %v950
        %1505 = vmatprep.subr.bf16.mxu0 0
        %1506 = vmatpush1.bf16.msra.mxu0 %v947
        %1507 = vmatprep.subr.bf16.mxu0 0
        %1508 = vmatpush2.bf16.msra.mxu0 %v919
        %1509 = vmatprep.subr.bf16.mxu0 0
        %1510 = vmatpush2.bf16.msra.mxu0 %v918
        %1511 = vmatprep.subr.bf16.mxu0 0
        %1512 = vmatpush2.bf16.msra.mxu0 %v917
        %1513 = vmatprep.subr.bf16.mxu0 0
        %1514 = vmatpush2.bf16.msra.mxu0 %v916
        %1515 = vmatprep.subr.bf16.mxu0 0
        %1516 = vmatpush2.bf16.msra.mxu0 %v915
        %1517 = vmatprep.subr.bf16.mxu0 0
        %1518 = vmatpush2.bf16.msra.mxu0 %v914
        %1519 = vmatprep.subr.bf16.mxu0 0
        %1520 = vmatpush2.bf16.msra.mxu0 %v913
        %1521 = vmatprep.subr.bf16.mxu0 0
        %1522 = vmatpush2.bf16.msra.mxu0 %v912
        %1523 = vmatprep.mubr.bf16.mxu0 %v1396
        %1524 = vmatmul.mubr.bf16.gmra.mxu0 %v1395
        %v1525 = vpop.f32.mrf.mxu0
        %v1526 = vadd.f32 %v1078, %v1525
        %v1527 = vpop.f32.mrf.mxu0
        %v1528 = vpop.f32.mrf.mxu0
        %v1529 = vadd.f32 %v1083, %v1528
        %v1530 = vpop.f32.mrf.mxu0
        %1531 = vmatprep.mubr.bf16.mxu0 %v1399
        %1532 = vmatmul.mubr.bf16.gmra.mxu0 %v1398
        %v1533 = vpop.f32.mrf.mxu0
        %v1534 = vadd.f32 %v1088, %v1533
        %v1535 = vpop.f32.mrf.mxu0
        %v1536 = vpop.f32.mrf.mxu0
        %v1537 = vadd.f32 %v1093, %v1536
        %v1538 = vpop.f32.mrf.mxu0
        %1539 = vmatprep.mubr.bf16.mxu0 %v1402
        %1540 = vmatmul.mubr.bf16.gmra.mxu0 %v1401
        %v1541 = vpop.f32.mrf.mxu0
        %v1542 = vadd.f32 %v1098, %v1541
        %v1543 = vpop.f32.mrf.mxu0
        %v1544 = vpop.f32.mrf.mxu0
        %v1545 = vadd.f32 %v1103, %v1544
        %v1546 = vpop.f32.mrf.mxu0
        %1547 = vmatprep.mubr.bf16.mxu0 %v1405
        %1548 = vmatmul.mubr.bf16.gmra.mxu0 %v1404
        %v1549 = vpop.f32.mrf.mxu0
        %v1550 = vadd.f32 %v1108, %v1549
        %v1551 = vpop.f32.mrf.mxu0
        %v1552 = vpop.f32.mrf.mxu0
        %v1553 = vadd.f32 %v1113, %v1552
        %v1554 = vpop.f32.mrf.mxu0
        %1555 = vmatprep.mubr.bf16.mxu0 %v1408
        %1556 = vmatmul.mubr.bf16.gmra.mxu0 %v1407
        %v1557 = vpop.f32.mrf.mxu0
        %v1558 = vadd.f32 %v1118, %v1557
        %v1559 = vpop.f32.mrf.mxu0
        %v1560 = vpop.f32.mrf.mxu0
        %v1561 = vadd.f32 %v1123, %v1560
        %v1562 = vpop.f32.mrf.mxu0
        %1563 = vmatprep.mubr.bf16.mxu0 %v1411
        %1564 = vmatmul.mubr.bf16.gmra.mxu0 %v1410
        %v1565 = vpop.f32.mrf.mxu0
        %v1566 = vadd.f32 %v1128, %v1565
        %v1567 = vpop.f32.mrf.mxu0
        %v1568 = vpop.f32.mrf.mxu0
        %v1569 = vadd.f32 %v1133, %v1568
        %v1570 = vpop.f32.mrf.mxu0
        %1571 = vmatprep.mubr.bf16.mxu0 %v1414
        %1572 = vmatmul.mubr.bf16.gmra.mxu0 %v1413
        %v1573 = vpop.f32.mrf.mxu0
        %v1574 = vadd.f32 %v1138, %v1573
        %v1575 = vpop.f32.mrf.mxu0
        %v1576 = vpop.f32.mrf.mxu0
        %v1577 = vadd.f32 %v1143, %v1576
        %v1578 = vpop.f32.mrf.mxu0
        %1579 = vmatprep.mubr.bf16.mxu0 %v1417
        %1580 = vmatmul.mubr.bf16.gmra.mxu0 %v1416
        %v1581 = vpop.f32.mrf.mxu0
        %v1582 = vadd.f32 %v1148, %v1581
        %v1583 = vpop.f32.mrf.mxu0
        %v1584 = vpop.f32.mrf.mxu0
        %v1585 = vadd.f32 %v1153, %v1584
        %v1586 = vpop.f32.mrf.mxu0
        %1587 = vmatprep.mubr.bf16.mxu0 %v1420
        %1588 = vmatmul.mubr.bf16.gmra.mxu0 %v1419
        %v1589 = vpop.f32.mrf.mxu0
        %v1590 = vadd.f32 %v1158, %v1589
        %v1591 = vpop.f32.mrf.mxu0
        %v1592 = vpop.f32.mrf.mxu0
        %v1593 = vadd.f32 %v1163, %v1592
        %v1594 = vpop.f32.mrf.mxu0
        %1595 = vmatprep.mubr.bf16.mxu0 %v1423
        %1596 = vmatmul.mubr.bf16.gmra.mxu0 %v1422
        %v1597 = vpop.f32.mrf.mxu0
        %v1598 = vadd.f32 %v1168, %v1597
        %v1599 = vpop.f32.mrf.mxu0
        %v1600 = vpop.f32.mrf.mxu0
        %v1601 = vadd.f32 %v1173, %v1600
        %v1602 = vpop.f32.mrf.mxu0
        %1603 = vmatprep.mubr.bf16.mxu0 %v1426
        %1604 = vmatmul.mubr.bf16.gmra.mxu0 %v1425
        %v1605 = vpop.f32.mrf.mxu0
        %v1606 = vadd.f32 %v1178, %v1605
        %v1607 = vpop.f32.mrf.mxu0
        %v1608 = vpop.f32.mrf.mxu0
        %v1609 = vadd.f32 %v1183, %v1608
        %v1610 = vpop.f32.mrf.mxu0
        %1611 = vmatprep.mubr.bf16.mxu0 %v1429
        %1612 = vmatmul.mubr.bf16.gmra.mxu0 %v1428
        %v1613 = vpop.f32.mrf.mxu0
        %v1614 = vadd.f32 %v1188, %v1613
        %v1615 = vpop.f32.mrf.mxu0
        %v1616 = vpop.f32.mrf.mxu0
        %v1617 = vadd.f32 %v1193, %v1616
        %v1618 = vpop.f32.mrf.mxu0
        %1619 = vmatprep.mubr.bf16.mxu0 %v1432
        %1620 = vmatmul.mubr.bf16.gmra.mxu0 %v1431
        %v1621 = vpop.f32.mrf.mxu0
        %v1622 = vadd.f32 %v1198, %v1621
        %v1623 = vpop.f32.mrf.mxu0
        %v1624 = vpop.f32.mrf.mxu0
        %v1625 = vadd.f32 %v1203, %v1624
        %v1626 = vpop.f32.mrf.mxu0
        %1627 = vmatprep.mubr.bf16.mxu0 %v1435
        %1628 = vmatmul.mubr.bf16.gmra.mxu0 %v1434
        %v1629 = vpop.f32.mrf.mxu0
        %v1630 = vadd.f32 %v1208, %v1629
        %v1631 = vpop.f32.mrf.mxu0
        %v1632 = vpop.f32.mrf.mxu0
        %v1633 = vadd.f32 %v1213, %v1632
        %v1634 = vpop.f32.mrf.mxu0
        %1635 = vmatprep.mubr.bf16.mxu0 %v1438
        %1636 = vmatmul.mubr.bf16.gmra.mxu0 %v1437
        %v1637 = vpop.f32.mrf.mxu0
        %v1638 = vadd.f32 %v1218, %v1637
        %v1639 = vpop.f32.mrf.mxu0
        %v1640 = vpop.f32.mrf.mxu0
        %v1641 = vadd.f32 %v1223, %v1640
        %v1642 = vpop.f32.mrf.mxu0
        %1643 = vmatprep.mubr.bf16.mxu0 %v1441
        %1644 = vmatmul.mubr.bf16.gmra.mxu0 %v1440
        %v1645 = vpop.f32.mrf.mxu0
        %v1646 = vadd.f32 %v1228, %v1645
        %v1647 = vpop.f32.mrf.mxu0
        %v1648 = vpop.f32.mrf.mxu0
        %v1649 = vadd.f32 %v1233, %v1648
        %v1650 = vpop.f32.mrf.mxu0
        %1651 = vdwg.mxu0
        %1652 = vmatprep.subr.bf16.mxu0 0
        %1653 = vmatpush1.bf16.msra.mxu0 %v1009
        %1654 = vmatprep.subr.bf16.mxu0 0
        %1655 = vmatpush1.bf16.msra.mxu0 %v1006
        %1656 = vmatprep.subr.bf16.mxu0 0
        %1657 = vmatpush1.bf16.msra.mxu0 %v1003
        %1658 = vmatprep.subr.bf16.mxu0 0
        %1659 = vmatpush1.bf16.msra.mxu0 %v1000
        %1660 = vmatprep.subr.bf16.mxu0 0
        %1661 = vmatpush1.bf16.msra.mxu0 %v997
        %1662 = vmatprep.subr.bf16.mxu0 0
        %1663 = vmatpush1.bf16.msra.mxu0 %v994
        %1664 = vmatprep.subr.bf16.mxu0 0
        %1665 = vmatpush1.bf16.msra.mxu0 %v991
        %1666 = vmatprep.subr.bf16.mxu0 0
        %1667 = vmatpush1.bf16.msra.mxu0 %v988
        %1668 = vmatprep.subr.bf16.mxu0 0
        %1669 = vmatpush2.bf16.msra.mxu0 0
        %1670 = vmatprep.subr.bf16.mxu0 0
        %1671 = vmatpush2.bf16.msra.mxu0 0
        %1672 = vmatprep.subr.bf16.mxu0 0
        %1673 = vmatpush2.bf16.msra.mxu0 0
        %1674 = vmatprep.subr.bf16.mxu0 0
        %1675 = vmatpush2.bf16.msra.mxu0 0
        %1676 = vmatprep.subr.bf16.mxu0 0
        %1677 = vmatpush2.bf16.msra.mxu0 0
        %1678 = vmatprep.subr.bf16.mxu0 0
        %1679 = vmatpush2.bf16.msra.mxu0 0
        %1680 = vmatprep.subr.bf16.mxu0 0
        %1681 = vmatpush2.bf16.msra.mxu0 0
        %1682 = vmatprep.subr.bf16.mxu0 0
        %1683 = vmatpush2.bf16.msra.mxu0 0
        %1684 = vmatprep.mubr.bf16.mxu0 0
        %1685 = vmatmul.mubr.bf16.gmra.mxu0 %v1397
        %v1686 = vpop.f32.mrf.mxu0
        %v1687 = vadd.f32 %v1526, %v1686
        %v1688 = vpop.f32.mrf.mxu0
        %v1689 = vpop.f32.mrf.mxu0
        %v1690 = vadd.f32 %v1529, %v1689
        %v1691 = vpop.f32.mrf.mxu0
        %1692 = vmatprep.mubr.bf16.mxu0 0
        %1693 = vmatmul.mubr.bf16.gmra.mxu0 %v1400
        %v1694 = vpop.f32.mrf.mxu0
        %v1695 = vadd.f32 %v1534, %v1694
        %v1696 = vpop.f32.mrf.mxu0
        %v1697 = vpop.f32.mrf.mxu0
        %v1698 = vadd.f32 %v1537, %v1697
        %v1699 = vpop.f32.mrf.mxu0
        %1700 = vmatprep.mubr.bf16.mxu0 0
        %1701 = vmatmul.mubr.bf16.gmra.mxu0 %v1403
        %v1702 = vpop.f32.mrf.mxu0
        %v1703 = vadd.f32 %v1542, %v1702
        %v1704 = vpop.f32.mrf.mxu0
        %v1705 = vpop.f32.mrf.mxu0
        %v1706 = vadd.f32 %v1545, %v1705
        %v1707 = vpop.f32.mrf.mxu0
        %1708 = vmatprep.mubr.bf16.mxu0 0
        %1709 = vmatmul.mubr.bf16.gmra.mxu0 %v1406
        %v1710 = vpop.f32.mrf.mxu0
        %v1711 = vadd.f32 %v1550, %v1710
        %v1712 = vpop.f32.mrf.mxu0
        %v1713 = vpop.f32.mrf.mxu0
        %v1714 = vadd.f32 %v1553, %v1713
        %v1715 = vpop.f32.mrf.mxu0
        %1716 = vmatprep.mubr.bf16.mxu0 0
        %1717 = vmatmul.mubr.bf16.gmra.mxu0 %v1409
        %v1718 = vpop.f32.mrf.mxu0
        %v1719 = vadd.f32 %v1558, %v1718
        %v1720 = vpop.f32.mrf.mxu0
        %v1721 = vpop.f32.mrf.mxu0
        %v1722 = vadd.f32 %v1561, %v1721
        %v1723 = vpop.f32.mrf.mxu0
        %1724 = vmatprep.mubr.bf16.mxu0 0
        %1725 = vmatmul.mubr.bf16.gmra.mxu0 %v1412
        %v1726 = vpop.f32.mrf.mxu0
        %v1727 = vadd.f32 %v1566, %v1726
        %v1728 = vpop.f32.mrf.mxu0
        %v1729 = vpop.f32.mrf.mxu0
        %v1730 = vadd.f32 %v1569, %v1729
        %v1731 = vpop.f32.mrf.mxu0
        %1732 = vmatprep.mubr.bf16.mxu0 0
        %1733 = vmatmul.mubr.bf16.gmra.mxu0 %v1415
        %v1734 = vpop.f32.mrf.mxu0
        %v1735 = vadd.f32 %v1574, %v1734
        %v1736 = vpop.f32.mrf.mxu0
        %v1737 = vpop.f32.mrf.mxu0
        %v1738 = vadd.f32 %v1577, %v1737
        %v1739 = vpop.f32.mrf.mxu0
        %1740 = vmatprep.mubr.bf16.mxu0 0
        %1741 = vmatmul.mubr.bf16.gmra.mxu0 %v1418
        %v1742 = vpop.f32.mrf.mxu0
        %v1743 = vadd.f32 %v1582, %v1742
        %v1744 = vpop.f32.mrf.mxu0
        %v1745 = vpop.f32.mrf.mxu0
        %v1746 = vadd.f32 %v1585, %v1745
        %v1747 = vpop.f32.mrf.mxu0
        %1748 = vmatprep.mubr.bf16.mxu0 0
        %1749 = vmatmul.mubr.bf16.gmra.mxu0 %v1421
        %v1750 = vpop.f32.mrf.mxu0
        %v1751 = vadd.f32 %v1590, %v1750
        %v1752 = vpop.f32.mrf.mxu0
        %v1753 = vpop.f32.mrf.mxu0
        %v1754 = vadd.f32 %v1593, %v1753
        %v1755 = vpop.f32.mrf.mxu0
        %1756 = vmatprep.mubr.bf16.mxu0 0
        %1757 = vmatmul.mubr.bf16.gmra.mxu0 %v1424
        %v1758 = vpop.f32.mrf.mxu0
        %v1759 = vadd.f32 %v1598, %v1758
        %v1760 = vpop.f32.mrf.mxu0
        %v1761 = vpop.f32.mrf.mxu0
        %v1762 = vadd.f32 %v1601, %v1761
        %v1763 = vpop.f32.mrf.mxu0
        %1764 = vmatprep.mubr.bf16.mxu0 0
        %1765 = vmatmul.mubr.bf16.gmra.mxu0 %v1427
        %v1766 = vpop.f32.mrf.mxu0
        %v1767 = vadd.f32 %v1606, %v1766
        %v1768 = vpop.f32.mrf.mxu0
        %v1769 = vpop.f32.mrf.mxu0
        %v1770 = vadd.f32 %v1609, %v1769
        %v1771 = vpop.f32.mrf.mxu0
        %1772 = vmatprep.mubr.bf16.mxu0 0
        %1773 = vmatmul.mubr.bf16.gmra.mxu0 %v1430
        %v1774 = vpop.f32.mrf.mxu0
        %v1775 = vadd.f32 %v1614, %v1774
        %v1776 = vpop.f32.mrf.mxu0
        %v1777 = vpop.f32.mrf.mxu0
        %v1778 = vadd.f32 %v1617, %v1777
        %v1779 = vpop.f32.mrf.mxu0
        %1780 = vmatprep.mubr.bf16.mxu0 0
        %1781 = vmatmul.mubr.bf16.gmra.mxu0 %v1433
        %v1782 = vpop.f32.mrf.mxu0
        %v1783 = vadd.f32 %v1622, %v1782
        %v1784 = vpop.f32.mrf.mxu0
        %v1785 = vpop.f32.mrf.mxu0
        %v1786 = vadd.f32 %v1625, %v1785
        %v1787 = vpop.f32.mrf.mxu0
        %1788 = vmatprep.mubr.bf16.mxu0 0
        %1789 = vmatmul.mubr.bf16.gmra.mxu0 %v1436
        %v1790 = vpop.f32.mrf.mxu0
        %v1791 = vadd.f32 %v1630, %v1790
        %v1792 = vpop.f32.mrf.mxu0
        %v1793 = vpop.f32.mrf.mxu0
        %v1794 = vadd.f32 %v1633, %v1793
        %v1795 = vpop.f32.mrf.mxu0
        %1796 = vmatprep.mubr.bf16.mxu0 0
        %1797 = vmatmul.mubr.bf16.gmra.mxu0 %v1439
        %v1798 = vpop.f32.mrf.mxu0
        %v1799 = vadd.f32 %v1638, %v1798
        %v1800 = vpop.f32.mrf.mxu0
        %v1801 = vpop.f32.mrf.mxu0
        %v1802 = vadd.f32 %v1641, %v1801
        %v1803 = vpop.f32.mrf.mxu0
        %1804 = vmatprep.mubr.bf16.mxu0 0
        %1805 = vmatmul.mubr.bf16.gmra.mxu0 %v1442
        %v1806 = vpop.f32.mrf.mxu0
        %v1807 = vadd.f32 %v1646, %v1806
        %v1808 = vpop.f32.mrf.mxu0
        %v1809 = vpop.f32.mrf.mxu0
        %v1810 = vadd.f32 %v1649, %v1809
        %v1811 = vpop.f32.mrf.mxu0
        %1812 = vdwg.mxu0
        %v1813 = vld [vmem:[%s431] sm:$0xff]
        %v1814 = vld [vmem:[%s431 + $0x8] sm:$0xff]
        %v1815 = vld [vmem:[%s431 + $0x10] sm:$0xff]
        %v1816 = vld [vmem:[%s431 + $0x18] sm:$0xff]
        %v1817 = vld [vmem:[%s431 + $0x20] sm:$0xff]
        %v1818 = vld [vmem:[%s431 + $0x28] sm:$0xff]
        %v1819 = vld [vmem:[%s431 + $0x30] sm:$0xff]
        %v1820 = vld [vmem:[%s431 + $0x38] sm:$0xff]
        %v1821 = vld [vmem:[%s431 + $0x40] sm:$0xff]
        %v1822 = vld [vmem:[%s431 + $0x48] sm:$0xff]
        %v1823 = vld [vmem:[%s431 + $0x50] sm:$0xff]
        %v1824 = vld [vmem:[%s431 + $0x58] sm:$0xff]
        %v1825 = vld [vmem:[%s431 + $0x60] sm:$0xff]
        %v1826 = vld [vmem:[%s431 + $0x68] sm:$0xff]
        %v1827 = vld [vmem:[%s431 + $0x70] sm:$0xff]
        %v1828 = vld [vmem:[%s431 + $0x78] sm:$0xff]
        %v1829 = vld [vmem:[%s431 + $0x80] sm:$0xff]
        %v1830 = vld [vmem:[%s431 + $0x88] sm:$0xff]
        %v1831 = vld [vmem:[%s431 + $0x90] sm:$0xff]
        %v1832 = vld [vmem:[%s431 + $0x98] sm:$0xff]
        %v1833 = vld [vmem:[%s431 + $0xa0] sm:$0xff]
        %v1834 = vld [vmem:[%s431 + $0xa8] sm:$0xff]
        %v1835 = vld [vmem:[%s431 + $0xb0] sm:$0xff]
        %v1836 = vld [vmem:[%s431 + $0xb8] sm:$0xff]
        %v1837 = vld [vmem:[%s431 + $0xc0] sm:$0xff]
        %v1838 = vld [vmem:[%s431 + $0xc8] sm:$0xff]
        %v1839 = vld [vmem:[%s431 + $0xd0] sm:$0xff]
        %v1840 = vld [vmem:[%s431 + $0xd8] sm:$0xff]
        %v1841 = vld [vmem:[%s431 + $0xe0] sm:$0xff]
        %v1842 = vld [vmem:[%s431 + $0xe8] sm:$0xff]
        %v1843 = vld [vmem:[%s431 + $0xf0] sm:$0xff]
        %v1844 = vld [vmem:[%s431 + $0xf8] sm:$0xff]
        %1846 = vset.pattern.permute.xlu0 0
        %1847 = vperm.xlu0 %1846, %v1813
        %v1848 = vpop.permute.xlu0 %1847
        %1851 = vset.pattern.permute.xlu0 0
        %1852 = vperm.xlu0 %1851, %v1814
        %v1853 = vpop.permute.xlu0 %1852
        %1856 = vset.pattern.permute.xlu0 0
        %1857 = vperm.xlu0 %1856, %v1815
        %v1858 = vpop.permute.xlu0 %1857
        %1861 = vset.pattern.permute.xlu0 0
        %1862 = vperm.xlu0 %1861, %v1816
        %v1863 = vpop.permute.xlu0 %1862
        %1866 = vset.pattern.permute.xlu0 0
        %1867 = vperm.xlu0 %1866, %v1817
        %v1868 = vpop.permute.xlu0 %1867
        %1871 = vset.pattern.permute.xlu0 0
        %1872 = vperm.xlu0 %1871, %v1818
        %v1873 = vpop.permute.xlu0 %1872
        %1876 = vset.pattern.permute.xlu0 0
        %1877 = vperm.xlu0 %1876, %v1819
        %v1878 = vpop.permute.xlu0 %1877
        %1881 = vset.pattern.permute.xlu0 0
        %1882 = vperm.xlu0 %1881, %v1820
        %v1883 = vpop.permute.xlu0 %1882
        %1886 = vset.pattern.permute.xlu0 0
        %1887 = vperm.xlu0 %1886, %v1821
        %v1888 = vpop.permute.xlu0 %1887
        %1891 = vset.pattern.permute.xlu0 0
        %1892 = vperm.xlu0 %1891, %v1822
        %v1893 = vpop.permute.xlu0 %1892
        %1896 = vset.pattern.permute.xlu0 0
        %1897 = vperm.xlu0 %1896, %v1823
        %v1898 = vpop.permute.xlu0 %1897
        %1901 = vset.pattern.permute.xlu0 0
        %1902 = vperm.xlu0 %1901, %v1824
        %v1903 = vpop.permute.xlu0 %1902
        %1906 = vset.pattern.permute.xlu0 0
        %1907 = vperm.xlu0 %1906, %v1825
        %v1908 = vpop.permute.xlu0 %1907
        %1911 = vset.pattern.permute.xlu0 0
        %1912 = vperm.xlu0 %1911, %v1826
        %v1913 = vpop.permute.xlu0 %1912
        %1916 = vset.pattern.permute.xlu0 0
        %1917 = vperm.xlu0 %1916, %v1827
        %v1918 = vpop.permute.xlu0 %1917
        %1921 = vset.pattern.permute.xlu0 0
        %1922 = vperm.xlu0 %1921, %v1828
        %v1923 = vpop.permute.xlu0 %1922
        %1926 = vset.pattern.permute.xlu0 0
        %1927 = vperm.xlu0 %1926, %v1829
        %v1928 = vpop.permute.xlu0 %1927
        %1931 = vset.pattern.permute.xlu0 0
        %1932 = vperm.xlu0 %1931, %v1830
        %v1933 = vpop.permute.xlu0 %1932
        %1936 = vset.pattern.permute.xlu0 0
        %1937 = vperm.xlu0 %1936, %v1831
        %v1938 = vpop.permute.xlu0 %1937
        %1941 = vset.pattern.permute.xlu0 0
        %1942 = vperm.xlu0 %1941, %v1832
        %v1943 = vpop.permute.xlu0 %1942
        %1946 = vset.pattern.permute.xlu0 0
        %1947 = vperm.xlu0 %1946, %v1833
        %v1948 = vpop.permute.xlu0 %1947
        %1951 = vset.pattern.permute.xlu0 0
        %1952 = vperm.xlu0 %1951, %v1834
        %v1953 = vpop.permute.xlu0 %1952
        %1956 = vset.pattern.permute.xlu0 0
        %1957 = vperm.xlu0 %1956, %v1835
        %v1958 = vpop.permute.xlu0 %1957
        %1961 = vset.pattern.permute.xlu0 0
        %1962 = vperm.xlu0 %1961, %v1836
        %v1963 = vpop.permute.xlu0 %1962
        %1966 = vset.pattern.permute.xlu0 0
        %1967 = vperm.xlu0 %1966, %v1837
        %v1968 = vpop.permute.xlu0 %1967
        %1971 = vset.pattern.permute.xlu0 0
        %1972 = vperm.xlu0 %1971, %v1838
        %v1973 = vpop.permute.xlu0 %1972
        %1976 = vset.pattern.permute.xlu0 0
        %1977 = vperm.xlu0 %1976, %v1839
        %v1978 = vpop.permute.xlu0 %1977
        %1981 = vset.pattern.permute.xlu0 0
        %1982 = vperm.xlu0 %1981, %v1840
        %v1983 = vpop.permute.xlu0 %1982
        %1986 = vset.pattern.permute.xlu0 0
        %1987 = vperm.xlu0 %1986, %v1841
        %v1988 = vpop.permute.xlu0 %1987
        %1991 = vset.pattern.permute.xlu0 0
        %1992 = vperm.xlu0 %1991, %v1842
        %v1993 = vpop.permute.xlu0 %1992
        %1996 = vset.pattern.permute.xlu0 0
        %1997 = vperm.xlu0 %1996, %v1843
        %v1998 = vpop.permute.xlu0 %1997
        %2001 = vset.pattern.permute.xlu0 0
        %2002 = vperm.xlu0 %2001, %v1844
        %v2003 = vpop.permute.xlu0 %2002
        %v2005 = vadd.f32 %v1687, %v1848
        %v2006 = vadd.f32 %v1690, %v1853
        %v2007 = vadd.f32 %v1695, %v1858
        %v2008 = vadd.f32 %v1698, %v1863
        %v2009 = vadd.f32 %v1703, %v1868
        %v2010 = vadd.f32 %v1706, %v1873
        %v2011 = vadd.f32 %v1711, %v1878
        %v2012 = vadd.f32 %v1714, %v1883
        %v2013 = vadd.f32 %v1719, %v1888
        %v2014 = vadd.f32 %v1722, %v1893
        %v2015 = vadd.f32 %v1727, %v1898
        %v2016 = vadd.f32 %v1730, %v1903
        %v2017 = vadd.f32 %v1735, %v1908
        %v2018 = vadd.f32 %v1738, %v1913
        %v2019 = vadd.f32 %v1743, %v1918
        %v2020 = vadd.f32 %v1746, %v1923
        %v2021 = vadd.f32 %v1751, %v1928
        %v2022 = vadd.f32 %v1754, %v1933
        %v2023 = vadd.f32 %v1759, %v1938
        %v2024 = vadd.f32 %v1762, %v1943
        %v2025 = vadd.f32 %v1767, %v1948
        %v2026 = vadd.f32 %v1770, %v1953
        %v2027 = vadd.f32 %v1775, %v1958
        %v2028 = vadd.f32 %v1778, %v1963
        %v2029 = vadd.f32 %v1783, %v1968
        %v2030 = vadd.f32 %v1786, %v1973
        %v2031 = vadd.f32 %v1791, %v1978
        %v2032 = vadd.f32 %v1794, %v1983
        %v2033 = vadd.f32 %v1799, %v1988
        %v2034 = vadd.f32 %v1802, %v1993
        %v2035 = vadd.f32 %v1807, %v1998
        %v2036 = vadd.f32 %v1810, %v2003
        %v2037 = vld [vmem:[%s6] sm:$0xff]
        %v2038 = vld [vmem:[%s6 + $0x8] sm:$0xff]
        %v2039 = vld [vmem:[%s6 + $0x10] sm:$0xff]
        %v2040 = vld [vmem:[%s6 + $0x18] sm:$0xff]
        %v2041 = vld [vmem:[%s6 + $0x20] sm:$0xff]
        %v2042 = vld [vmem:[%s6 + $0x28] sm:$0xff]
        %v2043 = vld [vmem:[%s6 + $0x30] sm:$0xff]
        %v2044 = vld [vmem:[%s6 + $0x38] sm:$0xff]
        %v2045 = vld [vmem:[%s6 + $0x40] sm:$0xff]
        %v2046 = vld [vmem:[%s6 + $0x48] sm:$0xff]
        %v2047 = vld [vmem:[%s6 + $0x50] sm:$0xff]
        %v2048 = vld [vmem:[%s6 + $0x58] sm:$0xff]
        %v2049 = vld [vmem:[%s6 + $0x60] sm:$0xff]
        %v2050 = vld [vmem:[%s6 + $0x68] sm:$0xff]
        %v2051 = vld [vmem:[%s6 + $0x70] sm:$0xff]
        %v2052 = vld [vmem:[%s6 + $0x78] sm:$0xff]
        %v2053 = vld [vmem:[%s6 + $0x80] sm:$0xff]
        %v2054 = vld [vmem:[%s6 + $0x88] sm:$0xff]
        %v2055 = vld [vmem:[%s6 + $0x90] sm:$0xff]
        %v2056 = vld [vmem:[%s6 + $0x98] sm:$0xff]
        %v2057 = vld [vmem:[%s6 + $0xa0] sm:$0xff]
        %v2058 = vld [vmem:[%s6 + $0xa8] sm:$0xff]
        %v2059 = vld [vmem:[%s6 + $0xb0] sm:$0xff]
        %v2060 = vld [vmem:[%s6 + $0xb8] sm:$0xff]
        %v2061 = vld [vmem:[%s6 + $0xc0] sm:$0xff]
        %v2062 = vld [vmem:[%s6 + $0xc8] sm:$0xff]
        %v2063 = vld [vmem:[%s6 + $0xd0] sm:$0xff]
        %v2064 = vld [vmem:[%s6 + $0xd8] sm:$0xff]
        %v2065 = vld [vmem:[%s6 + $0xe0] sm:$0xff]
        %v2066 = vld [vmem:[%s6 + $0xe8] sm:$0xff]
        %v2067 = vld [vmem:[%s6 + $0xf0] sm:$0xff]
        %v2068 = vld [vmem:[%s6 + $0xf8] sm:$0xff]
        %v2069 = vld [vmem:[%s7] sm:$0xff]
        %v2070 = vld [vmem:[%s7 + $0x8] sm:$0xff]
        %v2071 = vld [vmem:[%s7 + $0x10] sm:$0xff]
        %v2072 = vld [vmem:[%s7 + $0x18] sm:$0xff]
        %v2073 = vld [vmem:[%s7 + $0x20] sm:$0xff]
        %v2074 = vld [vmem:[%s7 + $0x28] sm:$0xff]
        %v2075 = vld [vmem:[%s7 + $0x30] sm:$0xff]
        %v2076 = vld [vmem:[%s7 + $0x38] sm:$0xff]
        %v2077 = vld [vmem:[%s7 + $0x40] sm:$0xff]
        %v2078 = vld [vmem:[%s7 + $0x48] sm:$0xff]
        %v2079 = vld [vmem:[%s7 + $0x50] sm:$0xff]
        %v2080 = vld [vmem:[%s7 + $0x58] sm:$0xff]
        %v2081 = vld [vmem:[%s7 + $0x60] sm:$0xff]
        %v2082 = vld [vmem:[%s7 + $0x68] sm:$0xff]
        %v2083 = vld [vmem:[%s7 + $0x70] sm:$0xff]
        %v2084 = vld [vmem:[%s7 + $0x78] sm:$0xff]
        %v2085 = vld [vmem:[%s7 + $0x80] sm:$0xff]
        %v2086 = vld [vmem:[%s7 + $0x88] sm:$0xff]
        %v2087 = vld [vmem:[%s7 + $0x90] sm:$0xff]
        %v2088 = vld [vmem:[%s7 + $0x98] sm:$0xff]
        %v2089 = vld [vmem:[%s7 + $0xa0] sm:$0xff]
        %v2090 = vld [vmem:[%s7 + $0xa8] sm:$0xff]
        %v2091 = vld [vmem:[%s7 + $0xb0] sm:$0xff]
        %v2092 = vld [vmem:[%s7 + $0xb8] sm:$0xff]
        %v2093 = vld [vmem:[%s7 + $0xc0] sm:$0xff]
        %v2094 = vld [vmem:[%s7 + $0xc8] sm:$0xff]
        %v2095 = vld [vmem:[%s7 + $0xd0] sm:$0xff]
        %v2096 = vld [vmem:[%s7 + $0xd8] sm:$0xff]
        %v2097 = vld [vmem:[%s7 + $0xe0] sm:$0xff]
        %v2098 = vld [vmem:[%s7 + $0xe8] sm:$0xff]
        %v2099 = vld [vmem:[%s7 + $0xf0] sm:$0xff]
        %v2100 = vld [vmem:[%s7 + $0xf8] sm:$0xff]
        %v2101 = vadd.f32 %v2005, %v2006
        %v2102 = vadd.f32 %v2101, %v2007
        %v2103 = vadd.f32 %v2102, %v2008
        %v2104 = vadd.f32 %v2103, %v2009
        %v2105 = vadd.f32 %v2104, %v2010
        %v2106 = vadd.f32 %v2105, %v2011
        %v2107 = vadd.f32 %v2106, %v2012
        %v2108 = vadd.f32 %v2107, %v2013
        %v2109 = vadd.f32 %v2108, %v2014
        %v2110 = vadd.f32 %v2109, %v2015
        %v2111 = vadd.f32 %v2110, %v2016
        %v2112 = vadd.f32 %v2111, %v2017
        %v2113 = vadd.f32 %v2112, %v2018
        %v2114 = vadd.f32 %v2113, %v2019
        %v2115 = vadd.f32 %v2114, %v2020
        %v2116 = vadd.f32 %v2115, %v2021
        %v2117 = vadd.f32 %v2116, %v2022
        %v2118 = vadd.f32 %v2117, %v2023
        %v2119 = vadd.f32 %v2118, %v2024
        %v2120 = vadd.f32 %v2119, %v2025
        %v2121 = vadd.f32 %v2120, %v2026
        %v2122 = vadd.f32 %v2121, %v2027
        %v2123 = vadd.f32 %v2122, %v2028
        %v2124 = vadd.f32 %v2123, %v2029
        %v2125 = vadd.f32 %v2124, %v2030
        %v2126 = vadd.f32 %v2125, %v2031
        %v2127 = vadd.f32 %v2126, %v2032
        %v2128 = vadd.f32 %v2127, %v2033
        %v2129 = vadd.f32 %v2128, %v2034
        %v2130 = vadd.f32 %v2129, %v2035
        %v2131 = vadd.f32 %v2130, %v2036
        %v2132 = vrot.slane %v2131, 4
        %v2133 = vadd.f32 %v2131, %v2132
        %v2134 = vrot.slane %v2133, 2
        %v2135 = vadd.f32 %v2133, %v2134
        %v2136 = vrot.slane %v2135, 1
        %v2137 = vadd.f32 %v2135, %v2136
        %v2138 = vrcp.pop 256.0
        %v2139 = vmul.f32 %v2137, %v2138
        %v2140 = vsub.f32 %v2005, %v2139
        %v2141 = vsub.f32 %v2006, %v2139
        %v2142 = vsub.f32 %v2007, %v2139
        %v2143 = vsub.f32 %v2008, %v2139
        %v2144 = vsub.f32 %v2009, %v2139
        %v2145 = vsub.f32 %v2010, %v2139
        %v2146 = vsub.f32 %v2011, %v2139
        %v2147 = vsub.f32 %v2012, %v2139
        %v2148 = vsub.f32 %v2013, %v2139
        %v2149 = vsub.f32 %v2014, %v2139
        %v2150 = vsub.f32 %v2015, %v2139
        %v2151 = vsub.f32 %v2016, %v2139
        %v2152 = vsub.f32 %v2017, %v2139
        %v2153 = vsub.f32 %v2018, %v2139
        %v2154 = vsub.f32 %v2019, %v2139
        %v2155 = vsub.f32 %v2020, %v2139
        %v2156 = vsub.f32 %v2021, %v2139
        %v2157 = vsub.f32 %v2022, %v2139
        %v2158 = vsub.f32 %v2023, %v2139
        %v2159 = vsub.f32 %v2024, %v2139
        %v2160 = vsub.f32 %v2025, %v2139
        %v2161 = vsub.f32 %v2026, %v2139
        %v2162 = vsub.f32 %v2027, %v2139
        %v2163 = vsub.f32 %v2028, %v2139
        %v2164 = vsub.f32 %v2029, %v2139
        %v2165 = vsub.f32 %v2030, %v2139
        %v2166 = vsub.f32 %v2031, %v2139
        %v2167 = vsub.f32 %v2032, %v2139
        %v2168 = vsub.f32 %v2033, %v2139
        %v2169 = vsub.f32 %v2034, %v2139
        %v2170 = vsub.f32 %v2035, %v2139
        %v2171 = vsub.f32 %v2036, %v2139
        %v2172 = vmul.f32 %v2140, %v2140
        %v2173 = vmul.f32 %v2141, %v2141
        %v2174 = vmul.f32 %v2142, %v2142
        %v2175 = vmul.f32 %v2143, %v2143
        %v2176 = vmul.f32 %v2144, %v2144
        %v2177 = vmul.f32 %v2145, %v2145
        %v2178 = vmul.f32 %v2146, %v2146
        %v2179 = vmul.f32 %v2147, %v2147
        %v2180 = vmul.f32 %v2148, %v2148
        %v2181 = vmul.f32 %v2149, %v2149
        %v2182 = vmul.f32 %v2150, %v2150
        %v2183 = vmul.f32 %v2151, %v2151
        %v2184 = vmul.f32 %v2152, %v2152
        %v2185 = vmul.f32 %v2153, %v2153
        %v2186 = vmul.f32 %v2154, %v2154
        %v2187 = vmul.f32 %v2155, %v2155
        %v2188 = vmul.f32 %v2156, %v2156
        %v2189 = vmul.f32 %v2157, %v2157
        %v2190 = vmul.f32 %v2158, %v2158
        %v2191 = vmul.f32 %v2159, %v2159
        %v2192 = vmul.f32 %v2160, %v2160
        %v2193 = vmul.f32 %v2161, %v2161
        %v2194 = vmul.f32 %v2162, %v2162
        %v2195 = vmul.f32 %v2163, %v2163
        %v2196 = vmul.f32 %v2164, %v2164
        %v2197 = vmul.f32 %v2165, %v2165
        %v2198 = vmul.f32 %v2166, %v2166
        %v2199 = vmul.f32 %v2167, %v2167
        %v2200 = vmul.f32 %v2168, %v2168
        %v2201 = vmul.f32 %v2169, %v2169
        %v2202 = vmul.f32 %v2170, %v2170
        %v2203 = vmul.f32 %v2171, %v2171
        %v2204 = vadd.f32 %v2172, %v2173
        %v2205 = vadd.f32 %v2204, %v2174
        %v2206 = vadd.f32 %v2205, %v2175
        %v2207 = vadd.f32 %v2206, %v2176
        %v2208 = vadd.f32 %v2207, %v2177
        %v2209 = vadd.f32 %v2208, %v2178
        %v2210 = vadd.f32 %v2209, %v2179
        %v2211 = vadd.f32 %v2210, %v2180
        %v2212 = vadd.f32 %v2211, %v2181
        %v2213 = vadd.f32 %v2212, %v2182
        %v2214 = vadd.f32 %v2213, %v2183
        %v2215 = vadd.f32 %v2214, %v2184
        %v2216 = vadd.f32 %v2215, %v2185
        %v2217 = vadd.f32 %v2216, %v2186
        %v2218 = vadd.f32 %v2217, %v2187
        %v2219 = vadd.f32 %v2218, %v2188
        %v2220 = vadd.f32 %v2219, %v2189
        %v2221 = vadd.f32 %v2220, %v2190
        %v2222 = vadd.f32 %v2221, %v2191
        %v2223 = vadd.f32 %v2222, %v2192
        %v2224 = vadd.f32 %v2223, %v2193
        %v2225 = vadd.f32 %v2224, %v2194
        %v2226 = vadd.f32 %v2225, %v2195
        %v2227 = vadd.f32 %v2226, %v2196
        %v2228 = vadd.f32 %v2227, %v2197
        %v2229 = vadd.f32 %v2228, %v2198
        %v2230 = vadd.f32 %v2229, %v2199
        %v2231 = vadd.f32 %v2230, %v2200
        %v2232 = vadd.f32 %v2231, %v2201
        %v2233 = vadd.f32 %v2232, %v2202
        %v2234 = vadd.f32 %v2233, %v2203
        %v2235 = vrot.slane %v2234, 4
        %v2236 = vadd.f32 %v2234, %v2235
        %v2237 = vrot.slane %v2236, 2
        %v2238 = vadd.f32 %v2236, %v2237
        %v2239 = vrot.slane %v2238, 1
        %v2240 = vadd.f32 %v2238, %v2239
        %v2241 = vmul.f32 %v2240, %v2138
        %v2242 = vadd.f32 %v2241, 1e-05
        %v2243 = vrsqrt.pop %v2242
        %v2244 = vmul.f32 %v2140, %v2243
        %v2245 = vmul.f32 %v2141, %v2243
        %v2246 = vmul.f32 %v2142, %v2243
        %v2247 = vmul.f32 %v2143, %v2243
        %v2248 = vmul.f32 %v2144, %v2243
        %v2249 = vmul.f32 %v2145, %v2243
        %v2250 = vmul.f32 %v2146, %v2243
        %v2251 = vmul.f32 %v2147, %v2243
        %v2252 = vmul.f32 %v2148, %v2243
        %v2253 = vmul.f32 %v2149, %v2243
        %v2254 = vmul.f32 %v2150, %v2243
        %v2255 = vmul.f32 %v2151, %v2243
        %v2256 = vmul.f32 %v2152, %v2243
        %v2257 = vmul.f32 %v2153, %v2243
        %v2258 = vmul.f32 %v2154, %v2243
        %v2259 = vmul.f32 %v2155, %v2243
        %v2260 = vmul.f32 %v2156, %v2243
        %v2261 = vmul.f32 %v2157, %v2243
        %v2262 = vmul.f32 %v2158, %v2243
        %v2263 = vmul.f32 %v2159, %v2243
        %v2264 = vmul.f32 %v2160, %v2243
        %v2265 = vmul.f32 %v2161, %v2243
        %v2266 = vmul.f32 %v2162, %v2243
        %v2267 = vmul.f32 %v2163, %v2243
        %v2268 = vmul.f32 %v2164, %v2243
        %v2269 = vmul.f32 %v2165, %v2243
        %v2270 = vmul.f32 %v2166, %v2243
        %v2271 = vmul.f32 %v2167, %v2243
        %v2272 = vmul.f32 %v2168, %v2243
        %v2273 = vmul.f32 %v2169, %v2243
        %v2274 = vmul.f32 %v2170, %v2243
        %v2275 = vmul.f32 %v2171, %v2243
        %2277 = vset.pattern.permute.xlu0 0
        %2278 = vperm.xlu0 %2277, %v2037
        %v2279 = vpop.permute.xlu0 %2278
        %2282 = vset.pattern.permute.xlu0 0
        %2283 = vperm.xlu0 %2282, %v2038
        %v2284 = vpop.permute.xlu0 %2283
        %2287 = vset.pattern.permute.xlu0 0
        %2288 = vperm.xlu0 %2287, %v2039
        %v2289 = vpop.permute.xlu0 %2288
        %2292 = vset.pattern.permute.xlu0 0
        %2293 = vperm.xlu0 %2292, %v2040
        %v2294 = vpop.permute.xlu0 %2293
        %2297 = vset.pattern.permute.xlu0 0
        %2298 = vperm.xlu0 %2297, %v2041
        %v2299 = vpop.permute.xlu0 %2298
        %2302 = vset.pattern.permute.xlu0 0
        %2303 = vperm.xlu0 %2302, %v2042
        %v2304 = vpop.permute.xlu0 %2303
        %2307 = vset.pattern.permute.xlu0 0
        %2308 = vperm.xlu0 %2307, %v2043
        %v2309 = vpop.permute.xlu0 %2308
        %2312 = vset.pattern.permute.xlu0 0
        %2313 = vperm.xlu0 %2312, %v2044
        %v2314 = vpop.permute.xlu0 %2313
        %2317 = vset.pattern.permute.xlu0 0
        %2318 = vperm.xlu0 %2317, %v2045
        %v2319 = vpop.permute.xlu0 %2318
        %2322 = vset.pattern.permute.xlu0 0
        %2323 = vperm.xlu0 %2322, %v2046
        %v2324 = vpop.permute.xlu0 %2323
        %2327 = vset.pattern.permute.xlu0 0
        %2328 = vperm.xlu0 %2327, %v2047
        %v2329 = vpop.permute.xlu0 %2328
        %2332 = vset.pattern.permute.xlu0 0
        %2333 = vperm.xlu0 %2332, %v2048
        %v2334 = vpop.permute.xlu0 %2333
        %2337 = vset.pattern.permute.xlu0 0
        %2338 = vperm.xlu0 %2337, %v2049
        %v2339 = vpop.permute.xlu0 %2338
        %2342 = vset.pattern.permute.xlu0 0
        %2343 = vperm.xlu0 %2342, %v2050
        %v2344 = vpop.permute.xlu0 %2343
        %2347 = vset.pattern.permute.xlu0 0
        %2348 = vperm.xlu0 %2347, %v2051
        %v2349 = vpop.permute.xlu0 %2348
        %2352 = vset.pattern.permute.xlu0 0
        %2353 = vperm.xlu0 %2352, %v2052
        %v2354 = vpop.permute.xlu0 %2353
        %2357 = vset.pattern.permute.xlu0 0
        %2358 = vperm.xlu0 %2357, %v2053
        %v2359 = vpop.permute.xlu0 %2358
        %2362 = vset.pattern.permute.xlu0 0
        %2363 = vperm.xlu0 %2362, %v2054
        %v2364 = vpop.permute.xlu0 %2363
        %2367 = vset.pattern.permute.xlu0 0
        %2368 = vperm.xlu0 %2367, %v2055
        %v2369 = vpop.permute.xlu0 %2368
        %2372 = vset.pattern.permute.xlu0 0
        %2373 = vperm.xlu0 %2372, %v2056
        %v2374 = vpop.permute.xlu0 %2373
        %2377 = vset.pattern.permute.xlu0 0
        %2378 = vperm.xlu0 %2377, %v2057
        %v2379 = vpop.permute.xlu0 %2378
        %2382 = vset.pattern.permute.xlu0 0
        %2383 = vperm.xlu0 %2382, %v2058
        %v2384 = vpop.permute.xlu0 %2383
        %2387 = vset.pattern.permute.xlu0 0
        %2388 = vperm.xlu0 %2387, %v2059
        %v2389 = vpop.permute.xlu0 %2388
        %2392 = vset.pattern.permute.xlu0 0
        %2393 = vperm.xlu0 %2392, %v2060
        %v2394 = vpop.permute.xlu0 %2393
        %2397 = vset.pattern.permute.xlu0 0
        %2398 = vperm.xlu0 %2397, %v2061
        %v2399 = vpop.permute.xlu0 %2398
        %2402 = vset.pattern.permute.xlu0 0
        %2403 = vperm.xlu0 %2402, %v2062
        %v2404 = vpop.permute.xlu0 %2403
        %2407 = vset.pattern.permute.xlu0 0
        %2408 = vperm.xlu0 %2407, %v2063
        %v2409 = vpop.permute.xlu0 %2408
        %2412 = vset.pattern.permute.xlu0 0
        %2413 = vperm.xlu0 %2412, %v2064
        %v2414 = vpop.permute.xlu0 %2413
        %2417 = vset.pattern.permute.xlu0 0
        %2418 = vperm.xlu0 %2417, %v2065
        %v2419 = vpop.permute.xlu0 %2418
        %2422 = vset.pattern.permute.xlu0 0
        %2423 = vperm.xlu0 %2422, %v2066
        %v2424 = vpop.permute.xlu0 %2423
        %2427 = vset.pattern.permute.xlu0 0
        %2428 = vperm.xlu0 %2427, %v2067
        %v2429 = vpop.permute.xlu0 %2428
        %2432 = vset.pattern.permute.xlu0 0
        %2433 = vperm.xlu0 %2432, %v2068
        %v2434 = vpop.permute.xlu0 %2433
        %v2436 = vmul.f32 %v2244, %v2279
        %v2437 = vmul.f32 %v2245, %v2284
        %v2438 = vmul.f32 %v2246, %v2289
        %v2439 = vmul.f32 %v2247, %v2294
        %v2440 = vmul.f32 %v2248, %v2299
        %v2441 = vmul.f32 %v2249, %v2304
        %v2442 = vmul.f32 %v2250, %v2309
        %v2443 = vmul.f32 %v2251, %v2314
        %v2444 = vmul.f32 %v2252, %v2319
        %v2445 = vmul.f32 %v2253, %v2324
        %v2446 = vmul.f32 %v2254, %v2329
        %v2447 = vmul.f32 %v2255, %v2334
        %v2448 = vmul.f32 %v2256, %v2339
        %v2449 = vmul.f32 %v2257, %v2344
        %v2450 = vmul.f32 %v2258, %v2349
        %v2451 = vmul.f32 %v2259, %v2354
        %v2452 = vmul.f32 %v2260, %v2359
        %v2453 = vmul.f32 %v2261, %v2364
        %v2454 = vmul.f32 %v2262, %v2369
        %v2455 = vmul.f32 %v2263, %v2374
        %v2456 = vmul.f32 %v2264, %v2379
        %v2457 = vmul.f32 %v2265, %v2384
        %v2458 = vmul.f32 %v2266, %v2389
        %v2459 = vmul.f32 %v2267, %v2394
        %v2460 = vmul.f32 %v2268, %v2399
        %v2461 = vmul.f32 %v2269, %v2404
        %v2462 = vmul.f32 %v2270, %v2409
        %v2463 = vmul.f32 %v2271, %v2414
        %v2464 = vmul.f32 %v2272, %v2419
        %v2465 = vmul.f32 %v2273, %v2424
        %v2466 = vmul.f32 %v2274, %v2429
        %v2467 = vmul.f32 %v2275, %v2434
        %2469 = vset.pattern.permute.xlu0 0
        %2470 = vperm.xlu0 %2469, %v2069
        %v2471 = vpop.permute.xlu0 %2470
        %2474 = vset.pattern.permute.xlu0 0
        %2475 = vperm.xlu0 %2474, %v2070
        %v2476 = vpop.permute.xlu0 %2475
        %2479 = vset.pattern.permute.xlu0 0
        %2480 = vperm.xlu0 %2479, %v2071
        %v2481 = vpop.permute.xlu0 %2480
        %2484 = vset.pattern.permute.xlu0 0
        %2485 = vperm.xlu0 %2484, %v2072
        %v2486 = vpop.permute.xlu0 %2485
        %2489 = vset.pattern.permute.xlu0 0
        %2490 = vperm.xlu0 %2489, %v2073
        %v2491 = vpop.permute.xlu0 %2490
        %2494 = vset.pattern.permute.xlu0 0
        %2495 = vperm.xlu0 %2494, %v2074
        %v2496 = vpop.permute.xlu0 %2495
        %2499 = vset.pattern.permute.xlu0 0
        %2500 = vperm.xlu0 %2499, %v2075
        %v2501 = vpop.permute.xlu0 %2500
        %2504 = vset.pattern.permute.xlu0 0
        %2505 = vperm.xlu0 %2504, %v2076
        %v2506 = vpop.permute.xlu0 %2505
        %2509 = vset.pattern.permute.xlu0 0
        %2510 = vperm.xlu0 %2509, %v2077
        %v2511 = vpop.permute.xlu0 %2510
        %2514 = vset.pattern.permute.xlu0 0
        %2515 = vperm.xlu0 %2514, %v2078
        %v2516 = vpop.permute.xlu0 %2515
        %2519 = vset.pattern.permute.xlu0 0
        %2520 = vperm.xlu0 %2519, %v2079
        %v2521 = vpop.permute.xlu0 %2520
        %2524 = vset.pattern.permute.xlu0 0
        %2525 = vperm.xlu0 %2524, %v2080
        %v2526 = vpop.permute.xlu0 %2525
        %2529 = vset.pattern.permute.xlu0 0
        %2530 = vperm.xlu0 %2529, %v2081
        %v2531 = vpop.permute.xlu0 %2530
        %2534 = vset.pattern.permute.xlu0 0
        %2535 = vperm.xlu0 %2534, %v2082
        %v2536 = vpop.permute.xlu0 %2535
        %2539 = vset.pattern.permute.xlu0 0
        %2540 = vperm.xlu0 %2539, %v2083
        %v2541 = vpop.permute.xlu0 %2540
        %2544 = vset.pattern.permute.xlu0 0
        %2545 = vperm.xlu0 %2544, %v2084
        %v2546 = vpop.permute.xlu0 %2545
        %2549 = vset.pattern.permute.xlu0 0
        %2550 = vperm.xlu0 %2549, %v2085
        %v2551 = vpop.permute.xlu0 %2550
        %2554 = vset.pattern.permute.xlu0 0
        %2555 = vperm.xlu0 %2554, %v2086
        %v2556 = vpop.permute.xlu0 %2555
        %2559 = vset.pattern.permute.xlu0 0
        %2560 = vperm.xlu0 %2559, %v2087
        %v2561 = vpop.permute.xlu0 %2560
        %2564 = vset.pattern.permute.xlu0 0
        %2565 = vperm.xlu0 %2564, %v2088
        %v2566 = vpop.permute.xlu0 %2565
        %2569 = vset.pattern.permute.xlu0 0
        %2570 = vperm.xlu0 %2569, %v2089
        %v2571 = vpop.permute.xlu0 %2570
        %2574 = vset.pattern.permute.xlu0 0
        %2575 = vperm.xlu0 %2574, %v2090
        %v2576 = vpop.permute.xlu0 %2575
        %2579 = vset.pattern.permute.xlu0 0
        %2580 = vperm.xlu0 %2579, %v2091
        %v2581 = vpop.permute.xlu0 %2580
        %2584 = vset.pattern.permute.xlu0 0
        %2585 = vperm.xlu0 %2584, %v2092
        %v2586 = vpop.permute.xlu0 %2585
        %2589 = vset.pattern.permute.xlu0 0
        %2590 = vperm.xlu0 %2589, %v2093
        %v2591 = vpop.permute.xlu0 %2590
        %2594 = vset.pattern.permute.xlu0 0
        %2595 = vperm.xlu0 %2594, %v2094
        %v2596 = vpop.permute.xlu0 %2595
        %2599 = vset.pattern.permute.xlu0 0
        %2600 = vperm.xlu0 %2599, %v2095
        %v2601 = vpop.permute.xlu0 %2600
        %2604 = vset.pattern.permute.xlu0 0
        %2605 = vperm.xlu0 %2604, %v2096
        %v2606 = vpop.permute.xlu0 %2605
        %2609 = vset.pattern.permute.xlu0 0
        %2610 = vperm.xlu0 %2609, %v2097
        %v2611 = vpop.permute.xlu0 %2610
        %2614 = vset.pattern.permute.xlu0 0
        %2615 = vperm.xlu0 %2614, %v2098
        %v2616 = vpop.permute.xlu0 %2615
        %2619 = vset.pattern.permute.xlu0 0
        %2620 = vperm.xlu0 %2619, %v2099
        %v2621 = vpop.permute.xlu0 %2620
        %2624 = vset.pattern.permute.xlu0 0
        %2625 = vperm.xlu0 %2624, %v2100
        %v2626 = vpop.permute.xlu0 %2625
        %v2628 = vadd.f32 %v2436, %v2471
        %v2629 = vadd.f32 %v2437, %v2476
        %v2630 = vadd.f32 %v2438, %v2481
        %v2631 = vadd.f32 %v2439, %v2486
        %v2632 = vadd.f32 %v2440, %v2491
        %v2633 = vadd.f32 %v2441, %v2496
        %v2634 = vadd.f32 %v2442, %v2501
        %v2635 = vadd.f32 %v2443, %v2506
        %v2636 = vadd.f32 %v2444, %v2511
        %v2637 = vadd.f32 %v2445, %v2516
        %v2638 = vadd.f32 %v2446, %v2521
        %v2639 = vadd.f32 %v2447, %v2526
        %v2640 = vadd.f32 %v2448, %v2531
        %v2641 = vadd.f32 %v2449, %v2536
        %v2642 = vadd.f32 %v2450, %v2541
        %v2643 = vadd.f32 %v2451, %v2546
        %v2644 = vadd.f32 %v2452, %v2551
        %v2645 = vadd.f32 %v2453, %v2556
        %v2646 = vadd.f32 %v2454, %v2561
        %v2647 = vadd.f32 %v2455, %v2566
        %v2648 = vadd.f32 %v2456, %v2571
        %v2649 = vadd.f32 %v2457, %v2576
        %v2650 = vadd.f32 %v2458, %v2581
        %v2651 = vadd.f32 %v2459, %v2586
        %v2652 = vadd.f32 %v2460, %v2591
        %v2653 = vadd.f32 %v2461, %v2596
        %v2654 = vadd.f32 %v2462, %v2601
        %v2655 = vadd.f32 %v2463, %v2606
        %v2656 = vadd.f32 %v2464, %v2611
        %v2657 = vadd.f32 %v2465, %v2616
        %v2658 = vadd.f32 %v2466, %v2621
        %v2659 = vadd.f32 %v2467, %v2626
        %v2660 = vsub.f32 0.0, %v2628
        %v2661 = vsub.f32 0.0, %v2629
        %v2662 = vsub.f32 0.0, %v2630
        %v2663 = vsub.f32 0.0, %v2631
        %v2664 = vsub.f32 0.0, %v2632
        %v2665 = vsub.f32 0.0, %v2633
        %v2666 = vsub.f32 0.0, %v2634
        %v2667 = vsub.f32 0.0, %v2635
        %v2668 = vsub.f32 0.0, %v2636
        %v2669 = vsub.f32 0.0, %v2637
        %v2670 = vsub.f32 0.0, %v2638
        %v2671 = vsub.f32 0.0, %v2639
        %v2672 = vsub.f32 0.0, %v2640
        %v2673 = vsub.f32 0.0, %v2641
        %v2674 = vsub.f32 0.0, %v2642
        %v2675 = vsub.f32 0.0, %v2643
        %v2676 = vsub.f32 0.0, %v2644
        %v2677 = vsub.f32 0.0, %v2645
        %v2678 = vsub.f32 0.0, %v2646
        %v2679 = vsub.f32 0.0, %v2647
        %v2680 = vsub.f32 0.0, %v2648
        %v2681 = vsub.f32 0.0, %v2649
        %v2682 = vsub.f32 0.0, %v2650
        %v2683 = vsub.f32 0.0, %v2651
        %v2684 = vsub.f32 0.0, %v2652
        %v2685 = vsub.f32 0.0, %v2653
        %v2686 = vsub.f32 0.0, %v2654
        %v2687 = vsub.f32 0.0, %v2655
        %v2688 = vsub.f32 0.0, %v2656
        %v2689 = vsub.f32 0.0, %v2657
        %v2690 = vsub.f32 0.0, %v2658
        %v2691 = vsub.f32 0.0, %v2659
        %v2692 = vmul.f32 %v2660, 1.442695
        %v2693 = vpow.pop %v2692
        %v2694 = vmul.f32 %v2661, 1.442695
        %v2695 = vpow.pop %v2694
        %v2696 = vmul.f32 %v2662, 1.442695
        %v2697 = vpow.pop %v2696
        %v2698 = vmul.f32 %v2663, 1.442695
        %v2699 = vpow.pop %v2698
        %v2700 = vmul.f32 %v2664, 1.442695
        %v2701 = vpow.pop %v2700
        %v2702 = vmul.f32 %v2665, 1.442695
        %v2703 = vpow.pop %v2702
        %v2704 = vmul.f32 %v2666, 1.442695
        %v2705 = vpow.pop %v2704
        %v2706 = vmul.f32 %v2667, 1.442695
        %v2707 = vpow.pop %v2706
        %v2708 = vmul.f32 %v2668, 1.442695
        %v2709 = vpow.pop %v2708
        %v2710 = vmul.f32 %v2669, 1.442695
        %v2711 = vpow.pop %v2710
        %v2712 = vmul.f32 %v2670, 1.442695
        %v2713 = vpow.pop %v2712
        %v2714 = vmul.f32 %v2671, 1.442695
        %v2715 = vpow.pop %v2714
        %v2716 = vmul.f32 %v2672, 1.442695
        %v2717 = vpow.pop %v2716
        %v2718 = vmul.f32 %v2673, 1.442695
        %v2719 = vpow.pop %v2718
        %v2720 = vmul.f32 %v2674, 1.442695
        %v2721 = vpow.pop %v2720
        %v2722 = vmul.f32 %v2675, 1.442695
        %v2723 = vpow.pop %v2722
        %v2724 = vmul.f32 %v2676, 1.442695
        %v2725 = vpow.pop %v2724
        %v2726 = vmul.f32 %v2677, 1.442695
        %v2727 = vpow.pop %v2726
        %v2728 = vmul.f32 %v2678, 1.442695
        %v2729 = vpow.pop %v2728
        %v2730 = vmul.f32 %v2679, 1.442695
        %v2731 = vpow.pop %v2730
        %v2732 = vmul.f32 %v2680, 1.442695
        %v2733 = vpow.pop %v2732
        %v2734 = vmul.f32 %v2681, 1.442695
        %v2735 = vpow.pop %v2734
        %v2736 = vmul.f32 %v2682, 1.442695
        %v2737 = vpow.pop %v2736
        %v2738 = vmul.f32 %v2683, 1.442695
        %v2739 = vpow.pop %v2738
        %v2740 = vmul.f32 %v2684, 1.442695
        %v2741 = vpow.pop %v2740
        %v2742 = vmul.f32 %v2685, 1.442695
        %v2743 = vpow.pop %v2742
        %v2744 = vmul.f32 %v2686, 1.442695
        %v2745 = vpow.pop %v2744
        %v2746 = vmul.f32 %v2687, 1.442695
        %v2747 = vpow.pop %v2746
        %v2748 = vmul.f32 %v2688, 1.442695
        %v2749 = vpow.pop %v2748
        %v2750 = vmul.f32 %v2689, 1.442695
        %v2751 = vpow.pop %v2750
        %v2752 = vmul.f32 %v2690, 1.442695
        %v2753 = vpow.pop %v2752
        %v2754 = vmul.f32 %v2691, 1.442695
        %v2755 = vpow.pop %v2754
        %v2756 = vadd.f32 %v2693, 1.0
        %v2757 = vadd.f32 %v2695, 1.0
        %v2758 = vadd.f32 %v2697, 1.0
        %v2759 = vadd.f32 %v2699, 1.0
        %v2760 = vadd.f32 %v2701, 1.0
        %v2761 = vadd.f32 %v2703, 1.0
        %v2762 = vadd.f32 %v2705, 1.0
        %v2763 = vadd.f32 %v2707, 1.0
        %v2764 = vadd.f32 %v2709, 1.0
        %v2765 = vadd.f32 %v2711, 1.0
        %v2766 = vadd.f32 %v2713, 1.0
        %v2767 = vadd.f32 %v2715, 1.0
        %v2768 = vadd.f32 %v2717, 1.0
        %v2769 = vadd.f32 %v2719, 1.0
        %v2770 = vadd.f32 %v2721, 1.0
        %v2771 = vadd.f32 %v2723, 1.0
        %v2772 = vadd.f32 %v2725, 1.0
        %v2773 = vadd.f32 %v2727, 1.0
        %v2774 = vadd.f32 %v2729, 1.0
        %v2775 = vadd.f32 %v2731, 1.0
        %v2776 = vadd.f32 %v2733, 1.0
        %v2777 = vadd.f32 %v2735, 1.0
        %v2778 = vadd.f32 %v2737, 1.0
        %v2779 = vadd.f32 %v2739, 1.0
        %v2780 = vadd.f32 %v2741, 1.0
        %v2781 = vadd.f32 %v2743, 1.0
        %v2782 = vadd.f32 %v2745, 1.0
        %v2783 = vadd.f32 %v2747, 1.0
        %v2784 = vadd.f32 %v2749, 1.0
        %v2785 = vadd.f32 %v2751, 1.0
        %v2786 = vadd.f32 %v2753, 1.0
        %v2787 = vadd.f32 %v2755, 1.0
        %v2788 = vrcp.pop %v2756
        %v2789 = vmul.f32 1.0, %v2788
        %v2790 = vrcp.pop %v2757
        %v2791 = vmul.f32 1.0, %v2790
        %v2792 = vrcp.pop %v2758
        %v2793 = vmul.f32 1.0, %v2792
        %v2794 = vrcp.pop %v2759
        %v2795 = vmul.f32 1.0, %v2794
        %v2796 = vrcp.pop %v2760
        %v2797 = vmul.f32 1.0, %v2796
        %v2798 = vrcp.pop %v2761
        %v2799 = vmul.f32 1.0, %v2798
        %v2800 = vrcp.pop %v2762
        %v2801 = vmul.f32 1.0, %v2800
        %v2802 = vrcp.pop %v2763
        %v2803 = vmul.f32 1.0, %v2802
        %v2804 = vrcp.pop %v2764
        %v2805 = vmul.f32 1.0, %v2804
        %v2806 = vrcp.pop %v2765
        %v2807 = vmul.f32 1.0, %v2806
        %v2808 = vrcp.pop %v2766
        %v2809 = vmul.f32 1.0, %v2808
        %v2810 = vrcp.pop %v2767
        %v2811 = vmul.f32 1.0, %v2810
        %v2812 = vrcp.pop %v2768
        %v2813 = vmul.f32 1.0, %v2812
        %v2814 = vrcp.pop %v2769
        %v2815 = vmul.f32 1.0, %v2814
        %v2816 = vrcp.pop %v2770
        %v2817 = vmul.f32 1.0, %v2816
        %v2818 = vrcp.pop %v2771
        %v2819 = vmul.f32 1.0, %v2818
        %v2820 = vrcp.pop %v2772
        %v2821 = vmul.f32 1.0, %v2820
        %v2822 = vrcp.pop %v2773
        %v2823 = vmul.f32 1.0, %v2822
        %v2824 = vrcp.pop %v2774
        %v2825 = vmul.f32 1.0, %v2824
        %v2826 = vrcp.pop %v2775
        %v2827 = vmul.f32 1.0, %v2826
        %v2828 = vrcp.pop %v2776
        %v2829 = vmul.f32 1.0, %v2828
        %v2830 = vrcp.pop %v2777
        %v2831 = vmul.f32 1.0, %v2830
        %v2832 = vrcp.pop %v2778
        %v2833 = vmul.f32 1.0, %v2832
        %v2834 = vrcp.pop %v2779
        %v2835 = vmul.f32 1.0, %v2834
        %v2836 = vrcp.pop %v2780
        %v2837 = vmul.f32 1.0, %v2836
        %v2838 = vrcp.pop %v2781
        %v2839 = vmul.f32 1.0, %v2838
        %v2840 = vrcp.pop %v2782
        %v2841 = vmul.f32 1.0, %v2840
        %v2842 = vrcp.pop %v2783
        %v2843 = vmul.f32 1.0, %v2842
        %v2844 = vrcp.pop %v2784
        %v2845 = vmul.f32 1.0, %v2844
        %v2846 = vrcp.pop %v2785
        %v2847 = vmul.f32 1.0, %v2846
        %v2848 = vrcp.pop %v2786
        %v2849 = vmul.f32 1.0, %v2848
        %v2850 = vrcp.pop %v2787
        %v2851 = vmul.f32 1.0, %v2850
        %v2852 = vmul.f32 %v2628, %v2789
        %v2853 = vmul.f32 %v2629, %v2791
        %v2854 = vmul.f32 %v2630, %v2793
        %v2855 = vmul.f32 %v2631, %v2795
        %v2856 = vmul.f32 %v2632, %v2797
        %v2857 = vmul.f32 %v2633, %v2799
        %v2858 = vmul.f32 %v2634, %v2801
        %v2859 = vmul.f32 %v2635, %v2803
        %v2860 = vmul.f32 %v2636, %v2805
        %v2861 = vmul.f32 %v2637, %v2807
        %v2862 = vmul.f32 %v2638, %v2809
        %v2863 = vmul.f32 %v2639, %v2811
        %v2864 = vmul.f32 %v2640, %v2813
        %v2865 = vmul.f32 %v2641, %v2815
        %v2866 = vmul.f32 %v2642, %v2817
        %v2867 = vmul.f32 %v2643, %v2819
        %v2868 = vmul.f32 %v2644, %v2821
        %v2869 = vmul.f32 %v2645, %v2823
        %v2870 = vmul.f32 %v2646, %v2825
        %v2871 = vmul.f32 %v2647, %v2827
        %v2872 = vmul.f32 %v2648, %v2829
        %v2873 = vmul.f32 %v2649, %v2831
        %v2874 = vmul.f32 %v2650, %v2833
        %v2875 = vmul.f32 %v2651, %v2835
        %v2876 = vmul.f32 %v2652, %v2837
        %v2877 = vmul.f32 %v2653, %v2839
        %v2878 = vmul.f32 %v2654, %v2841
        %v2879 = vmul.f32 %v2655, %v2843
        %v2880 = vmul.f32 %v2656, %v2845
        %v2881 = vmul.f32 %v2657, %v2847
        %v2882 = vmul.f32 %v2658, %v2849
        %v2883 = vmul.f32 %v2659, %v2851
        %v2884 = vld [vmem:[%s9] sm:$0xff]
        %v2885 = vld [vmem:[%s9 + $0x8] sm:$0xff]
        %v2886 = vld [vmem:[%s9 + $0x10] sm:$0xff]
        %v2887 = vld [vmem:[%s9 + $0x18] sm:$0xff]
        %v2888 = vld [vmem:[%s9 + $0x20] sm:$0xff]
        %v2889 = vld [vmem:[%s9 + $0x28] sm:$0xff]
        %v2890 = vld [vmem:[%s9 + $0x30] sm:$0xff]
        %v2891 = vld [vmem:[%s9 + $0x38] sm:$0xff]
        %v2892 = vld [vmem:[%s9 + $0x40] sm:$0xff]
        %v2893 = vld [vmem:[%s9 + $0x48] sm:$0xff]
        %v2894 = vld [vmem:[%s9 + $0x50] sm:$0xff]
        %v2895 = vld [vmem:[%s9 + $0x58] sm:$0xff]
        %v2896 = vld [vmem:[%s9 + $0x60] sm:$0xff]
        %v2897 = vld [vmem:[%s9 + $0x68] sm:$0xff]
        %v2898 = vld [vmem:[%s9 + $0x70] sm:$0xff]
        %v2899 = vld [vmem:[%s9 + $0x78] sm:$0xff]
        %v2900 = vld [vmem:[%s9 + $0x80] sm:$0xff]
        %v2901 = vld [vmem:[%s9 + $0x88] sm:$0xff]
        %v2902 = vld [vmem:[%s9 + $0x90] sm:$0xff]
        %v2903 = vld [vmem:[%s9 + $0x98] sm:$0xff]
        %v2904 = vld [vmem:[%s9 + $0xa0] sm:$0xff]
        %v2905 = vld [vmem:[%s9 + $0xa8] sm:$0xff]
        %v2906 = vld [vmem:[%s9 + $0xb0] sm:$0xff]
        %v2907 = vld [vmem:[%s9 + $0xb8] sm:$0xff]
        %v2908 = vld [vmem:[%s9 + $0xc0] sm:$0xff]
        %v2909 = vld [vmem:[%s9 + $0xc8] sm:$0xff]
        %v2910 = vld [vmem:[%s9 + $0xd0] sm:$0xff]
        %v2911 = vld [vmem:[%s9 + $0xd8] sm:$0xff]
        %v2912 = vld [vmem:[%s9 + $0xe0] sm:$0xff]
        %v2913 = vld [vmem:[%s9 + $0xe8] sm:$0xff]
        %v2914 = vld [vmem:[%s9 + $0xf0] sm:$0xff]
        %v2915 = vld [vmem:[%s9 + $0xf8] sm:$0xff]
        %v2916 = vpack.c.bf16 %v2853, %v2852
        %v2917 = vpack.c.bf16 %v2855, %v2854
        %v2918 = vpack.c.bf16 %v2857, %v2856
        %v2919 = vpack.c.bf16 %v2859, %v2858
        %v2920 = vpack.c.bf16 %v2861, %v2860
        %v2921 = vpack.c.bf16 %v2863, %v2862
        %v2922 = vpack.c.bf16 %v2865, %v2864
        %v2923 = vpack.c.bf16 %v2867, %v2866
        %v2924 = vpack.c.bf16 %v2869, %v2868
        %v2925 = vpack.c.bf16 %v2871, %v2870
        %v2926 = vpack.c.bf16 %v2873, %v2872
        %v2927 = vpack.c.bf16 %v2875, %v2874
        %v2928 = vpack.c.bf16 %v2877, %v2876
        %v2929 = vpack.c.bf16 %v2879, %v2878
        %v2930 = vpack.c.bf16 %v2881, %v2880
        %v2931 = vpack.c.bf16 %v2883, %v2882
        %2948 = vrot.lane.b32.xlu0 %v2916, 1
        %v2949 = vpop.permute.xlu0 %2948
        %2950 = vrot.lane.b32.xlu0 %v2917, 1
        %v2951 = vpop.permute.xlu0 %2950
        %2952 = vrot.lane.b32.xlu0 %v2918, 1
        %v2953 = vpop.permute.xlu0 %2952
        %2954 = vrot.lane.b32.xlu0 %v2919, 1
        %v2955 = vpop.permute.xlu0 %2954
        %2956 = vrot.lane.b32.xlu0 %v2920, 1
        %v2957 = vpop.permute.xlu0 %2956
        %2958 = vrot.lane.b32.xlu0 %v2921, 1
        %v2959 = vpop.permute.xlu0 %2958
        %2960 = vrot.lane.b32.xlu0 %v2922, 1
        %v2961 = vpop.permute.xlu0 %2960
        %2962 = vrot.lane.b32.xlu0 %v2923, 1
        %v2963 = vpop.permute.xlu0 %2962
        %2964 = vrot.lane.b32.xlu0 %v2924, 1
        %v2965 = vpop.permute.xlu0 %2964
        %2966 = vrot.lane.b32.xlu0 %v2925, 1
        %v2967 = vpop.permute.xlu0 %2966
        %2968 = vrot.lane.b32.xlu0 %v2926, 1
        %v2969 = vpop.permute.xlu0 %2968
        %2970 = vrot.lane.b32.xlu0 %v2927, 1
        %v2971 = vpop.permute.xlu0 %2970
        %2972 = vrot.lane.b32.xlu0 %v2928, 1
        %v2973 = vpop.permute.xlu0 %2972
        %2974 = vrot.lane.b32.xlu0 %v2929, 1
        %v2975 = vpop.permute.xlu0 %2974
        %2976 = vrot.lane.b32.xlu0 %v2930, 1
        %v2977 = vpop.permute.xlu0 %2976
        %2978 = vrot.lane.b32.xlu0 %v2931, 1
        %v2979 = vpop.permute.xlu0 %2978
        %v2981 = vsel %vm944, 0, %v2949
        %v2984 = vsel %vm944, 0, %v2951
        %v2987 = vsel %vm944, 0, %v2953
        %v2990 = vsel %vm944, 0, %v2955
        %v2993 = vsel %vm944, 0, %v2957
        %v2996 = vsel %vm944, 0, %v2959
        %v2999 = vsel %vm944, 0, %v2961
        %v3002 = vsel %vm944, 0, %v2963
        %v3005 = vsel %vm944, 0, %v2965
        %v3008 = vsel %vm944, 0, %v2967
        %v3011 = vsel %vm944, 0, %v2969
        %v3014 = vsel %vm944, 0, %v2971
        %v3017 = vsel %vm944, 0, %v2973
        %v3020 = vsel %vm944, 0, %v2975
        %v3023 = vsel %vm944, 0, %v2977
        %v3026 = vsel %vm944, 0, %v2979
        %3028 = vrot.lane.b32.xlu0 %v2916, 127
        %v3029 = vpop.permute.xlu0 %3028
        %3030 = vrot.lane.b32.xlu0 %v2917, 127
        %v3031 = vpop.permute.xlu0 %3030
        %3032 = vrot.lane.b32.xlu0 %v2918, 127
        %v3033 = vpop.permute.xlu0 %3032
        %3034 = vrot.lane.b32.xlu0 %v2919, 127
        %v3035 = vpop.permute.xlu0 %3034
        %3036 = vrot.lane.b32.xlu0 %v2920, 127
        %v3037 = vpop.permute.xlu0 %3036
        %3038 = vrot.lane.b32.xlu0 %v2921, 127
        %v3039 = vpop.permute.xlu0 %3038
        %3040 = vrot.lane.b32.xlu0 %v2922, 127
        %v3041 = vpop.permute.xlu0 %3040
        %3042 = vrot.lane.b32.xlu0 %v2923, 127
        %v3043 = vpop.permute.xlu0 %3042
        %3044 = vrot.lane.b32.xlu0 %v2924, 127
        %v3045 = vpop.permute.xlu0 %3044
        %3046 = vrot.lane.b32.xlu0 %v2925, 127
        %v3047 = vpop.permute.xlu0 %3046
        %3048 = vrot.lane.b32.xlu0 %v2926, 127
        %v3049 = vpop.permute.xlu0 %3048
        %3050 = vrot.lane.b32.xlu0 %v2927, 127
        %v3051 = vpop.permute.xlu0 %3050
        %3052 = vrot.lane.b32.xlu0 %v2928, 127
        %v3053 = vpop.permute.xlu0 %3052
        %3054 = vrot.lane.b32.xlu0 %v2929, 127
        %v3055 = vpop.permute.xlu0 %3054
        %3056 = vrot.lane.b32.xlu0 %v2930, 127
        %v3057 = vpop.permute.xlu0 %3056
        %3058 = vrot.lane.b32.xlu0 %v2931, 127
        %v3059 = vpop.permute.xlu0 %3058
        %v3061 = vsel %vm986, %v3029, 0
        %v3064 = vsel %vm986, %v3031, 0
        %v3067 = vsel %vm986, %v3033, 0
        %v3070 = vsel %vm986, %v3035, 0
        %v3073 = vsel %vm986, %v3037, 0
        %v3076 = vsel %vm986, %v3039, 0
        %v3079 = vsel %vm986, %v3041, 0
        %v3082 = vsel %vm986, %v3043, 0
        %v3085 = vsel %vm986, %v3045, 0
        %v3088 = vsel %vm986, %v3047, 0
        %v3091 = vsel %vm986, %v3049, 0
        %v3094 = vsel %vm986, %v3051, 0
        %v3097 = vsel %vm986, %v3053, 0
        %v3100 = vsel %vm986, %v3055, 0
        %v3103 = vsel %vm986, %v3057, 0
        %v3106 = vsel %vm986, %v3059, 0
        %v3108 = vld [vmem:[%s8] sm:$0xff]
        %v3109 = vld [vmem:[%s8 + $0x8] sm:$0xff]
        %v3110 = vld [vmem:[%s8 + $0x10] sm:$0xff]
        %v3111 = vld [vmem:[%s8 + $0x18] sm:$0xff]
        %v3112 = vld [vmem:[%s8 + $0x20] sm:$0xff]
        %v3113 = vld [vmem:[%s8 + $0x28] sm:$0xff]
        %v3114 = vld [vmem:[%s8 + $0x30] sm:$0xff]
        %v3115 = vld [vmem:[%s8 + $0x38] sm:$0xff]
        %v3116 = vld [vmem:[%s8 + $0x40] sm:$0xff]
        %v3117 = vld [vmem:[%s8 + $0x48] sm:$0xff]
        %v3118 = vld [vmem:[%s8 + $0x50] sm:$0xff]
        %v3119 = vld [vmem:[%s8 + $0x58] sm:$0xff]
        %v3120 = vld [vmem:[%s8 + $0x60] sm:$0xff]
        %v3121 = vld [vmem:[%s8 + $0x68] sm:$0xff]
        %v3122 = vld [vmem:[%s8 + $0x70] sm:$0xff]
        %v3123 = vld [vmem:[%s8 + $0x78] sm:$0xff]
        %v3124 = vld [vmem:[%s8 + $0x80] sm:$0xff]
        %v3125 = vld [vmem:[%s8 + $0x88] sm:$0xff]
        %v3126 = vld [vmem:[%s8 + $0x90] sm:$0xff]
        %v3127 = vld [vmem:[%s8 + $0x98] sm:$0xff]
        %v3128 = vld [vmem:[%s8 + $0xa0] sm:$0xff]
        %v3129 = vld [vmem:[%s8 + $0xa8] sm:$0xff]
        %v3130 = vld [vmem:[%s8 + $0xb0] sm:$0xff]
        %v3131 = vld [vmem:[%s8 + $0xb8] sm:$0xff]
        %v3132 = vld [vmem:[%s8 + $0xc0] sm:$0xff]
        %v3133 = vld [vmem:[%s8 + $0xc8] sm:$0xff]
        %v3134 = vld [vmem:[%s8 + $0xd0] sm:$0xff]
        %v3135 = vld [vmem:[%s8 + $0xd8] sm:$0xff]
        %v3136 = vld [vmem:[%s8 + $0xe0] sm:$0xff]
        %v3137 = vld [vmem:[%s8 + $0xe8] sm:$0xff]
        %v3138 = vld [vmem:[%s8 + $0xf0] sm:$0xff]
        %v3139 = vld [vmem:[%s8 + $0xf8] sm:$0xff]
        %v3140 = vld [vmem:[%s8 + $0x100] sm:$0xff]
        %v3141 = vld [vmem:[%s8 + $0x108] sm:$0xff]
        %v3142 = vld [vmem:[%s8 + $0x110] sm:$0xff]
        %v3143 = vld [vmem:[%s8 + $0x118] sm:$0xff]
        %v3144 = vld [vmem:[%s8 + $0x120] sm:$0xff]
        %v3145 = vld [vmem:[%s8 + $0x128] sm:$0xff]
        %v3146 = vld [vmem:[%s8 + $0x130] sm:$0xff]
        %v3147 = vld [vmem:[%s8 + $0x138] sm:$0xff]
        %v3148 = vld [vmem:[%s8 + $0x140] sm:$0xff]
        %v3149 = vld [vmem:[%s8 + $0x148] sm:$0xff]
        %v3150 = vld [vmem:[%s8 + $0x150] sm:$0xff]
        %v3151 = vld [vmem:[%s8 + $0x158] sm:$0xff]
        %v3152 = vld [vmem:[%s8 + $0x160] sm:$0xff]
        %v3153 = vld [vmem:[%s8 + $0x168] sm:$0xff]
        %v3154 = vld [vmem:[%s8 + $0x170] sm:$0xff]
        %v3155 = vld [vmem:[%s8 + $0x178] sm:$0xff]
        %v3156 = vld [vmem:[%s8 + $0x180] sm:$0xff]
        %v3157 = vld [vmem:[%s8 + $0x188] sm:$0xff]
        %v3158 = vld [vmem:[%s8 + $0x190] sm:$0xff]
        %v3159 = vld [vmem:[%s8 + $0x198] sm:$0xff]
        %v3160 = vld [vmem:[%s8 + $0x1a0] sm:$0xff]
        %v3161 = vld [vmem:[%s8 + $0x1a8] sm:$0xff]
        %v3162 = vld [vmem:[%s8 + $0x1b0] sm:$0xff]
        %v3163 = vld [vmem:[%s8 + $0x1b8] sm:$0xff]
        %v3164 = vld [vmem:[%s8 + $0x1c0] sm:$0xff]
        %v3165 = vld [vmem:[%s8 + $0x1c8] sm:$0xff]
        %v3166 = vld [vmem:[%s8 + $0x1d0] sm:$0xff]
        %v3167 = vld [vmem:[%s8 + $0x1d8] sm:$0xff]
        %v3168 = vld [vmem:[%s8 + $0x1e0] sm:$0xff]
        %v3169 = vld [vmem:[%s8 + $0x1e8] sm:$0xff]
        %v3170 = vld [vmem:[%s8 + $0x1f0] sm:$0xff]
        %v3171 = vld [vmem:[%s8 + $0x1f8] sm:$0xff]
        %v3172 = vld [vmem:[%s8 + $0x200] sm:$0xff]
        %v3173 = vld [vmem:[%s8 + $0x208] sm:$0xff]
        %v3174 = vld [vmem:[%s8 + $0x210] sm:$0xff]
        %v3175 = vld [vmem:[%s8 + $0x218] sm:$0xff]
        %v3176 = vld [vmem:[%s8 + $0x220] sm:$0xff]
        %v3177 = vld [vmem:[%s8 + $0x228] sm:$0xff]
        %v3178 = vld [vmem:[%s8 + $0x230] sm:$0xff]
        %v3179 = vld [vmem:[%s8 + $0x238] sm:$0xff]
        %v3180 = vld [vmem:[%s8 + $0x240] sm:$0xff]
        %v3181 = vld [vmem:[%s8 + $0x248] sm:$0xff]
        %v3182 = vld [vmem:[%s8 + $0x250] sm:$0xff]
        %v3183 = vld [vmem:[%s8 + $0x258] sm:$0xff]
        %v3184 = vld [vmem:[%s8 + $0x260] sm:$0xff]
        %v3185 = vld [vmem:[%s8 + $0x268] sm:$0xff]
        %v3186 = vld [vmem:[%s8 + $0x270] sm:$0xff]
        %v3187 = vld [vmem:[%s8 + $0x278] sm:$0xff]
        %v3188 = vld [vmem:[%s8 + $0x280] sm:$0xff]
        %v3189 = vld [vmem:[%s8 + $0x288] sm:$0xff]
        %v3190 = vld [vmem:[%s8 + $0x290] sm:$0xff]
        %v3191 = vld [vmem:[%s8 + $0x298] sm:$0xff]
        %v3192 = vld [vmem:[%s8 + $0x2a0] sm:$0xff]
        %v3193 = vld [vmem:[%s8 + $0x2a8] sm:$0xff]
        %v3194 = vld [vmem:[%s8 + $0x2b0] sm:$0xff]
        %v3195 = vld [vmem:[%s8 + $0x2b8] sm:$0xff]
        %v3196 = vld [vmem:[%s8 + $0x2c0] sm:$0xff]
        %v3197 = vld [vmem:[%s8 + $0x2c8] sm:$0xff]
        %v3198 = vld [vmem:[%s8 + $0x2d0] sm:$0xff]
        %v3199 = vld [vmem:[%s8 + $0x2d8] sm:$0xff]
        %v3200 = vld [vmem:[%s8 + $0x2e0] sm:$0xff]
        %v3201 = vld [vmem:[%s8 + $0x2e8] sm:$0xff]
        %v3202 = vld [vmem:[%s8 + $0x2f0] sm:$0xff]
        %v3203 = vld [vmem:[%s8 + $0x2f8] sm:$0xff]
        %3205 = vset.pattern.permute.xlu0 0
        %3206 = vperm.xlu0 %3205, %v2884
        %v3207 = vpop.permute.xlu0 %3206
        %3210 = vset.pattern.permute.xlu0 0
        %3211 = vperm.xlu0 %3210, %v2885
        %v3212 = vpop.permute.xlu0 %3211
        %3215 = vset.pattern.permute.xlu0 0
        %3216 = vperm.xlu0 %3215, %v2886
        %v3217 = vpop.permute.xlu0 %3216
        %3220 = vset.pattern.permute.xlu0 0
        %3221 = vperm.xlu0 %3220, %v2887
        %v3222 = vpop.permute.xlu0 %3221
        %3225 = vset.pattern.permute.xlu0 0
        %3226 = vperm.xlu0 %3225, %v2888
        %v3227 = vpop.permute.xlu0 %3226
        %3230 = vset.pattern.permute.xlu0 0
        %3231 = vperm.xlu0 %3230, %v2889
        %v3232 = vpop.permute.xlu0 %3231
        %3235 = vset.pattern.permute.xlu0 0
        %3236 = vperm.xlu0 %3235, %v2890
        %v3237 = vpop.permute.xlu0 %3236
        %3240 = vset.pattern.permute.xlu0 0
        %3241 = vperm.xlu0 %3240, %v2891
        %v3242 = vpop.permute.xlu0 %3241
        %3245 = vset.pattern.permute.xlu0 0
        %3246 = vperm.xlu0 %3245, %v2892
        %v3247 = vpop.permute.xlu0 %3246
        %3250 = vset.pattern.permute.xlu0 0
        %3251 = vperm.xlu0 %3250, %v2893
        %v3252 = vpop.permute.xlu0 %3251
        %3255 = vset.pattern.permute.xlu0 0
        %3256 = vperm.xlu0 %3255, %v2894
        %v3257 = vpop.permute.xlu0 %3256
        %3260 = vset.pattern.permute.xlu0 0
        %3261 = vperm.xlu0 %3260, %v2895
        %v3262 = vpop.permute.xlu0 %3261
        %3265 = vset.pattern.permute.xlu0 0
        %3266 = vperm.xlu0 %3265, %v2896
        %v3267 = vpop.permute.xlu0 %3266
        %3270 = vset.pattern.permute.xlu0 0
        %3271 = vperm.xlu0 %3270, %v2897
        %v3272 = vpop.permute.xlu0 %3271
        %3275 = vset.pattern.permute.xlu0 0
        %3276 = vperm.xlu0 %3275, %v2898
        %v3277 = vpop.permute.xlu0 %3276
        %3280 = vset.pattern.permute.xlu0 0
        %3281 = vperm.xlu0 %3280, %v2899
        %v3282 = vpop.permute.xlu0 %3281
        %3285 = vset.pattern.permute.xlu0 0
        %3286 = vperm.xlu0 %3285, %v2900
        %v3287 = vpop.permute.xlu0 %3286
        %3290 = vset.pattern.permute.xlu0 0
        %3291 = vperm.xlu0 %3290, %v2901
        %v3292 = vpop.permute.xlu0 %3291
        %3295 = vset.pattern.permute.xlu0 0
        %3296 = vperm.xlu0 %3295, %v2902
        %v3297 = vpop.permute.xlu0 %3296
        %3300 = vset.pattern.permute.xlu0 0
        %3301 = vperm.xlu0 %3300, %v2903
        %v3302 = vpop.permute.xlu0 %3301
        %3305 = vset.pattern.permute.xlu0 0
        %3306 = vperm.xlu0 %3305, %v2904
        %v3307 = vpop.permute.xlu0 %3306
        %3310 = vset.pattern.permute.xlu0 0
        %3311 = vperm.xlu0 %3310, %v2905
        %v3312 = vpop.permute.xlu0 %3311
        %3315 = vset.pattern.permute.xlu0 0
        %3316 = vperm.xlu0 %3315, %v2906
        %v3317 = vpop.permute.xlu0 %3316
        %3320 = vset.pattern.permute.xlu0 0
        %3321 = vperm.xlu0 %3320, %v2907
        %v3322 = vpop.permute.xlu0 %3321
        %3325 = vset.pattern.permute.xlu0 0
        %3326 = vperm.xlu0 %3325, %v2908
        %v3327 = vpop.permute.xlu0 %3326
        %3330 = vset.pattern.permute.xlu0 0
        %3331 = vperm.xlu0 %3330, %v2909
        %v3332 = vpop.permute.xlu0 %3331
        %3335 = vset.pattern.permute.xlu0 0
        %3336 = vperm.xlu0 %3335, %v2910
        %v3337 = vpop.permute.xlu0 %3336
        %3340 = vset.pattern.permute.xlu0 0
        %3341 = vperm.xlu0 %3340, %v2911
        %v3342 = vpop.permute.xlu0 %3341
        %3345 = vset.pattern.permute.xlu0 0
        %3346 = vperm.xlu0 %3345, %v2912
        %v3347 = vpop.permute.xlu0 %3346
        %3350 = vset.pattern.permute.xlu0 0
        %3351 = vperm.xlu0 %3350, %v2913
        %v3352 = vpop.permute.xlu0 %3351
        %3355 = vset.pattern.permute.xlu0 0
        %3356 = vperm.xlu0 %3355, %v2914
        %v3357 = vpop.permute.xlu0 %3356
        %3360 = vset.pattern.permute.xlu0 0
        %3361 = vperm.xlu0 %3360, %v2915
        %v3362 = vpop.permute.xlu0 %3361
        %v3460 = vunpack.c.l.b16 %v3108
        %v3461 = vunpack.c.h.b16 %v3108
        %v3462 = vunpack.c.l.b16 %v3109
        %v3463 = vunpack.c.h.b16 %v3109
        %v3464 = vunpack.c.l.b16 %v3110
        %v3465 = vunpack.c.h.b16 %v3110
        %v3466 = vunpack.c.l.b16 %v3111
        %v3467 = vunpack.c.h.b16 %v3111
        %v3468 = vunpack.c.l.b16 %v3112
        %v3469 = vunpack.c.h.b16 %v3112
        %v3470 = vunpack.c.l.b16 %v3113
        %v3471 = vunpack.c.h.b16 %v3113
        %v3472 = vunpack.c.l.b16 %v3114
        %v3473 = vunpack.c.h.b16 %v3114
        %v3474 = vunpack.c.l.b16 %v3115
        %v3475 = vunpack.c.h.b16 %v3115
        %v3476 = vunpack.c.l.b16 %v3116
        %v3477 = vunpack.c.h.b16 %v3116
        %v3478 = vunpack.c.l.b16 %v3117
        %v3479 = vunpack.c.h.b16 %v3117
        %v3480 = vunpack.c.l.b16 %v3118
        %v3481 = vunpack.c.h.b16 %v3118
        %v3482 = vunpack.c.l.b16 %v3119
        %v3483 = vunpack.c.h.b16 %v3119
        %v3484 = vunpack.c.l.b16 %v3120
        %v3485 = vunpack.c.h.b16 %v3120
        %v3486 = vunpack.c.l.b16 %v3121
        %v3487 = vunpack.c.h.b16 %v3121
        %v3488 = vunpack.c.l.b16 %v3122
        %v3489 = vunpack.c.h.b16 %v3122
        %v3490 = vunpack.c.l.b16 %v3123
        %v3491 = vunpack.c.h.b16 %v3123
        %v3492 = vunpack.c.l.b16 %v3124
        %v3493 = vunpack.c.h.b16 %v3124
        %v3494 = vunpack.c.l.b16 %v3125
        %v3495 = vunpack.c.h.b16 %v3125
        %v3496 = vunpack.c.l.b16 %v3126
        %v3497 = vunpack.c.h.b16 %v3126
        %v3498 = vunpack.c.l.b16 %v3127
        %v3499 = vunpack.c.h.b16 %v3127
        %v3500 = vunpack.c.l.b16 %v3128
        %v3501 = vunpack.c.h.b16 %v3128
        %v3502 = vunpack.c.l.b16 %v3129
        %v3503 = vunpack.c.h.b16 %v3129
        %v3504 = vunpack.c.l.b16 %v3130
        %v3505 = vunpack.c.h.b16 %v3130
        %v3506 = vunpack.c.l.b16 %v3131
        %v3507 = vunpack.c.h.b16 %v3131
        %v3508 = vunpack.c.l.b16 %v3132
        %v3509 = vunpack.c.h.b16 %v3132
        %v3510 = vunpack.c.l.b16 %v3133
        %v3511 = vunpack.c.h.b16 %v3133
        %v3512 = vunpack.c.l.b16 %v3134
        %v3513 = vunpack.c.h.b16 %v3134
        %v3514 = vunpack.c.l.b16 %v3135
        %v3515 = vunpack.c.h.b16 %v3135
        %v3516 = vunpack.c.l.b16 %v3136
        %v3517 = vunpack.c.h.b16 %v3136
        %v3518 = vunpack.c.l.b16 %v3137
        %v3519 = vunpack.c.h.b16 %v3137
        %v3520 = vunpack.c.l.b16 %v3138
        %v3521 = vunpack.c.h.b16 %v3138
        %v3522 = vunpack.c.l.b16 %v3139
        %v3523 = vunpack.c.h.b16 %v3139
        %v3524 = vunpack.c.l.b16 %v3140
        %v3525 = vunpack.c.h.b16 %v3140
        %v3526 = vunpack.c.l.b16 %v3141
        %v3527 = vunpack.c.h.b16 %v3141
        %v3528 = vunpack.c.l.b16 %v3142
        %v3529 = vunpack.c.h.b16 %v3142
        %v3530 = vunpack.c.l.b16 %v3143
        %v3531 = vunpack.c.h.b16 %v3143
        %v3532 = vunpack.c.l.b16 %v3144
        %v3533 = vunpack.c.h.b16 %v3144
        %v3534 = vunpack.c.l.b16 %v3145
        %v3535 = vunpack.c.h.b16 %v3145
        %v3536 = vunpack.c.l.b16 %v3146
        %v3537 = vunpack.c.h.b16 %v3146
        %v3538 = vunpack.c.l.b16 %v3147
        %v3539 = vunpack.c.h.b16 %v3147
        %v3540 = vunpack.c.l.b16 %v3148
        %v3541 = vunpack.c.h.b16 %v3148
        %v3542 = vunpack.c.l.b16 %v3149
        %v3543 = vunpack.c.h.b16 %v3149
        %v3544 = vunpack.c.l.b16 %v3150
        %v3545 = vunpack.c.h.b16 %v3150
        %v3546 = vunpack.c.l.b16 %v3151
        %v3547 = vunpack.c.h.b16 %v3151
        %v3548 = vunpack.c.l.b16 %v3152
        %v3549 = vunpack.c.h.b16 %v3152
        %v3550 = vunpack.c.l.b16 %v3153
        %v3551 = vunpack.c.h.b16 %v3153
        %v3552 = vunpack.c.l.b16 %v3154
        %v3553 = vunpack.c.h.b16 %v3154
        %v3554 = vunpack.c.l.b16 %v3155
        %v3555 = vunpack.c.h.b16 %v3155
        %v3556 = vunpack.c.l.b16 %v3156
        %v3557 = vunpack.c.h.b16 %v3156
        %v3558 = vunpack.c.l.b16 %v3157
        %v3559 = vunpack.c.h.b16 %v3157
        %v3560 = vunpack.c.l.b16 %v3158
        %v3561 = vunpack.c.h.b16 %v3158
        %v3562 = vunpack.c.l.b16 %v3159
        %v3563 = vunpack.c.h.b16 %v3159
        %v3564 = vunpack.c.l.b16 %v3160
        %v3565 = vunpack.c.h.b16 %v3160
        %v3566 = vunpack.c.l.b16 %v3161
        %v3567 = vunpack.c.h.b16 %v3161
        %v3568 = vunpack.c.l.b16 %v3162
        %v3569 = vunpack.c.h.b16 %v3162
        %v3570 = vunpack.c.l.b16 %v3163
        %v3571 = vunpack.c.h.b16 %v3163
        %v3572 = vunpack.c.l.b16 %v3164
        %v3573 = vunpack.c.h.b16 %v3164
        %v3574 = vunpack.c.l.b16 %v3165
        %v3575 = vunpack.c.h.b16 %v3165
        %v3576 = vunpack.c.l.b16 %v3166
        %v3577 = vunpack.c.h.b16 %v3166
        %v3578 = vunpack.c.l.b16 %v3167
        %v3579 = vunpack.c.h.b16 %v3167
        %v3580 = vunpack.c.l.b16 %v3168
        %v3581 = vunpack.c.h.b16 %v3168
        %v3582 = vunpack.c.l.b16 %v3169
        %v3583 = vunpack.c.h.b16 %v3169
        %v3584 = vunpack.c.l.b16 %v3170
        %v3585 = vunpack.c.h.b16 %v3170
        %v3586 = vunpack.c.l.b16 %v3171
        %v3587 = vunpack.c.h.b16 %v3171
        %v3588 = vunpack.c.l.b16 %v3172
        %v3589 = vunpack.c.h.b16 %v3172
        %v3590 = vunpack.c.l.b16 %v3173
        %v3591 = vunpack.c.h.b16 %v3173
        %v3592 = vunpack.c.l.b16 %v3174
        %v3593 = vunpack.c.h.b16 %v3174
        %v3594 = vunpack.c.l.b16 %v3175
        %v3595 = vunpack.c.h.b16 %v3175
        %v3596 = vunpack.c.l.b16 %v3176
        %v3597 = vunpack.c.h.b16 %v3176
        %v3598 = vunpack.c.l.b16 %v3177
        %v3599 = vunpack.c.h.b16 %v3177
        %v3600 = vunpack.c.l.b16 %v3178
        %v3601 = vunpack.c.h.b16 %v3178
        %v3602 = vunpack.c.l.b16 %v3179
        %v3603 = vunpack.c.h.b16 %v3179
        %v3604 = vunpack.c.l.b16 %v3180
        %v3605 = vunpack.c.h.b16 %v3180
        %v3606 = vunpack.c.l.b16 %v3181
        %v3607 = vunpack.c.h.b16 %v3181
        %v3608 = vunpack.c.l.b16 %v3182
        %v3609 = vunpack.c.h.b16 %v3182
        %v3610 = vunpack.c.l.b16 %v3183
        %v3611 = vunpack.c.h.b16 %v3183
        %v3612 = vunpack.c.l.b16 %v3184
        %v3613 = vunpack.c.h.b16 %v3184
        %v3614 = vunpack.c.l.b16 %v3185
        %v3615 = vunpack.c.h.b16 %v3185
        %v3616 = vunpack.c.l.b16 %v3186
        %v3617 = vunpack.c.h.b16 %v3186
        %v3618 = vunpack.c.l.b16 %v3187
        %v3619 = vunpack.c.h.b16 %v3187
        %v3620 = vunpack.c.l.b16 %v3188
        %v3621 = vunpack.c.h.b16 %v3188
        %v3622 = vunpack.c.l.b16 %v3189
        %v3623 = vunpack.c.h.b16 %v3189
        %v3624 = vunpack.c.l.b16 %v3190
        %v3625 = vunpack.c.h.b16 %v3190
        %v3626 = vunpack.c.l.b16 %v3191
        %v3627 = vunpack.c.h.b16 %v3191
        %v3628 = vunpack.c.l.b16 %v3192
        %v3629 = vunpack.c.h.b16 %v3192
        %v3630 = vunpack.c.l.b16 %v3193
        %v3631 = vunpack.c.h.b16 %v3193
        %v3632 = vunpack.c.l.b16 %v3194
        %v3633 = vunpack.c.h.b16 %v3194
        %v3634 = vunpack.c.l.b16 %v3195
        %v3635 = vunpack.c.h.b16 %v3195
        %v3636 = vunpack.c.l.b16 %v3196
        %v3637 = vunpack.c.h.b16 %v3196
        %v3638 = vunpack.c.l.b16 %v3197
        %v3639 = vunpack.c.h.b16 %v3197
        %v3640 = vunpack.c.l.b16 %v3198
        %v3641 = vunpack.c.h.b16 %v3198
        %v3642 = vunpack.c.l.b16 %v3199
        %v3643 = vunpack.c.h.b16 %v3199
        %v3644 = vunpack.c.l.b16 %v3200
        %v3645 = vunpack.c.h.b16 %v3200
        %v3646 = vunpack.c.l.b16 %v3201
        %v3647 = vunpack.c.h.b16 %v3201
        %v3648 = vunpack.c.l.b16 %v3202
        %v3649 = vunpack.c.h.b16 %v3202
        %v3650 = vunpack.c.l.b16 %v3203
        %v3651 = vunpack.c.h.b16 %v3203
        %v3652 = vpack.c.b16 %v3466, %v3460
        %v3653 = vpack.c.b16 %v3467, %v3461
        %v3654 = vpack.c.b16 %v3468, %v3462
        %v3655 = vpack.c.b16 %v3469, %v3463
        %v3656 = vpack.c.b16 %v3470, %v3464
        %v3657 = vpack.c.b16 %v3471, %v3465
        %v3658 = vpack.c.b16 %v3478, %v3472
        %v3659 = vpack.c.b16 %v3479, %v3473
        %v3660 = vpack.c.b16 %v3480, %v3474
        %v3661 = vpack.c.b16 %v3481, %v3475
        %v3662 = vpack.c.b16 %v3482, %v3476
        %v3663 = vpack.c.b16 %v3483, %v3477
        %v3664 = vpack.c.b16 %v3490, %v3484
        %v3665 = vpack.c.b16 %v3491, %v3485
        %v3666 = vpack.c.b16 %v3492, %v3486
        %v3667 = vpack.c.b16 %v3493, %v3487
        %v3668 = vpack.c.b16 %v3494, %v3488
        %v3669 = vpack.c.b16 %v3495, %v3489
        %v3670 = vpack.c.b16 %v3502, %v3496
        %v3671 = vpack.c.b16 %v3503, %v3497
        %v3672 = vpack.c.b16 %v3504, %v3498
        %v3673 = vpack.c.b16 %v3505, %v3499
        %v3674 = vpack.c.b16 %v3506, %v3500
        %v3675 = vpack.c.b16 %v3507, %v3501
        %v3676 = vpack.c.b16 %v3514, %v3508
        %v3677 = vpack.c.b16 %v3515, %v3509
        %v3678 = vpack.c.b16 %v3516, %v3510
        %v3679 = vpack.c.b16 %v3517, %v3511
        %v3680 = vpack.c.b16 %v3518, %v3512
        %v3681 = vpack.c.b16 %v3519, %v3513
        %v3682 = vpack.c.b16 %v3526, %v3520
        %v3683 = vpack.c.b16 %v3527, %v3521
        %v3684 = vpack.c.b16 %v3528, %v3522
        %v3685 = vpack.c.b16 %v3529, %v3523
        %v3686 = vpack.c.b16 %v3530, %v3524
        %v3687 = vpack.c.b16 %v3531, %v3525
        %v3688 = vpack.c.b16 %v3538, %v3532
        %v3689 = vpack.c.b16 %v3539, %v3533
        %v3690 = vpack.c.b16 %v3540, %v3534
        %v3691 = vpack.c.b16 %v3541, %v3535
        %v3692 = vpack.c.b16 %v3542, %v3536
        %v3693 = vpack.c.b16 %v3543, %v3537
        %v3694 = vpack.c.b16 %v3550, %v3544
        %v3695 = vpack.c.b16 %v3551, %v3545
        %v3696 = vpack.c.b16 %v3552, %v3546
        %v3697 = vpack.c.b16 %v3553, %v3547
        %v3698 = vpack.c.b16 %v3554, %v3548
        %v3699 = vpack.c.b16 %v3555, %v3549
        %v3700 = vpack.c.b16 %v3562, %v3556
        %v3701 = vpack.c.b16 %v3563, %v3557
        %v3702 = vpack.c.b16 %v3564, %v3558
        %v3703 = vpack.c.b16 %v3565, %v3559
        %v3704 = vpack.c.b16 %v3566, %v3560
        %v3705 = vpack.c.b16 %v3567, %v3561
        %v3706 = vpack.c.b16 %v3574, %v3568
        %v3707 = vpack.c.b16 %v3575, %v3569
        %v3708 = vpack.c.b16 %v3576, %v3570
        %v3709 = vpack.c.b16 %v3577, %v3571
        %v3710 = vpack.c.b16 %v3578, %v3572
        %v3711 = vpack.c.b16 %v3579, %v3573
        %v3712 = vpack.c.b16 %v3586, %v3580
        %v3713 = vpack.c.b16 %v3587, %v3581
        %v3714 = vpack.c.b16 %v3588, %v3582
        %v3715 = vpack.c.b16 %v3589, %v3583
        %v3716 = vpack.c.b16 %v3590, %v3584
        %v3717 = vpack.c.b16 %v3591, %v3585
        %v3718 = vpack.c.b16 %v3598, %v3592
        %v3719 = vpack.c.b16 %v3599, %v3593
        %v3720 = vpack.c.b16 %v3600, %v3594
        %v3721 = vpack.c.b16 %v3601, %v3595
        %v3722 = vpack.c.b16 %v3602, %v3596
        %v3723 = vpack.c.b16 %v3603, %v3597
        %v3724 = vpack.c.b16 %v3610, %v3604
        %v3725 = vpack.c.b16 %v3611, %v3605
        %v3726 = vpack.c.b16 %v3612, %v3606
        %v3727 = vpack.c.b16 %v3613, %v3607
        %v3728 = vpack.c.b16 %v3614, %v3608
        %v3729 = vpack.c.b16 %v3615, %v3609
        %v3730 = vpack.c.b16 %v3622, %v3616
        %v3731 = vpack.c.b16 %v3623, %v3617
        %v3732 = vpack.c.b16 %v3624, %v3618
        %v3733 = vpack.c.b16 %v3625, %v3619
        %v3734 = vpack.c.b16 %v3626, %v3620
        %v3735 = vpack.c.b16 %v3627, %v3621
        %v3736 = vpack.c.b16 %v3634, %v3628
        %v3737 = vpack.c.b16 %v3635, %v3629
        %v3738 = vpack.c.b16 %v3636, %v3630
        %v3739 = vpack.c.b16 %v3637, %v3631
        %v3740 = vpack.c.b16 %v3638, %v3632
        %v3741 = vpack.c.b16 %v3639, %v3633
        %v3742 = vpack.c.b16 %v3646, %v3640
        %v3743 = vpack.c.b16 %v3647, %v3641
        %v3744 = vpack.c.b16 %v3648, %v3642
        %v3745 = vpack.c.b16 %v3649, %v3643
        %v3746 = vpack.c.b16 %v3650, %v3644
        %v3747 = vpack.c.b16 %v3651, %v3645
        %3844 = vmatprep.subr.bf16.mxu0 0
        %3845 = vmatpush1.bf16.msra.mxu0 %v3002
        %3846 = vmatprep.subr.bf16.mxu0 0
        %3847 = vmatpush1.bf16.msra.mxu0 %v2999
        %3848 = vmatprep.subr.bf16.mxu0 0
        %3849 = vmatpush1.bf16.msra.mxu0 %v2996
        %3850 = vmatprep.subr.bf16.mxu0 0
        %3851 = vmatpush1.bf16.msra.mxu0 %v2993
        %3852 = vmatprep.subr.bf16.mxu0 0
        %3853 = vmatpush1.bf16.msra.mxu0 %v2990
        %3854 = vmatprep.subr.bf16.mxu0 0
        %3855 = vmatpush1.bf16.msra.mxu0 %v2987
        %3856 = vmatprep.subr.bf16.mxu0 0
        %3857 = vmatpush1.bf16.msra.mxu0 %v2984
        %3858 = vmatprep.subr.bf16.mxu0 0
        %3859 = vmatpush1.bf16.msra.mxu0 %v2981
        %3860 = vmatprep.subr.bf16.mxu0 0
        %3861 = vmatpush2.bf16.msra.mxu0 %v3026
        %3862 = vmatprep.subr.bf16.mxu0 0
        %3863 = vmatpush2.bf16.msra.mxu0 %v3023
        %3864 = vmatprep.subr.bf16.mxu0 0
        %3865 = vmatpush2.bf16.msra.mxu0 %v3020
        %3866 = vmatprep.subr.bf16.mxu0 0
        %3867 = vmatpush2.bf16.msra.mxu0 %v3017
        %3868 = vmatprep.subr.bf16.mxu0 0
        %3869 = vmatpush2.bf16.msra.mxu0 %v3014
        %3870 = vmatprep.subr.bf16.mxu0 0
        %3871 = vmatpush2.bf16.msra.mxu0 %v3011
        %3872 = vmatprep.subr.bf16.mxu0 0
        %3873 = vmatpush2.bf16.msra.mxu0 %v3008
        %3874 = vmatprep.subr.bf16.mxu0 0
        %3875 = vmatpush2.bf16.msra.mxu0 %v3005
        %3876 = vmatprep.mubr.bf16.mxu0 %v3653
        %3877 = vmatmul.mubr.bf16.gmra.mxu0 %v3652
        %v3878 = vpop.f32.mrf.mxu0
        %v3879 = vadd.f32 %v3207, %v3878
        %v3880 = vpop.f32.mrf.mxu0
        %v3881 = vpop.f32.mrf.mxu0
        %v3882 = vadd.f32 %v3212, %v3881
        %v3883 = vpop.f32.mrf.mxu0
        %3884 = vmatprep.mubr.bf16.mxu0 %v3659
        %3885 = vmatmul.mubr.bf16.gmra.mxu0 %v3658
        %v3886 = vpop.f32.mrf.mxu0
        %v3887 = vadd.f32 %v3217, %v3886
        %v3888 = vpop.f32.mrf.mxu0
        %v3889 = vpop.f32.mrf.mxu0
        %v3890 = vadd.f32 %v3222, %v3889
        %v3891 = vpop.f32.mrf.mxu0
        %3892 = vmatprep.mubr.bf16.mxu0 %v3665
        %3893 = vmatmul.mubr.bf16.gmra.mxu0 %v3664
        %v3894 = vpop.f32.mrf.mxu0
        %v3895 = vadd.f32 %v3227, %v3894
        %v3896 = vpop.f32.mrf.mxu0
        %v3897 = vpop.f32.mrf.mxu0
        %v3898 = vadd.f32 %v3232, %v3897
        %v3899 = vpop.f32.mrf.mxu0
        %3900 = vmatprep.mubr.bf16.mxu0 %v3671
        %3901 = vmatmul.mubr.bf16.gmra.mxu0 %v3670
        %v3902 = vpop.f32.mrf.mxu0
        %v3903 = vadd.f32 %v3237, %v3902
        %v3904 = vpop.f32.mrf.mxu0
        %v3905 = vpop.f32.mrf.mxu0
        %v3906 = vadd.f32 %v3242, %v3905
        %v3907 = vpop.f32.mrf.mxu0
        %3908 = vmatprep.mubr.bf16.mxu0 %v3677
        %3909 = vmatmul.mubr.bf16.gmra.mxu0 %v3676
        %v3910 = vpop.f32.mrf.mxu0
        %v3911 = vadd.f32 %v3247, %v3910
        %v3912 = vpop.f32.mrf.mxu0
        %v3913 = vpop.f32.mrf.mxu0
        %v3914 = vadd.f32 %v3252, %v3913
        %v3915 = vpop.f32.mrf.mxu0
        %3916 = vmatprep.mubr.bf16.mxu0 %v3683
        %3917 = vmatmul.mubr.bf16.gmra.mxu0 %v3682
        %v3918 = vpop.f32.mrf.mxu0
        %v3919 = vadd.f32 %v3257, %v3918
        %v3920 = vpop.f32.mrf.mxu0
        %v3921 = vpop.f32.mrf.mxu0
        %v3922 = vadd.f32 %v3262, %v3921
        %v3923 = vpop.f32.mrf.mxu0
        %3924 = vmatprep.mubr.bf16.mxu0 %v3689
        %3925 = vmatmul.mubr.bf16.gmra.mxu0 %v3688
        %v3926 = vpop.f32.mrf.mxu0
        %v3927 = vadd.f32 %v3267, %v3926
        %v3928 = vpop.f32.mrf.mxu0
        %v3929 = vpop.f32.mrf.mxu0
        %v3930 = vadd.f32 %v3272, %v3929
        %v3931 = vpop.f32.mrf.mxu0
        %3932 = vmatprep.mubr.bf16.mxu0 %v3695
        %3933 = vmatmul.mubr.bf16.gmra.mxu0 %v3694
        %v3934 = vpop.f32.mrf.mxu0
        %v3935 = vadd.f32 %v3277, %v3934
        %v3936 = vpop.f32.mrf.mxu0
        %v3937 = vpop.f32.mrf.mxu0
        %v3938 = vadd.f32 %v3282, %v3937
        %v3939 = vpop.f32.mrf.mxu0
        %3940 = vmatprep.mubr.bf16.mxu0 %v3701
        %3941 = vmatmul.mubr.bf16.gmra.mxu0 %v3700
        %v3942 = vpop.f32.mrf.mxu0
        %v3943 = vadd.f32 %v3287, %v3942
        %v3944 = vpop.f32.mrf.mxu0
        %v3945 = vpop.f32.mrf.mxu0
        %v3946 = vadd.f32 %v3292, %v3945
        %v3947 = vpop.f32.mrf.mxu0
        %3948 = vmatprep.mubr.bf16.mxu0 %v3707
        %3949 = vmatmul.mubr.bf16.gmra.mxu0 %v3706
        %v3950 = vpop.f32.mrf.mxu0
        %v3951 = vadd.f32 %v3297, %v3950
        %v3952 = vpop.f32.mrf.mxu0
        %v3953 = vpop.f32.mrf.mxu0
        %v3954 = vadd.f32 %v3302, %v3953
        %v3955 = vpop.f32.mrf.mxu0
        %3956 = vmatprep.mubr.bf16.mxu0 %v3713
        %3957 = vmatmul.mubr.bf16.gmra.mxu0 %v3712
        %v3958 = vpop.f32.mrf.mxu0
        %v3959 = vadd.f32 %v3307, %v3958
        %v3960 = vpop.f32.mrf.mxu0
        %v3961 = vpop.f32.mrf.mxu0
        %v3962 = vadd.f32 %v3312, %v3961
        %v3963 = vpop.f32.mrf.mxu0
        %3964 = vmatprep.mubr.bf16.mxu0 %v3719
        %3965 = vmatmul.mubr.bf16.gmra.mxu0 %v3718
        %v3966 = vpop.f32.mrf.mxu0
        %v3967 = vadd.f32 %v3317, %v3966
        %v3968 = vpop.f32.mrf.mxu0
        %v3969 = vpop.f32.mrf.mxu0
        %v3970 = vadd.f32 %v3322, %v3969
        %v3971 = vpop.f32.mrf.mxu0
        %3972 = vmatprep.mubr.bf16.mxu0 %v3725
        %3973 = vmatmul.mubr.bf16.gmra.mxu0 %v3724
        %v3974 = vpop.f32.mrf.mxu0
        %v3975 = vadd.f32 %v3327, %v3974
        %v3976 = vpop.f32.mrf.mxu0
        %v3977 = vpop.f32.mrf.mxu0
        %v3978 = vadd.f32 %v3332, %v3977
        %v3979 = vpop.f32.mrf.mxu0
        %3980 = vmatprep.mubr.bf16.mxu0 %v3731
        %3981 = vmatmul.mubr.bf16.gmra.mxu0 %v3730
        %v3982 = vpop.f32.mrf.mxu0
        %v3983 = vadd.f32 %v3337, %v3982
        %v3984 = vpop.f32.mrf.mxu0
        %v3985 = vpop.f32.mrf.mxu0
        %v3986 = vadd.f32 %v3342, %v3985
        %v3987 = vpop.f32.mrf.mxu0
        %3988 = vmatprep.mubr.bf16.mxu0 %v3737
        %3989 = vmatmul.mubr.bf16.gmra.mxu0 %v3736
        %v3990 = vpop.f32.mrf.mxu0
        %v3991 = vadd.f32 %v3347, %v3990
        %v3992 = vpop.f32.mrf.mxu0
        %v3993 = vpop.f32.mrf.mxu0
        %v3994 = vadd.f32 %v3352, %v3993
        %v3995 = vpop.f32.mrf.mxu0
        %3996 = vmatprep.mubr.bf16.mxu0 %v3743
        %3997 = vmatmul.mubr.bf16.gmra.mxu0 %v3742
        %v3998 = vpop.f32.mrf.mxu0
        %v3999 = vadd.f32 %v3357, %v3998
        %v4000 = vpop.f32.mrf.mxu0
        %v4001 = vpop.f32.mrf.mxu0
        %v4002 = vadd.f32 %v3362, %v4001
        %v4003 = vpop.f32.mrf.mxu0
        %4004 = vdwg.mxu0
        %4005 = vmatprep.subr.bf16.mxu0 0
        %4006 = vmatpush1.bf16.msra.mxu0 %v2923
        %4007 = vmatprep.subr.bf16.mxu0 0
        %4008 = vmatpush1.bf16.msra.mxu0 %v2922
        %4009 = vmatprep.subr.bf16.mxu0 0
        %4010 = vmatpush1.bf16.msra.mxu0 %v2921
        %4011 = vmatprep.subr.bf16.mxu0 0
        %4012 = vmatpush1.bf16.msra.mxu0 %v2920
        %4013 = vmatprep.subr.bf16.mxu0 0
        %4014 = vmatpush1.bf16.msra.mxu0 %v2919
        %4015 = vmatprep.subr.bf16.mxu0 0
        %4016 = vmatpush1.bf16.msra.mxu0 %v2918
        %4017 = vmatprep.subr.bf16.mxu0 0
        %4018 = vmatpush1.bf16.msra.mxu0 %v2917
        %4019 = vmatprep.subr.bf16.mxu0 0
        %4020 = vmatpush1.bf16.msra.mxu0 %v2916
        %4021 = vmatprep.subr.bf16.mxu0 0
        %4022 = vmatpush2.bf16.msra.mxu0 %v2931
        %4023 = vmatprep.subr.bf16.mxu0 0
        %4024 = vmatpush2.bf16.msra.mxu0 %v2930
        %4025 = vmatprep.subr.bf16.mxu0 0
        %4026 = vmatpush2.bf16.msra.mxu0 %v2929
        %4027 = vmatprep.subr.bf16.mxu0 0
        %4028 = vmatpush2.bf16.msra.mxu0 %v2928
        %4029 = vmatprep.subr.bf16.mxu0 0
        %4030 = vmatpush2.bf16.msra.mxu0 %v2927
        %4031 = vmatprep.subr.bf16.mxu0 0
        %4032 = vmatpush2.bf16.msra.mxu0 %v2926
        %4033 = vmatprep.subr.bf16.mxu0 0
        %4034 = vmatpush2.bf16.msra.mxu0 %v2925
        %4035 = vmatprep.subr.bf16.mxu0 0
        %4036 = vmatpush2.bf16.msra.mxu0 %v2924
        %4037 = vmatprep.mubr.bf16.mxu0 %v3655
        %4038 = vmatmul.mubr.bf16.gmra.mxu0 %v3654
        %v4039 = vpop.f32.mrf.mxu0
        %v4040 = vadd.f32 %v3879, %v4039
        %v4041 = vpop.f32.mrf.mxu0
        %v4042 = vpop.f32.mrf.mxu0
        %v4043 = vadd.f32 %v3882, %v4042
        %v4044 = vpop.f32.mrf.mxu0
        %4045 = vmatprep.mubr.bf16.mxu0 %v3661
        %4046 = vmatmul.mubr.bf16.gmra.mxu0 %v3660
        %v4047 = vpop.f32.mrf.mxu0
        %v4048 = vadd.f32 %v3887, %v4047
        %v4049 = vpop.f32.mrf.mxu0
        %v4050 = vpop.f32.mrf.mxu0
        %v4051 = vadd.f32 %v3890, %v4050
        %v4052 = vpop.f32.mrf.mxu0
        %4053 = vmatprep.mubr.bf16.mxu0 %v3667
        %4054 = vmatmul.mubr.bf16.gmra.mxu0 %v3666
        %v4055 = vpop.f32.mrf.mxu0
        %v4056 = vadd.f32 %v3895, %v4055
        %v4057 = vpop.f32.mrf.mxu0
        %v4058 = vpop.f32.mrf.mxu0
        %v4059 = vadd.f32 %v3898, %v4058
        %v4060 = vpop.f32.mrf.mxu0
        %4061 = vmatprep.mubr.bf16.mxu0 %v3673
        %4062 = vmatmul.mubr.bf16.gmra.mxu0 %v3672
        %v4063 = vpop.f32.mrf.mxu0
        %v4064 = vadd.f32 %v3903, %v4063
        %v4065 = vpop.f32.mrf.mxu0
        %v4066 = vpop.f32.mrf.mxu0
        %v4067 = vadd.f32 %v3906, %v4066
        %v4068 = vpop.f32.mrf.mxu0
        %4069 = vmatprep.mubr.bf16.mxu0 %v3679
        %4070 = vmatmul.mubr.bf16.gmra.mxu0 %v3678
        %v4071 = vpop.f32.mrf.mxu0
        %v4072 = vadd.f32 %v3911, %v4071
        %v4073 = vpop.f32.mrf.mxu0
        %v4074 = vpop.f32.mrf.mxu0
        %v4075 = vadd.f32 %v3914, %v4074
        %v4076 = vpop.f32.mrf.mxu0
        %4077 = vmatprep.mubr.bf16.mxu0 %v3685
        %4078 = vmatmul.mubr.bf16.gmra.mxu0 %v3684
        %v4079 = vpop.f32.mrf.mxu0
        %v4080 = vadd.f32 %v3919, %v4079
        %v4081 = vpop.f32.mrf.mxu0
        %v4082 = vpop.f32.mrf.mxu0
        %v4083 = vadd.f32 %v3922, %v4082
        %v4084 = vpop.f32.mrf.mxu0
        %4085 = vmatprep.mubr.bf16.mxu0 %v3691
        %4086 = vmatmul.mubr.bf16.gmra.mxu0 %v3690
        %v4087 = vpop.f32.mrf.mxu0
        %v4088 = vadd.f32 %v3927, %v4087
        %v4089 = vpop.f32.mrf.mxu0
        %v4090 = vpop.f32.mrf.mxu0
        %v4091 = vadd.f32 %v3930, %v4090
        %v4092 = vpop.f32.mrf.mxu0
        %4093 = vmatprep.mubr.bf16.mxu0 %v3697
        %4094 = vmatmul.mubr.bf16.gmra.mxu0 %v3696
        %v4095 = vpop.f32.mrf.mxu0
        %v4096 = vadd.f32 %v3935, %v4095
        %v4097 = vpop.f32.mrf.mxu0
        %v4098 = vpop.f32.mrf.mxu0
        %v4099 = vadd.f32 %v3938, %v4098
        %v4100 = vpop.f32.mrf.mxu0
        %4101 = vmatprep.mubr.bf16.mxu0 %v3703
        %4102 = vmatmul.mubr.bf16.gmra.mxu0 %v3702
        %v4103 = vpop.f32.mrf.mxu0
        %v4104 = vadd.f32 %v3943, %v4103
        %v4105 = vpop.f32.mrf.mxu0
        %v4106 = vpop.f32.mrf.mxu0
        %v4107 = vadd.f32 %v3946, %v4106
        %v4108 = vpop.f32.mrf.mxu0
        %4109 = vmatprep.mubr.bf16.mxu0 %v3709
        %4110 = vmatmul.mubr.bf16.gmra.mxu0 %v3708
        %v4111 = vpop.f32.mrf.mxu0
        %v4112 = vadd.f32 %v3951, %v4111
        %v4113 = vpop.f32.mrf.mxu0
        %v4114 = vpop.f32.mrf.mxu0
        %v4115 = vadd.f32 %v3954, %v4114
        %v4116 = vpop.f32.mrf.mxu0
        %4117 = vmatprep.mubr.bf16.mxu0 %v3715
        %4118 = vmatmul.mubr.bf16.gmra.mxu0 %v3714
        %v4119 = vpop.f32.mrf.mxu0
        %v4120 = vadd.f32 %v3959, %v4119
        %v4121 = vpop.f32.mrf.mxu0
        %v4122 = vpop.f32.mrf.mxu0
        %v4123 = vadd.f32 %v3962, %v4122
        %v4124 = vpop.f32.mrf.mxu0
        %4125 = vmatprep.mubr.bf16.mxu0 %v3721
        %4126 = vmatmul.mubr.bf16.gmra.mxu0 %v3720
        %v4127 = vpop.f32.mrf.mxu0
        %v4128 = vadd.f32 %v3967, %v4127
        %v4129 = vpop.f32.mrf.mxu0
        %v4130 = vpop.f32.mrf.mxu0
        %v4131 = vadd.f32 %v3970, %v4130
        %v4132 = vpop.f32.mrf.mxu0
        %4133 = vmatprep.mubr.bf16.mxu0 %v3727
        %4134 = vmatmul.mubr.bf16.gmra.mxu0 %v3726
        %v4135 = vpop.f32.mrf.mxu0
        %v4136 = vadd.f32 %v3975, %v4135
        %v4137 = vpop.f32.mrf.mxu0
        %v4138 = vpop.f32.mrf.mxu0
        %v4139 = vadd.f32 %v3978, %v4138
        %v4140 = vpop.f32.mrf.mxu0
        %4141 = vmatprep.mubr.bf16.mxu0 %v3733
        %4142 = vmatmul.mubr.bf16.gmra.mxu0 %v3732
        %v4143 = vpop.f32.mrf.mxu0
        %v4144 = vadd.f32 %v3983, %v4143
        %v4145 = vpop.f32.mrf.mxu0
        %v4146 = vpop.f32.mrf.mxu0
        %v4147 = vadd.f32 %v3986, %v4146
        %v4148 = vpop.f32.mrf.mxu0
        %4149 = vmatprep.mubr.bf16.mxu0 %v3739
        %4150 = vmatmul.mubr.bf16.gmra.mxu0 %v3738
        %v4151 = vpop.f32.mrf.mxu0
        %v4152 = vadd.f32 %v3991, %v4151
        %v4153 = vpop.f32.mrf.mxu0
        %v4154 = vpop.f32.mrf.mxu0
        %v4155 = vadd.f32 %v3994, %v4154
        %v4156 = vpop.f32.mrf.mxu0
        %4157 = vmatprep.mubr.bf16.mxu0 %v3745
        %4158 = vmatmul.mubr.bf16.gmra.mxu0 %v3744
        %v4159 = vpop.f32.mrf.mxu0
        %v4160 = vadd.f32 %v3999, %v4159
        %v4161 = vpop.f32.mrf.mxu0
        %v4162 = vpop.f32.mrf.mxu0
        %v4163 = vadd.f32 %v4002, %v4162
        %v4164 = vpop.f32.mrf.mxu0
        %4165 = vdwg.mxu0
        %4166 = vmatprep.subr.bf16.mxu0 0
        %4167 = vmatpush1.bf16.msra.mxu0 %v3082
        %4168 = vmatprep.subr.bf16.mxu0 0
        %4169 = vmatpush1.bf16.msra.mxu0 %v3079
        %4170 = vmatprep.subr.bf16.mxu0 0
        %4171 = vmatpush1.bf16.msra.mxu0 %v3076
        %4172 = vmatprep.subr.bf16.mxu0 0
        %4173 = vmatpush1.bf16.msra.mxu0 %v3073
        %4174 = vmatprep.subr.bf16.mxu0 0
        %4175 = vmatpush1.bf16.msra.mxu0 %v3070
        %4176 = vmatprep.subr.bf16.mxu0 0
        %4177 = vmatpush1.bf16.msra.mxu0 %v3067
        %4178 = vmatprep.subr.bf16.mxu0 0
        %4179 = vmatpush1.bf16.msra.mxu0 %v3064
        %4180 = vmatprep.subr.bf16.mxu0 0
        %4181 = vmatpush1.bf16.msra.mxu0 %v3061
        %4182 = vmatprep.subr.bf16.mxu0 0
        %4183 = vmatpush2.bf16.msra.mxu0 %v3106
        %4184 = vmatprep.subr.bf16.mxu0 0
        %4185 = vmatpush2.bf16.msra.mxu0 %v3103
        %4186 = vmatprep.subr.bf16.mxu0 0
        %4187 = vmatpush2.bf16.msra.mxu0 %v3100
        %4188 = vmatprep.subr.bf16.mxu0 0
        %4189 = vmatpush2.bf16.msra.mxu0 %v3097
        %4190 = vmatprep.subr.bf16.mxu0 0
        %4191 = vmatpush2.bf16.msra.mxu0 %v3094
        %4192 = vmatprep.subr.bf16.mxu0 0
        %4193 = vmatpush2.bf16.msra.mxu0 %v3091
        %4194 = vmatprep.subr.bf16.mxu0 0
        %4195 = vmatpush2.bf16.msra.mxu0 %v3088
        %4196 = vmatprep.subr.bf16.mxu0 0
        %4197 = vmatpush2.bf16.msra.mxu0 %v3085
        %4198 = vmatprep.mubr.bf16.mxu0 %v3657
        %4199 = vmatmul.mubr.bf16.gmra.mxu0 %v3656
        %v4200 = vpop.f32.mrf.mxu0
        %v4201 = vadd.f32 %v4040, %v4200
        %v4202 = vpop.f32.mrf.mxu0
        %v4203 = vpop.f32.mrf.mxu0
        %v4204 = vadd.f32 %v4043, %v4203
        %v4205 = vpop.f32.mrf.mxu0
        %4206 = vmatprep.mubr.bf16.mxu0 %v3663
        %4207 = vmatmul.mubr.bf16.gmra.mxu0 %v3662
        %v4208 = vpop.f32.mrf.mxu0
        %v4209 = vadd.f32 %v4048, %v4208
        %v4210 = vpop.f32.mrf.mxu0
        %v4211 = vpop.f32.mrf.mxu0
        %v4212 = vadd.f32 %v4051, %v4211
        %v4213 = vpop.f32.mrf.mxu0
        %4214 = vmatprep.mubr.bf16.mxu0 %v3669
        %4215 = vmatmul.mubr.bf16.gmra.mxu0 %v3668
        %v4216 = vpop.f32.mrf.mxu0
        %v4217 = vadd.f32 %v4056, %v4216
        %v4218 = vpop.f32.mrf.mxu0
        %v4219 = vpop.f32.mrf.mxu0
        %v4220 = vadd.f32 %v4059, %v4219
        %v4221 = vpop.f32.mrf.mxu0
        %4222 = vmatprep.mubr.bf16.mxu0 %v3675
        %4223 = vmatmul.mubr.bf16.gmra.mxu0 %v3674
        %v4224 = vpop.f32.mrf.mxu0
        %v4225 = vadd.f32 %v4064, %v4224
        %v4226 = vpop.f32.mrf.mxu0
        %v4227 = vpop.f32.mrf.mxu0
        %v4228 = vadd.f32 %v4067, %v4227
        %v4229 = vpop.f32.mrf.mxu0
        %4230 = vmatprep.mubr.bf16.mxu0 %v3681
        %4231 = vmatmul.mubr.bf16.gmra.mxu0 %v3680
        %v4232 = vpop.f32.mrf.mxu0
        %v4233 = vadd.f32 %v4072, %v4232
        %v4234 = vpop.f32.mrf.mxu0
        %v4235 = vpop.f32.mrf.mxu0
        %v4236 = vadd.f32 %v4075, %v4235
        %v4237 = vpop.f32.mrf.mxu0
        %4238 = vmatprep.mubr.bf16.mxu0 %v3687
        %4239 = vmatmul.mubr.bf16.gmra.mxu0 %v3686
        %v4240 = vpop.f32.mrf.mxu0
        %v4241 = vadd.f32 %v4080, %v4240
        %v4242 = vpop.f32.mrf.mxu0
        %v4243 = vpop.f32.mrf.mxu0
        %v4244 = vadd.f32 %v4083, %v4243
        %v4245 = vpop.f32.mrf.mxu0
        %4246 = vmatprep.mubr.bf16.mxu0 %v3693
        %4247 = vmatmul.mubr.bf16.gmra.mxu0 %v3692
        %v4248 = vpop.f32.mrf.mxu0
        %v4249 = vadd.f32 %v4088, %v4248
        %v4250 = vpop.f32.mrf.mxu0
        %v4251 = vpop.f32.mrf.mxu0
        %v4252 = vadd.f32 %v4091, %v4251
        %v4253 = vpop.f32.mrf.mxu0
        %4254 = vmatprep.mubr.bf16.mxu0 %v3699
        %4255 = vmatmul.mubr.bf16.gmra.mxu0 %v3698
        %v4256 = vpop.f32.mrf.mxu0
        %v4257 = vadd.f32 %v4096, %v4256
        %v4258 = vpop.f32.mrf.mxu0
        %v4259 = vpop.f32.mrf.mxu0
        %v4260 = vadd.f32 %v4099, %v4259
        %v4261 = vpop.f32.mrf.mxu0
        %4262 = vmatprep.mubr.bf16.mxu0 %v3705
        %4263 = vmatmul.mubr.bf16.gmra.mxu0 %v3704
        %v4264 = vpop.f32.mrf.mxu0
        %v4265 = vadd.f32 %v4104, %v4264
        %v4266 = vpop.f32.mrf.mxu0
        %v4267 = vpop.f32.mrf.mxu0
        %v4268 = vadd.f32 %v4107, %v4267
        %v4269 = vpop.f32.mrf.mxu0
        %4270 = vmatprep.mubr.bf16.mxu0 %v3711
        %4271 = vmatmul.mubr.bf16.gmra.mxu0 %v3710
        %v4272 = vpop.f32.mrf.mxu0
        %v4273 = vadd.f32 %v4112, %v4272
        %v4274 = vpop.f32.mrf.mxu0
        %v4275 = vpop.f32.mrf.mxu0
        %v4276 = vadd.f32 %v4115, %v4275
        %v4277 = vpop.f32.mrf.mxu0
        %4278 = vmatprep.mubr.bf16.mxu0 %v3717
        %4279 = vmatmul.mubr.bf16.gmra.mxu0 %v3716
        %v4280 = vpop.f32.mrf.mxu0
        %v4281 = vadd.f32 %v4120, %v4280
        %v4282 = vpop.f32.mrf.mxu0
        %v4283 = vpop.f32.mrf.mxu0
        %v4284 = vadd.f32 %v4123, %v4283
        %v4285 = vpop.f32.mrf.mxu0
        %4286 = vmatprep.mubr.bf16.mxu0 %v3723
        %4287 = vmatmul.mubr.bf16.gmra.mxu0 %v3722
        %v4288 = vpop.f32.mrf.mxu0
        %v4289 = vadd.f32 %v4128, %v4288
        %v4290 = vpop.f32.mrf.mxu0
        %v4291 = vpop.f32.mrf.mxu0
        %v4292 = vadd.f32 %v4131, %v4291
        %v4293 = vpop.f32.mrf.mxu0
        %4294 = vmatprep.mubr.bf16.mxu0 %v3729
        %4295 = vmatmul.mubr.bf16.gmra.mxu0 %v3728
        %v4296 = vpop.f32.mrf.mxu0
        %v4297 = vadd.f32 %v4136, %v4296
        %v4298 = vpop.f32.mrf.mxu0
        %v4299 = vpop.f32.mrf.mxu0
        %v4300 = vadd.f32 %v4139, %v4299
        %v4301 = vpop.f32.mrf.mxu0
        %4302 = vmatprep.mubr.bf16.mxu0 %v3735
        %4303 = vmatmul.mubr.bf16.gmra.mxu0 %v3734
        %v4304 = vpop.f32.mrf.mxu0
        %v4305 = vadd.f32 %v4144, %v4304
        %v4306 = vpop.f32.mrf.mxu0
        %v4307 = vpop.f32.mrf.mxu0
        %v4308 = vadd.f32 %v4147, %v4307
        %v4309 = vpop.f32.mrf.mxu0
        %4310 = vmatprep.mubr.bf16.mxu0 %v3741
        %4311 = vmatmul.mubr.bf16.gmra.mxu0 %v3740
        %v4312 = vpop.f32.mrf.mxu0
        %v4313 = vadd.f32 %v4152, %v4312
        %v4314 = vpop.f32.mrf.mxu0
        %v4315 = vpop.f32.mrf.mxu0
        %v4316 = vadd.f32 %v4155, %v4315
        %v4317 = vpop.f32.mrf.mxu0
        %4318 = vmatprep.mubr.bf16.mxu0 %v3747
        %4319 = vmatmul.mubr.bf16.gmra.mxu0 %v3746
        %v4320 = vpop.f32.mrf.mxu0
        %v4321 = vadd.f32 %v4160, %v4320
        %v4322 = vpop.f32.mrf.mxu0
        %v4323 = vpop.f32.mrf.mxu0
        %v4324 = vadd.f32 %v4163, %v4323
        %v4325 = vpop.f32.mrf.mxu0
        %4326 = vdwg.mxu0
        %v4327 = vld [vmem:[%s10] sm:$0xf]
        %v4328 = vld [vmem:[%s10 + $0x4] sm:$0xf]
        %v4329 = vld [vmem:[%s10 + $0x8] sm:$0xf]
        %v4330 = vld [vmem:[%s10 + $0xc] sm:$0xf]
        %v4331 = vld [vmem:[%s10 + $0x10] sm:$0xf]
        %v4332 = vld [vmem:[%s10 + $0x14] sm:$0xf]
        %v4333 = vld [vmem:[%s10 + $0x18] sm:$0xf]
        %v4334 = vld [vmem:[%s10 + $0x1c] sm:$0xf]
        %v4335 = vld [vmem:[%s10 + $0x20] sm:$0xf]
        %v4336 = vld [vmem:[%s10 + $0x24] sm:$0xf]
        %v4337 = vld [vmem:[%s10 + $0x28] sm:$0xf]
        %v4338 = vld [vmem:[%s10 + $0x2c] sm:$0xf]
        %v4339 = vld [vmem:[%s10 + $0x30] sm:$0xf]
        %v4340 = vld [vmem:[%s10 + $0x34] sm:$0xf]
        %v4341 = vld [vmem:[%s10 + $0x38] sm:$0xf]
        %v4342 = vld [vmem:[%s10 + $0x3c] sm:$0xf]
        %v4343 = vld [vmem:[%s10 + $0x40] sm:$0xf]
        %v4344 = vld [vmem:[%s10 + $0x44] sm:$0xf]
        %v4345 = vld [vmem:[%s10 + $0x48] sm:$0xf]
        %v4346 = vld [vmem:[%s10 + $0x4c] sm:$0xf]
        %v4347 = vld [vmem:[%s10 + $0x50] sm:$0xf]
        %v4348 = vld [vmem:[%s10 + $0x54] sm:$0xf]
        %v4349 = vld [vmem:[%s10 + $0x58] sm:$0xf]
        %v4350 = vld [vmem:[%s10 + $0x5c] sm:$0xf]
        %v4351 = vld [vmem:[%s10 + $0x60] sm:$0xf]
        %v4352 = vld [vmem:[%s10 + $0x64] sm:$0xf]
        %v4353 = vld [vmem:[%s10 + $0x68] sm:$0xf]
        %v4354 = vld [vmem:[%s10 + $0x6c] sm:$0xf]
        %v4355 = vld [vmem:[%s10 + $0x70] sm:$0xf]
        %v4356 = vld [vmem:[%s10 + $0x74] sm:$0xf]
        %v4357 = vld [vmem:[%s10 + $0x78] sm:$0xf]
        %v4358 = vld [vmem:[%s10 + $0x7c] sm:$0xf]
        %v4359 = vpack.c.bf16 %v434, %v433
        %v4360 = vpack.c.bf16 %v436, %v435
        %v4361 = vpack.c.bf16 %v438, %v437
        %v4362 = vpack.c.bf16 %v440, %v439
        %v4363 = vpack.c.bf16 %v442, %v441
        %v4364 = vpack.c.bf16 %v444, %v443
        %v4365 = vpack.c.bf16 %v446, %v445
        %v4366 = vpack.c.bf16 %v448, %v447
        %v4367 = vld [vmem:[%s11] sm:$0xff]
        %v4368 = vld [vmem:[%s11 + $0x8] sm:$0xff]
        %v4369 = vld [vmem:[%s11 + $0x10] sm:$0xff]
        %v4370 = vld [vmem:[%s11 + $0x18] sm:$0xff]
        %v4371 = vld [vmem:[%s11 + $0x20] sm:$0xff]
        %v4372 = vld [vmem:[%s11 + $0x28] sm:$0xff]
        %v4373 = vld [vmem:[%s11 + $0x30] sm:$0xff]
        %v4374 = vld [vmem:[%s11 + $0x38] sm:$0xff]
        %v4375 = vld [vmem:[%s11 + $0x40] sm:$0xff]
        %v4376 = vld [vmem:[%s11 + $0x48] sm:$0xff]
        %v4377 = vld [vmem:[%s11 + $0x50] sm:$0xff]
        %v4378 = vld [vmem:[%s11 + $0x58] sm:$0xff]
        %v4379 = vld [vmem:[%s11 + $0x60] sm:$0xff]
        %v4380 = vld [vmem:[%s11 + $0x68] sm:$0xff]
        %v4381 = vld [vmem:[%s11 + $0x70] sm:$0xff]
        %v4382 = vld [vmem:[%s11 + $0x78] sm:$0xff]
        %v4383 = vld [vmem:[%s11 + $0x80] sm:$0xff]
        %v4384 = vld [vmem:[%s11 + $0x88] sm:$0xff]
        %v4385 = vld [vmem:[%s11 + $0x90] sm:$0xff]
        %v4386 = vld [vmem:[%s11 + $0x98] sm:$0xff]
        %v4387 = vld [vmem:[%s11 + $0xa0] sm:$0xff]
        %v4388 = vld [vmem:[%s11 + $0xa8] sm:$0xff]
        %v4389 = vld [vmem:[%s11 + $0xb0] sm:$0xff]
        %v4390 = vld [vmem:[%s11 + $0xb8] sm:$0xff]
        %v4391 = vld [vmem:[%s11 + $0xc0] sm:$0xff]
        %v4392 = vld [vmem:[%s11 + $0xc8] sm:$0xff]
        %v4393 = vld [vmem:[%s11 + $0xd0] sm:$0xff]
        %v4394 = vld [vmem:[%s11 + $0xd8] sm:$0xff]
        %v4395 = vld [vmem:[%s11 + $0xe0] sm:$0xff]
        %v4396 = vld [vmem:[%s11 + $0xe8] sm:$0xff]
        %v4397 = vld [vmem:[%s11 + $0xf0] sm:$0xff]
        %v4398 = vld [vmem:[%s11 + $0xf8] sm:$0xff]
        %4400 = vset.pattern.permute.xlu0 0
        %4401 = vperm.xlu0 %4400, %v4367
        %v4402 = vpop.permute.xlu0 %4401
        %4405 = vset.pattern.permute.xlu0 0
        %4406 = vperm.xlu0 %4405, %v4368
        %v4407 = vpop.permute.xlu0 %4406
        %4410 = vset.pattern.permute.xlu0 0
        %4411 = vperm.xlu0 %4410, %v4369
        %v4412 = vpop.permute.xlu0 %4411
        %4415 = vset.pattern.permute.xlu0 0
        %4416 = vperm.xlu0 %4415, %v4370
        %v4417 = vpop.permute.xlu0 %4416
        %4420 = vset.pattern.permute.xlu0 0
        %4421 = vperm.xlu0 %4420, %v4371
        %v4422 = vpop.permute.xlu0 %4421
        %4425 = vset.pattern.permute.xlu0 0
        %4426 = vperm.xlu0 %4425, %v4372
        %v4427 = vpop.permute.xlu0 %4426
        %4430 = vset.pattern.permute.xlu0 0
        %4431 = vperm.xlu0 %4430, %v4373
        %v4432 = vpop.permute.xlu0 %4431
        %4435 = vset.pattern.permute.xlu0 0
        %4436 = vperm.xlu0 %4435, %v4374
        %v4437 = vpop.permute.xlu0 %4436
        %4440 = vset.pattern.permute.xlu0 0
        %4441 = vperm.xlu0 %4440, %v4375
        %v4442 = vpop.permute.xlu0 %4441
        %4445 = vset.pattern.permute.xlu0 0
        %4446 = vperm.xlu0 %4445, %v4376
        %v4447 = vpop.permute.xlu0 %4446
        %4450 = vset.pattern.permute.xlu0 0
        %4451 = vperm.xlu0 %4450, %v4377
        %v4452 = vpop.permute.xlu0 %4451
        %4455 = vset.pattern.permute.xlu0 0
        %4456 = vperm.xlu0 %4455, %v4378
        %v4457 = vpop.permute.xlu0 %4456
        %4460 = vset.pattern.permute.xlu0 0
        %4461 = vperm.xlu0 %4460, %v4379
        %v4462 = vpop.permute.xlu0 %4461
        %4465 = vset.pattern.permute.xlu0 0
        %4466 = vperm.xlu0 %4465, %v4380
        %v4467 = vpop.permute.xlu0 %4466
        %4470 = vset.pattern.permute.xlu0 0
        %4471 = vperm.xlu0 %4470, %v4381
        %v4472 = vpop.permute.xlu0 %4471
        %4475 = vset.pattern.permute.xlu0 0
        %4476 = vperm.xlu0 %4475, %v4382
        %v4477 = vpop.permute.xlu0 %4476
        %4480 = vset.pattern.permute.xlu0 0
        %4481 = vperm.xlu0 %4480, %v4383
        %v4482 = vpop.permute.xlu0 %4481
        %4485 = vset.pattern.permute.xlu0 0
        %4486 = vperm.xlu0 %4485, %v4384
        %v4487 = vpop.permute.xlu0 %4486
        %4490 = vset.pattern.permute.xlu0 0
        %4491 = vperm.xlu0 %4490, %v4385
        %v4492 = vpop.permute.xlu0 %4491
        %4495 = vset.pattern.permute.xlu0 0
        %4496 = vperm.xlu0 %4495, %v4386
        %v4497 = vpop.permute.xlu0 %4496
        %4500 = vset.pattern.permute.xlu0 0
        %4501 = vperm.xlu0 %4500, %v4387
        %v4502 = vpop.permute.xlu0 %4501
        %4505 = vset.pattern.permute.xlu0 0
        %4506 = vperm.xlu0 %4505, %v4388
        %v4507 = vpop.permute.xlu0 %4506
        %4510 = vset.pattern.permute.xlu0 0
        %4511 = vperm.xlu0 %4510, %v4389
        %v4512 = vpop.permute.xlu0 %4511
        %4515 = vset.pattern.permute.xlu0 0
        %4516 = vperm.xlu0 %4515, %v4390
        %v4517 = vpop.permute.xlu0 %4516
        %4520 = vset.pattern.permute.xlu0 0
        %4521 = vperm.xlu0 %4520, %v4391
        %v4522 = vpop.permute.xlu0 %4521
        %4525 = vset.pattern.permute.xlu0 0
        %4526 = vperm.xlu0 %4525, %v4392
        %v4527 = vpop.permute.xlu0 %4526
        %4530 = vset.pattern.permute.xlu0 0
        %4531 = vperm.xlu0 %4530, %v4393
        %v4532 = vpop.permute.xlu0 %4531
        %4535 = vset.pattern.permute.xlu0 0
        %4536 = vperm.xlu0 %4535, %v4394
        %v4537 = vpop.permute.xlu0 %4536
        %4540 = vset.pattern.permute.xlu0 0
        %4541 = vperm.xlu0 %4540, %v4395
        %v4542 = vpop.permute.xlu0 %4541
        %4545 = vset.pattern.permute.xlu0 0
        %4546 = vperm.xlu0 %4545, %v4396
        %v4547 = vpop.permute.xlu0 %4546
        %4550 = vset.pattern.permute.xlu0 0
        %4551 = vperm.xlu0 %4550, %v4397
        %v4552 = vpop.permute.xlu0 %4551
        %4555 = vset.pattern.permute.xlu0 0
        %4556 = vperm.xlu0 %4555, %v4398
        %v4557 = vpop.permute.xlu0 %4556
        %v4591 = vunpack.c.l.b16 %v4327
        %v4592 = vunpack.c.l.b16 %v4328
        %v4593 = vunpack.c.l.b16 %v4329
        %v4594 = vunpack.c.l.b16 %v4330
        %v4595 = vunpack.c.l.b16 %v4331
        %v4596 = vunpack.c.l.b16 %v4332
        %v4597 = vunpack.c.l.b16 %v4333
        %v4598 = vunpack.c.l.b16 %v4334
        %v4599 = vunpack.c.l.b16 %v4335
        %v4600 = vunpack.c.l.b16 %v4336
        %v4601 = vunpack.c.l.b16 %v4337
        %v4602 = vunpack.c.l.b16 %v4338
        %v4603 = vunpack.c.l.b16 %v4339
        %v4604 = vunpack.c.l.b16 %v4340
        %v4605 = vunpack.c.l.b16 %v4341
        %v4606 = vunpack.c.l.b16 %v4342
        %v4607 = vunpack.c.l.b16 %v4343
        %v4608 = vunpack.c.l.b16 %v4344
        %v4609 = vunpack.c.l.b16 %v4345
        %v4610 = vunpack.c.l.b16 %v4346
        %v4611 = vunpack.c.l.b16 %v4347
        %v4612 = vunpack.c.l.b16 %v4348
        %v4613 = vunpack.c.l.b16 %v4349
        %v4614 = vunpack.c.l.b16 %v4350
        %v4615 = vunpack.c.l.b16 %v4351
        %v4616 = vunpack.c.l.b16 %v4352
        %v4617 = vunpack.c.l.b16 %v4353
        %v4618 = vunpack.c.l.b16 %v4354
        %v4619 = vunpack.c.l.b16 %v4355
        %v4620 = vunpack.c.l.b16 %v4356
        %v4621 = vunpack.c.l.b16 %v4357
        %v4622 = vunpack.c.l.b16 %v4358
        %v4623 = vpack.c.b16 %v4592, %v4591
        %v4624 = vpack.c.b16 %v4594, %v4593
        %v4625 = vpack.c.b16 %v4596, %v4595
        %v4626 = vpack.c.b16 %v4598, %v4597
        %v4627 = vpack.c.b16 %v4600, %v4599
        %v4628 = vpack.c.b16 %v4602, %v4601
        %v4629 = vpack.c.b16 %v4604, %v4603
        %v4630 = vpack.c.b16 %v4606, %v4605
        %v4631 = vpack.c.b16 %v4608, %v4607
        %v4632 = vpack.c.b16 %v4610, %v4609
        %v4633 = vpack.c.b16 %v4612, %v4611
        %v4634 = vpack.c.b16 %v4614, %v4613
        %v4635 = vpack.c.b16 %v4616, %v4615
        %v4636 = vpack.c.b16 %v4618, %v4617
        %v4637 = vpack.c.b16 %v4620, %v4619
        %v4638 = vpack.c.b16 %v4622, %v4621
        %4655 = vmatprep.subr.bf16.mxu0 0
        %4656 = vmatpush1.bf16.msra.mxu0 %v4366
        %4657 = vmatprep.subr.bf16.mxu0 0
        %4658 = vmatpush1.bf16.msra.mxu0 %v4365
        %4659 = vmatprep.subr.bf16.mxu0 0
        %4660 = vmatpush1.bf16.msra.mxu0 %v4364
        %4661 = vmatprep.subr.bf16.mxu0 0
        %4662 = vmatpush1.bf16.msra.mxu0 %v4363
        %4663 = vmatprep.subr.bf16.mxu0 0
        %4664 = vmatpush1.bf16.msra.mxu0 %v4362
        %4665 = vmatprep.subr.bf16.mxu0 0
        %4666 = vmatpush1.bf16.msra.mxu0 %v4361
        %4667 = vmatprep.subr.bf16.mxu0 0
        %4668 = vmatpush1.bf16.msra.mxu0 %v4360
        %4669 = vmatprep.subr.bf16.mxu0 0
        %4670 = vmatpush1.bf16.msra.mxu0 %v4359
        %4671 = vmatprep.subr.bf16.mxu0 0
        %4672 = vmatpush2.bf16.msra.mxu0 0
        %4673 = vmatprep.subr.bf16.mxu0 0
        %4674 = vmatpush2.bf16.msra.mxu0 0
        %4675 = vmatprep.subr.bf16.mxu0 0
        %4676 = vmatpush2.bf16.msra.mxu0 0
        %4677 = vmatprep.subr.bf16.mxu0 0
        %4678 = vmatpush2.bf16.msra.mxu0 0
        %4679 = vmatprep.subr.bf16.mxu0 0
        %4680 = vmatpush2.bf16.msra.mxu0 0
        %4681 = vmatprep.subr.bf16.mxu0 0
        %4682 = vmatpush2.bf16.msra.mxu0 0
        %4683 = vmatprep.subr.bf16.mxu0 0
        %4684 = vmatpush2.bf16.msra.mxu0 0
        %4685 = vmatprep.subr.bf16.mxu0 0
        %4686 = vmatpush2.bf16.msra.mxu0 0
        %4687 = vmatprep.mubr.bf16.mxu0 0
        %4688 = vmatmul.mubr.bf16.gmra.mxu0 %v4623
        %v4689 = vpop.f32.mrf.mxu0
        %v4690 = vadd.f32 %v4402, %v4689
        %v4691 = vpop.f32.mrf.mxu0
        %v4692 = vpop.f32.mrf.mxu0
        %v4693 = vadd.f32 %v4407, %v4692
        %v4694 = vpop.f32.mrf.mxu0
        %4695 = vmatprep.mubr.bf16.mxu0 0
        %4696 = vmatmul.mubr.bf16.gmra.mxu0 %v4624
        %v4697 = vpop.f32.mrf.mxu0
        %v4698 = vadd.f32 %v4412, %v4697
        %v4699 = vpop.f32.mrf.mxu0
        %v4700 = vpop.f32.mrf.mxu0
        %v4701 = vadd.f32 %v4417, %v4700
        %v4702 = vpop.f32.mrf.mxu0
        %4703 = vmatprep.mubr.bf16.mxu0 0
        %4704 = vmatmul.mubr.bf16.gmra.mxu0 %v4625
        %v4705 = vpop.f32.mrf.mxu0
        %v4706 = vadd.f32 %v4422, %v4705
        %v4707 = vpop.f32.mrf.mxu0
        %v4708 = vpop.f32.mrf.mxu0
        %v4709 = vadd.f32 %v4427, %v4708
        %v4710 = vpop.f32.mrf.mxu0
        %4711 = vmatprep.mubr.bf16.mxu0 0
        %4712 = vmatmul.mubr.bf16.gmra.mxu0 %v4626
        %v4713 = vpop.f32.mrf.mxu0
        %v4714 = vadd.f32 %v4432, %v4713
        %v4715 = vpop.f32.mrf.mxu0
        %v4716 = vpop.f32.mrf.mxu0
        %v4717 = vadd.f32 %v4437, %v4716
        %v4718 = vpop.f32.mrf.mxu0
        %4719 = vmatprep.mubr.bf16.mxu0 0
        %4720 = vmatmul.mubr.bf16.gmra.mxu0 %v4627
        %v4721 = vpop.f32.mrf.mxu0
        %v4722 = vadd.f32 %v4442, %v4721
        %v4723 = vpop.f32.mrf.mxu0
        %v4724 = vpop.f32.mrf.mxu0
        %v4725 = vadd.f32 %v4447, %v4724
        %v4726 = vpop.f32.mrf.mxu0
        %4727 = vmatprep.mubr.bf16.mxu0 0
        %4728 = vmatmul.mubr.bf16.gmra.mxu0 %v4628
        %v4729 = vpop.f32.mrf.mxu0
        %v4730 = vadd.f32 %v4452, %v4729
        %v4731 = vpop.f32.mrf.mxu0
        %v4732 = vpop.f32.mrf.mxu0
        %v4733 = vadd.f32 %v4457, %v4732
        %v4734 = vpop.f32.mrf.mxu0
        %4735 = vmatprep.mubr.bf16.mxu0 0
        %4736 = vmatmul.mubr.bf16.gmra.mxu0 %v4629
        %v4737 = vpop.f32.mrf.mxu0
        %v4738 = vadd.f32 %v4462, %v4737
        %v4739 = vpop.f32.mrf.mxu0
        %v4740 = vpop.f32.mrf.mxu0
        %v4741 = vadd.f32 %v4467, %v4740
        %v4742 = vpop.f32.mrf.mxu0
        %4743 = vmatprep.mubr.bf16.mxu0 0
        %4744 = vmatmul.mubr.bf16.gmra.mxu0 %v4630
        %v4745 = vpop.f32.mrf.mxu0
        %v4746 = vadd.f32 %v4472, %v4745
        %v4747 = vpop.f32.mrf.mxu0
        %v4748 = vpop.f32.mrf.mxu0
        %v4749 = vadd.f32 %v4477, %v4748
        %v4750 = vpop.f32.mrf.mxu0
        %4751 = vmatprep.mubr.bf16.mxu0 0
        %4752 = vmatmul.mubr.bf16.gmra.mxu0 %v4631
        %v4753 = vpop.f32.mrf.mxu0
        %v4754 = vadd.f32 %v4482, %v4753
        %v4755 = vpop.f32.mrf.mxu0
        %v4756 = vpop.f32.mrf.mxu0
        %v4757 = vadd.f32 %v4487, %v4756
        %v4758 = vpop.f32.mrf.mxu0
        %4759 = vmatprep.mubr.bf16.mxu0 0
        %4760 = vmatmul.mubr.bf16.gmra.mxu0 %v4632
        %v4761 = vpop.f32.mrf.mxu0
        %v4762 = vadd.f32 %v4492, %v4761
        %v4763 = vpop.f32.mrf.mxu0
        %v4764 = vpop.f32.mrf.mxu0
        %v4765 = vadd.f32 %v4497, %v4764
        %v4766 = vpop.f32.mrf.mxu0
        %4767 = vmatprep.mubr.bf16.mxu0 0
        %4768 = vmatmul.mubr.bf16.gmra.mxu0 %v4633
        %v4769 = vpop.f32.mrf.mxu0
        %v4770 = vadd.f32 %v4502, %v4769
        %v4771 = vpop.f32.mrf.mxu0
        %v4772 = vpop.f32.mrf.mxu0
        %v4773 = vadd.f32 %v4507, %v4772
        %v4774 = vpop.f32.mrf.mxu0
        %4775 = vmatprep.mubr.bf16.mxu0 0
        %4776 = vmatmul.mubr.bf16.gmra.mxu0 %v4634
        %v4777 = vpop.f32.mrf.mxu0
        %v4778 = vadd.f32 %v4512, %v4777
        %v4779 = vpop.f32.mrf.mxu0
        %v4780 = vpop.f32.mrf.mxu0
        %v4781 = vadd.f32 %v4517, %v4780
        %v4782 = vpop.f32.mrf.mxu0
        %4783 = vmatprep.mubr.bf16.mxu0 0
        %4784 = vmatmul.mubr.bf16.gmra.mxu0 %v4635
        %v4785 = vpop.f32.mrf.mxu0
        %v4786 = vadd.f32 %v4522, %v4785
        %v4787 = vpop.f32.mrf.mxu0
        %v4788 = vpop.f32.mrf.mxu0
        %v4789 = vadd.f32 %v4527, %v4788
        %v4790 = vpop.f32.mrf.mxu0
        %4791 = vmatprep.mubr.bf16.mxu0 0
        %4792 = vmatmul.mubr.bf16.gmra.mxu0 %v4636
        %v4793 = vpop.f32.mrf.mxu0
        %v4794 = vadd.f32 %v4532, %v4793
        %v4795 = vpop.f32.mrf.mxu0
        %v4796 = vpop.f32.mrf.mxu0
        %v4797 = vadd.f32 %v4537, %v4796
        %v4798 = vpop.f32.mrf.mxu0
        %4799 = vmatprep.mubr.bf16.mxu0 0
        %4800 = vmatmul.mubr.bf16.gmra.mxu0 %v4637
        %v4801 = vpop.f32.mrf.mxu0
        %v4802 = vadd.f32 %v4542, %v4801
        %v4803 = vpop.f32.mrf.mxu0
        %v4804 = vpop.f32.mrf.mxu0
        %v4805 = vadd.f32 %v4547, %v4804
        %v4806 = vpop.f32.mrf.mxu0
        %4807 = vmatprep.mubr.bf16.mxu0 0
        %4808 = vmatmul.mubr.bf16.gmra.mxu0 %v4638
        %v4809 = vpop.f32.mrf.mxu0
        %v4810 = vadd.f32 %v4552, %v4809
        %v4811 = vpop.f32.mrf.mxu0
        %v4812 = vpop.f32.mrf.mxu0
        %v4813 = vadd.f32 %v4557, %v4812
        %v4814 = vpop.f32.mrf.mxu0
        %4815 = vdwg.mxu0
        %v4816 = vadd.f32 %v4690, %v4201
        %v4817 = vadd.f32 %v4693, %v4204
        %v4818 = vadd.f32 %v4698, %v4209
        %v4819 = vadd.f32 %v4701, %v4212
        %v4820 = vadd.f32 %v4706, %v4217
        %v4821 = vadd.f32 %v4709, %v4220
        %v4822 = vadd.f32 %v4714, %v4225
        %v4823 = vadd.f32 %v4717, %v4228
        %v4824 = vadd.f32 %v4722, %v4233
        %v4825 = vadd.f32 %v4725, %v4236
        %v4826 = vadd.f32 %v4730, %v4241
        %v4827 = vadd.f32 %v4733, %v4244
        %v4828 = vadd.f32 %v4738, %v4249
        %v4829 = vadd.f32 %v4741, %v4252
        %v4830 = vadd.f32 %v4746, %v4257
        %v4831 = vadd.f32 %v4749, %v4260
        %v4832 = vadd.f32 %v4754, %v4265
        %v4833 = vadd.f32 %v4757, %v4268
        %v4834 = vadd.f32 %v4762, %v4273
        %v4835 = vadd.f32 %v4765, %v4276
        %v4836 = vadd.f32 %v4770, %v4281
        %v4837 = vadd.f32 %v4773, %v4284
        %v4838 = vadd.f32 %v4778, %v4289
        %v4839 = vadd.f32 %v4781, %v4292
        %v4840 = vadd.f32 %v4786, %v4297
        %v4841 = vadd.f32 %v4789, %v4300
        %v4842 = vadd.f32 %v4794, %v4305
        %v4843 = vadd.f32 %v4797, %v4308
        %v4844 = vadd.f32 %v4802, %v4313
        %v4845 = vadd.f32 %v4805, %v4316
        %v4846 = vadd.f32 %v4810, %v4321
        %v4847 = vadd.f32 %v4813, %v4324
        %4848 = vst [vmem:[%s421] sm:$0xff] %v4816
        %4849 = vst [vmem:[%s421 + $0x8] sm:$0xff] %v4817
        %4850 = vst [vmem:[%s421 + $0x10] sm:$0xff] %v4818
        %4851 = vst [vmem:[%s421 + $0x18] sm:$0xff] %v4819
        %4852 = vst [vmem:[%s421 + $0x20] sm:$0xff] %v4820
        %4853 = vst [vmem:[%s421 + $0x28] sm:$0xff] %v4821
        %4854 = vst [vmem:[%s421 + $0x30] sm:$0xff] %v4822
        %4855 = vst [vmem:[%s421 + $0x38] sm:$0xff] %v4823
        %4856 = vst [vmem:[%s421 + $0x40] sm:$0xff] %v4824
        %4857 = vst [vmem:[%s421 + $0x48] sm:$0xff] %v4825
        %4858 = vst [vmem:[%s421 + $0x50] sm:$0xff] %v4826
        %4859 = vst [vmem:[%s421 + $0x58] sm:$0xff] %v4827
        %4860 = vst [vmem:[%s421 + $0x60] sm:$0xff] %v4828
        %4861 = vst [vmem:[%s421 + $0x68] sm:$0xff] %v4829
        %4862 = vst [vmem:[%s421 + $0x70] sm:$0xff] %v4830
        %4863 = vst [vmem:[%s421 + $0x78] sm:$0xff] %v4831
        %4864 = vst [vmem:[%s421 + $0x80] sm:$0xff] %v4832
        %4865 = vst [vmem:[%s421 + $0x88] sm:$0xff] %v4833
        %4866 = vst [vmem:[%s421 + $0x90] sm:$0xff] %v4834
        %4867 = vst [vmem:[%s421 + $0x98] sm:$0xff] %v4835
        %4868 = vst [vmem:[%s421 + $0xa0] sm:$0xff] %v4836
        %4869 = vst [vmem:[%s421 + $0xa8] sm:$0xff] %v4837
        %4870 = vst [vmem:[%s421 + $0xb0] sm:$0xff] %v4838
        %4871 = vst [vmem:[%s421 + $0xb8] sm:$0xff] %v4839
        %4872 = vst [vmem:[%s421 + $0xc0] sm:$0xff] %v4840
        %4873 = vst [vmem:[%s421 + $0xc8] sm:$0xff] %v4841
        %4874 = vst [vmem:[%s421 + $0xd0] sm:$0xff] %v4842
        %4875 = vst [vmem:[%s421 + $0xd8] sm:$0xff] %v4843
        %4876 = vst [vmem:[%s421 + $0xe0] sm:$0xff] %v4844
        %4877 = vst [vmem:[%s421 + $0xe8] sm:$0xff] %v4845
        %4878 = vst [vmem:[%s421 + $0xf0] sm:$0xff] %v4846
        %4879 = vst [vmem:[%s421 + $0xf8] sm:$0xff] %v4847
        %s4880 = sand.u32 %s296, 1
        %s4881 = scalar_lea.sflag [#allocation3], %s4880
        %s4882 = sand.u32 %s296, 1
        %s4883 = smul.addr %s4882, 256
        %s4884 = scalar_lea.vmem [#allocation2], %s4883
        // Predicated region
        $region69: #{tpu_custom_call.1} parent=67 // pred_check
          %p4885 = pneg %p306
        $region70: #{tpu_custom_call.1} parent=67 // pred_check_branch
          %4887 = sbr.rel (%p4885) target = $region72
        $region71: #{tpu_custom_call.1} parent=67 // pred_region
          %s4889 = ssub.s32 4096, 4096
          %4890 = vsyncadd %s4881, %s4889
          %s4891 = smul.addr %s26, 32
          %s4892 = smul.addr %s4891, 128
          %s4893 = scalar_lea.hbm %s12, %s4892
          %s4894 = sshll.u32 %s4884, 4
          %s4895 = int_to_ptr.vmem [resolvable:$true] %s4894
          %4900 = dma.vmem_to_hbm [thread:$0]  %s4895, 4096, %s4893, %s4881, 128, 128, 8
        $region72: #{tpu_custom_call.1} parent=67 // pred_fallthru
          _
      $region68: #{tpu_custom_call.1} parent=5 // pred_fallthru
        _
      %p4901 = scmp.le.s32.totalorder 2, %s21
      // Predicated region
      $region73: #{tpu_custom_call.1} parent=5 // pred_check
        %p4902 = pneg %p4901
      $region74: #{tpu_custom_call.1} parent=5 // pred_check_branch
        %4904 = sbr.rel (%p4902) target = $region76
      $region75: #{tpu_custom_call.1} parent=5 // pred_region
        %s4905 = ssub.s32 %s21, 2
        // Predicated region
        $region77: #{tpu_custom_call.1} parent=75 // pred_check
          %p4906 = pneg %p312
        $region78: #{tpu_custom_call.1} parent=75 // pred_check_branch
          %4908 = sbr.rel (%p4906) target = $region80
        $region79: #{tpu_custom_call.1} parent=75 // pred_region
          %s4909 = sand.u32 %s297, 1
          %s4910 = scalar_lea.sflag [#allocation3], %s4909
          %s4911 = sand.u32 %s297, 1
          %s4912 = smul.addr %s4911, 256
          %s4913 = scalar_lea.vmem [#allocation2], %s4912
          %4914 = dma.done %s4910, 4096
        $region80: #{tpu_custom_call.1} parent=75 // pred_fallthru
          _
      $region76: #{tpu_custom_call.1} parent=5 // pred_fallthru
        _
    $region6: #{tpu_custom_call.1} parent=1 // loop_footer
      %s25 = sadd.s32 1, %s21
    $region7: #{tpu_custom_call.1} parent=1 // loop_footer_branch
      %20 = sbr.rel target = $region3
    $region8: #{tpu_custom_call.1} parent=1 // loop_exit
      _
    %4915 = vsyncpa [#allocation3], 1
    %s4916 = scalar_lea.sflag [#allocation3], 1
    %4917 = vsyncpa %s4916, 1

</llo_original>
